<compile_context>
chip_gen: v7x
topology: tpu7x:2x2x1
jax: 0.10.0
libtpu: 0.0.40
codegen_flags: <defaults>
</compile_context>

<pallas_src>
import functools
import math

import jax
import jax.numpy as jnp
from jax import lax
from jax.experimental import pallas as pl
from jax.experimental.pallas import tpu as pltpu


def _self_attn_kernel(xq_ref, xk_ref, wqk_ref, wv_ref, out_ref,
                      q_sc, m_sc, l_sc, acc_sc, *, tk, n_valid):
    # xq_ref : (1, TQ, Cp) bf16  query-row tile (augmented tokens)
    # xk_ref : (1, TK, Cp) bf16  key-row tile   (augmented tokens)
    # wqk_ref: (Cp, Cp)    bf16  fused [Wq;bq] @ [Wk;bk]^T (zero padded)
    # wv_ref : (Cp, Cp)    bf16  [Wv;bv] (zero padded)
    # q_sc   : (TQ, Cp)    bf16  cached query projection
    # m_sc/l_sc : (TQ, 1)  f32   running max / denominator
    # acc_sc : (TQ, Cp)    f32   running attention-weighted-key accumulator
    j = pl.program_id(2)

    @pl.when(j == 0)
    def _init():
        m_sc[...] = jnp.full_like(m_sc, -jnp.inf)
        l_sc[...] = jnp.zeros_like(l_sc)
        acc_sc[...] = jnp.zeros_like(acc_sc)
        # Query projection (TQ, Cp) = x_q @ Wqk, cached (bf16) across key tiles.
        q_sc[...] = jnp.dot(xq_ref[0], wqk_ref[...],
                            preferred_element_type=jnp.float32
                            ).astype(jnp.bfloat16)

    xk = xk_ref[0]                                            # (TK, Cp) bf16

    # Energy tile (TQ, TK): contract the last dim of both operands
    # (no explicit k.T transpose / XLU shuffle).
    s = lax.dot_general(
        q_sc[...], xk,
        dimension_numbers=(((1,), (1,)), ((), ())),
        preferred_element_type=jnp.float32)

    if n_valid is not None:
        # Padded key rows (token index >= n_valid) must not get softmax mass.
        key_idx = j * tk + lax.broadcasted_iota(jnp.int32, s.shape, 1)
        s = jnp.where(key_idx < n_valid, s, -jnp.inf)

    # Online softmax update (f32 math on VPU/EUP).
    m_prev = m_sc[...]
    m_new = jnp.maximum(m_prev, jnp.max(s, axis=-1, keepdims=True))
    alpha = jnp.exp(m_prev - m_new)
    p = jnp.exp(s - m_new)
    l_sc[...] = alpha * l_sc[...] + jnp.sum(p, axis=-1, keepdims=True)
    # Accumulate attention-weighted KEYS; Wv is applied once at finalize.
    acc_sc[...] = alpha * acc_sc[...] + jnp.dot(
        p.astype(jnp.bfloat16), xk, preferred_element_type=jnp.float32)
    m_sc[...] = m_new

    @pl.when(j == pl.num_programs(2) - 1)
    def _finalize():
        inv_l = pl.reciprocal(l_sc[...], approx=True)
        ctx = (acc_sc[...] * inv_l).astype(jnp.bfloat16)      # (TQ, Cp)
        # Single V projection per query tile (bias folded via the ones chan).
        out_ref[0] = jnp.dot(ctx, wv_ref[...],
                             preferred_element_type=jnp.float32
                             ).astype(out_ref.dtype)


def _round_up(n, m):
    return ((n + m - 1) // m) * m


def self_attn(x_nchw, wq, bq, wk, bk, wv, bv, gamma, *, tq=None, tk=None):
    """x_nchw: (B, C, W, H) float32.  Returns (B, C, W, H) float32."""
    B, C, W, H = x_nchw.shape
    N = W * H
    f32 = jnp.float32

    # NCHW -> (B, N, C) tokens.
    x_nc = jnp.transpose(x_nchw.reshape(B, C, N), (0, 2, 1)).astype(f32)

    Ca = C + 1                               # +1 ones channel (bias folding)
    Cp = _round_up(Ca, 128)                  # lane-dense channel padding

    # Tile defaults: multiples of 256 fill the 2x256 MXU on v6e/v7x and large
    # TQ cuts key re-streaming; capped by the (padded) sequence length.
    if tq is None:
        tq = min(512, _round_up(N, 128))
    if tk is None:
        tk = min(512, _round_up(N, 128))
    assert tq % 128 == 0 and tk % 128 == 0, (tq, tk)

    N_pad = _round_up(N, math.lcm(tq, tk))

    # Augmented tokens: [x, 1, 0-pad] -> (B, N_pad, Cp), single bf16 copy used
    # for both the query and the key tiles (halves wrapper HBM writes + DMA).
    x_aug = jnp.concatenate(
        [x_nc, jnp.ones((B, N, 1), f32), jnp.zeros((B, N, Cp - Ca), f32)],
        axis=-1)
    if N_pad > N:
        x_aug = jnp.pad(x_aug, ((0, 0), (0, N_pad - N), (0, 0)))
    x_aug = x_aug.astype(jnp.bfloat16)

    # Fold biases into weights and fuse the query/key projections:
    # energy = (x_aug @ Wqk) @ x_aug^T, removing the C//8-wide intermediates.
    wq_a = jnp.concatenate([wq, bq.reshape(1, -1)], axis=0)   # (C+1, C//8)
    wk_a = jnp.concatenate([wk, bk.reshape(1, -1)], axis=0)
    wqk = wq_a @ wk_a.T                                       # (C+1, C+1)
    wqk_p = jnp.zeros((Cp, Cp), f32).at[:Ca, :Ca].set(wqk).astype(jnp.bfloat16)
    wv_a = jnp.concatenate([wv, bv.reshape(1, -1)], axis=0)   # (C+1, C)
    wv_p = jnp.zeros((Cp, Cp), f32).at[:Ca, :C].set(wv_a).astype(jnp.bfloat16)

    grid = (B, N_pad // tq, N_pad // tk)
    kernel = functools.partial(_self_attn_kernel, tk=tk,
                               n_valid=N if N_pad > N else None)

    attn_pad = pl.pallas_call(
        kernel,
        out_shape=jax.ShapeDtypeStruct((B, N_pad, Cp), f32),
        grid_spec=pltpu.PrefetchScalarGridSpec(
            num_scalar_prefetch=0,
            grid=grid,
            in_specs=[
                pl.BlockSpec((1, tq, Cp), lambda b, i, j: (b, i, 0)),  # queries
                pl.BlockSpec((1, tk, Cp), lambda b, i, j: (b, j, 0)),  # keys
                pl.BlockSpec((Cp, Cp), lambda b, i, j: (0, 0)),        # Wqk
                pl.BlockSpec((Cp, Cp), lambda b, i, j: (0, 0)),        # Wv
            ],
            out_specs=pl.BlockSpec((1, tq, Cp), lambda b, i, j: (b, i, 0)),
            scratch_shapes=[
                pltpu.VMEM((tq, Cp), jnp.bfloat16),   # cached query projection
                pltpu.VMEM((tq, 1), jnp.float32),     # running max
                pltpu.VMEM((tq, 1), jnp.float32),     # running denominator
                pltpu.VMEM((tq, Cp), jnp.float32),    # weighted-key accumulator
            ]),
        compiler_params=pltpu.CompilerParams(
            dimension_semantics=("parallel", "parallel", "arbitrary"),
            vmem_limit_bytes=32 * 1024 * 1024),       # stays v7x-safe (64 MiB)
    )(x_aug, x_aug, wqk_p, wv_p)

    # (B, N_pad, Cp) -> valid tokens/channels; residual + gamma in f32.
    attn_nc = attn_pad[:, :N, :C]
    out_nc = gamma[0] * attn_nc + x_nc
    return jnp.transpose(out_nc, (0, 2, 1)).reshape(B, C, W, H)


def reference(x_nchw, wq, bq, wk, bk, wv, bv, gamma):
    """Pure-JAX f32 reference matching the PyTorch forward."""
    B, C, W, H = x_nchw.shape
    N = W * H
    x_nc = jnp.transpose(x_nchw.reshape(B, C, N), (0, 2, 1))          # (B, N, C)
    q = x_nc @ wq + bq
    k = x_nc @ wk + bk
    v = x_nc @ wv + bv
    energy = jnp.einsum("bic,bjc->bij", q, k)
    attn = jax.nn.softmax(energy, axis=-1)
    out_nc = jnp.einsum("bij,bjc->bic", attn, v)
    out_nc = gamma[0] * out_nc + x_nc
    return jnp.transpose(out_nc, (0, 2, 1)).reshape(B, C, W, H)


if __name__ == "__main__":
    B, C, W, H = 2, 32, 16, 16      # in_dim = 32 -> query/key channels = 4
    C8 = C // 8

    key = jax.random.PRNGKey(0)
    kx, kq, kk, kv, kbq, kbk, kbv, kx2 = jax.random.split(key, 8)

    x = jax.random.normal(kx, (B, C, W, H), dtype=jnp.float32)

    # Conv2d(in, out, 1) weights, stored transposed for (N, C) @ (C, Cout).
    scale = 1.0 / jnp.sqrt(jnp.float32(C))
    wq = jax.random.normal(kq, (C, C8), jnp.float32) * scale
    wk = jax.random.normal(kk, (C, C8), jnp.float32) * scale
    wv = jax.random.normal(kv, (C, C), jnp.float32) * scale
    bq = jax.random.normal(kbq, (1, C8), jnp.float32) * scale
    bk = jax.random.normal(kbk, (1, C8), jnp.float32) * scale
    bv = jax.random.normal(kbv, (1, C), jnp.float32) * scale
    # nn.Parameter(torch.zeros(1)) -> gamma; nonzero so the attention path
    # actually contributes under test.
    gamma = jnp.array([0.5], dtype=jnp.float32)

    ref = reference(x, wq, bq, wk, bk, wv, bv, gamma)

    # 1) Default tiles (tq = tk = 256 at N = 256).
    out = jax.block_until_ready(self_attn(x, wq, bq, wk, bk, wv, bv, gamma))
    assert out.shape == (B, C, W, H)
    assert jnp.allclose(out, ref, atol=5e-2, rtol=5e-2), (
        float(jnp.max(jnp.abs(out - ref))))

    # 2) Small tiles: exercises multiple online-softmax key steps.
    out_s = jax.block_until_ready(
        self_attn(x, wq, bq, wk, bk, wv, bv, gamma, tq=128, tk=128))
    assert jnp.allclose(out_s, ref, atol=5e-2, rtol=5e-2), (
        float(jnp.max(jnp.abs(out_s - ref))))

    # 3) Non-divisible spatial size: exercises N padding + key masking.
    x2 = jax.random.normal(kx2, (1, C, 12, 12), dtype=jnp.float32)   # N = 144
    ref2 = reference(x2, wq, bq, wk, bk, wv, bv, gamma)
    out2 = jax.block_until_ready(
        self_attn(x2, wq, bq, wk, bk, wv, bv, gamma, tq=128, tk=128))
    assert jnp.allclose(out2, ref2, atol=5e-2, rtol=5e-2), (
        float(jnp.max(jnp.abs(out2 - ref2))))

    print("KERNEL_OK")
</pallas_src>

<mosaic_0001>
module attributes {stable_mosaic.version = 11 : i64} {
  func.func @_self_attn_kernel(%arg0: i32, %arg1: i32, %arg2: i32, %arg3: memref<1x256x128xbf16, #tpu.memory_space<vmem>>, %arg4: memref<1x256x128xbf16, #tpu.memory_space<vmem>>, %arg5: memref<128x128xbf16, #tpu.memory_space<vmem>>, %arg6: memref<128x128xbf16, #tpu.memory_space<vmem>>, %arg7: memref<1x256x128xf32, #tpu.memory_space<vmem>>, %arg8: memref<256x128xbf16, #tpu.memory_space<vmem>>, %arg9: memref<256x1xf32, #tpu.memory_space<vmem>>, %arg10: memref<256x1xf32, #tpu.memory_space<vmem>>, %arg11: memref<256x128xf32, #tpu.memory_space<vmem>>) attributes {dimension_semantics = [#tpu.dimension_semantics<parallel>, #tpu.dimension_semantics<parallel>, #tpu.dimension_semantics<arbitrary>], iteration_bounds = array<i64: 2, 1, 1>, scalar_prefetch = 0 : i64, scratch_operands = 4 : i64, tpu.core_type = #tpu.core_type<tc>, window_params = [{transform_indices = @transform_0, window_bounds = array<i64: 1, 256, 128>}, {transform_indices = @transform_1, window_bounds = array<i64: 1, 256, 128>}, {pipeline_mode = #tpu.pipeline_mode<synchronous>, transform_indices = @transform_2, window_bounds = array<i64: 128, 128>}, {pipeline_mode = #tpu.pipeline_mode<synchronous>, transform_indices = @transform_3, window_bounds = array<i64: 128, 128>}, {transform_indices = @transform_4, window_bounds = array<i64: 1, 256, 128>}]} {
    %c0_i32 = arith.constant 0 : i32
    %0 = arith.cmpi eq, %arg2, %c0_i32 : i32
    %1 = arith.extui %0 : i1 to i32
    %c0_i32_0 = arith.constant 0 : i32
    %2 = arith.cmpi ne, %1, %c0_i32_0 : i32
    scf.if %2 {
      %cst_22 = arith.constant 0xFF800000 : f32
      %33 = vector.broadcast %cst_22 : f32 to vector<256x1xf32>
      %c0_23 = arith.constant 0 : index
      %c0_24 = arith.constant 0 : index
      %34 = vector.load %arg9[%c0_23, %c0_24] : memref<256x1xf32, #tpu.memory_space<vmem>>, vector<256x1xf32>
      tpu.vector_store %arg9[%c0_23, %c0_24], %33 {strides = array<i32>} : memref<256x1xf32, #tpu.memory_space<vmem>>, vector<256x1xf32>,
      %cst_25 = arith.constant 0.000000e+00 : f32
      %35 = vector.broadcast %cst_25 : f32 to vector<256x1xf32>
      %c0_26 = arith.constant 0 : index
      %c0_27 = arith.constant 0 : index
      %36 = vector.load %arg10[%c0_26, %c0_27] : memref<256x1xf32, #tpu.memory_space<vmem>>, vector<256x1xf32>
      tpu.vector_store %arg10[%c0_26, %c0_27], %35 {strides = array<i32>} : memref<256x1xf32, #tpu.memory_space<vmem>>, vector<256x1xf32>,
      %cst_28 = arith.constant 0.000000e+00 : f32
      %37 = vector.broadcast %cst_28 : f32 to vector<256x128xf32>
      %c0_29 = arith.constant 0 : index
      %c0_30 = arith.constant 0 : index
      %38 = vector.load %arg11[%c0_29, %c0_30] : memref<256x128xf32, #tpu.memory_space<vmem>>, vector<256x128xf32>
      tpu.vector_store %arg11[%c0_29, %c0_30], %37 {strides = array<i32>} : memref<256x128xf32, #tpu.memory_space<vmem>>, vector<256x128xf32>,
      %c0_31 = arith.constant 0 : index
      %c0_32 = arith.constant 0 : index
      %c0_33 = arith.constant 0 : index
      %39 = vector.load %arg3[%c0_31, %c0_32, %c0_33] : memref<1x256x128xbf16, #tpu.memory_space<vmem>>, vector<1x256x128xbf16>
      %40 = vector.shape_cast %39 : vector<1x256x128xbf16> to vector<256x128xbf16>
      %c0_34 = arith.constant 0 : index
      %c0_35 = arith.constant 0 : index
      %41 = vector.load %arg5[%c0_34, %c0_35] : memref<128x128xbf16, #tpu.memory_space<vmem>>, vector<128x128xbf16>
      %cst_36 = arith.constant dense<0.000000e+00> : vector<256x128xf32>
      %42 = tpu.matmul %40, %41, %cst_36 {dimension_numbers = #tpu.dot_dimension_numbers<[1], [0], [0], [1], [0, 0, 1, 1], [], []>} : vector<256x128xbf16>, vector<128x128xbf16>, vector<256x128xf32> -> vector<256x128xf32>
      %43 = arith.truncf %42 : vector<256x128xf32> to vector<256x128xbf16>
      %c0_37 = arith.constant 0 : index
      %c0_38 = arith.constant 0 : index
      %44 = vector.load %arg8[%c0_37, %c0_38] : memref<256x128xbf16, #tpu.memory_space<vmem>>, vector<256x128xbf16>
      tpu.vector_store %arg8[%c0_37, %c0_38], %43 {strides = array<i32>} : memref<256x128xbf16, #tpu.memory_space<vmem>>, vector<256x128xbf16>,
    } else {
    }
    %c0 = arith.constant 0 : index
    %c0_1 = arith.constant 0 : index
    %c0_2 = arith.constant 0 : index
    %3 = vector.load %arg4[%c0, %c0_1, %c0_2] : memref<1x256x128xbf16, #tpu.memory_space<vmem>>, vector<1x256x128xbf16>
    %4 = vector.shape_cast %3 : vector<1x256x128xbf16> to vector<256x128xbf16>
    %c0_3 = arith.constant 0 : index
    %c0_4 = arith.constant 0 : index
    %5 = vector.load %arg8[%c0_3, %c0_4] : memref<256x128xbf16, #tpu.memory_space<vmem>>, vector<256x128xbf16>
    %cst = arith.constant dense<0.000000e+00> : vector<256x256xf32>
    %6 = tpu.matmul %5, %4, %cst {dimension_numbers = #tpu.dot_dimension_numbers<[1], [1], [0], [0], [0, 0, 1, 0], [], []>} : vector<256x128xbf16>, vector<256x128xbf16>, vector<256x256xf32> -> vector<256x256xf32>
    %c0_5 = arith.constant 0 : index
    %c0_6 = arith.constant 0 : index
    %7 = vector.load %arg9[%c0_5, %c0_6] : memref<256x1xf32, #tpu.memory_space<vmem>>, vector<256x1xf32>
    %cst_7 = arith.constant dense<0xFF800000> : vector<256xf32>
    %8 = vector.multi_reduction <maximumf>, %6, %cst_7 [1] : vector<256x256xf32> to vector<256xf32>
    %9 = vector.shape_cast %8 : vector<256xf32> to vector<256x1xf32>
    %10 = arith.maximumf %7, %9 : vector<256x1xf32>
    %11 = arith.subf %7, %10 : vector<256x1xf32>
    %12 = math.exp %11 : vector<256x1xf32>
    %13 = vector.broadcast %10 : vector<256x1xf32> to vector<256x256xf32>
    %14 = arith.subf %6, %13 : vector<256x256xf32>
    %15 = math.exp %14 : vector<256x256xf32>
    %c0_8 = arith.constant 0 : index
    %c0_9 = arith.constant 0 : index
    %16 = vector.load %arg10[%c0_8, %c0_9] : memref<256x1xf32, #tpu.memory_space<vmem>>, vector<256x1xf32>
    %17 = arith.mulf %12, %16 : vector<256x1xf32>
    %cst_10 = arith.constant dense<0.000000e+00> : vector<256xf32>
    %18 = vector.multi_reduction <add>, %15, %cst_10 [1] : vector<256x256xf32> to vector<256xf32>
    %19 = vector.shape_cast %18 : vector<256xf32> to vector<256x1xf32>
    %20 = arith.addf %17, %19 : vector<256x1xf32>
    %c0_11 = arith.constant 0 : index
    %c0_12 = arith.constant 0 : index
    %21 = vector.load %arg10[%c0_11, %c0_12] : memref<256x1xf32, #tpu.memory_space<vmem>>, vector<256x1xf32>
    tpu.vector_store %arg10[%c0_11, %c0_12], %20 {strides = array<i32>} : memref<256x1xf32, #tpu.memory_space<vmem>>, vector<256x1xf32>,
    %c0_13 = arith.constant 0 : index
    %c0_14 = arith.constant 0 : index
    %22 = vector.load %arg11[%c0_13, %c0_14] : memref<256x128xf32, #tpu.memory_space<vmem>>, vector<256x128xf32>
    %23 = vector.broadcast %12 : vector<256x1xf32> to vector<256x128xf32>
    %24 = arith.mulf %23, %22 : vector<256x128xf32>
    %25 = arith.truncf %15 : vector<256x256xf32> to vector<256x256xbf16>
    %cst_15 = arith.constant dense<0.000000e+00> : vector<256x128xf32>
    %26 = tpu.matmul %25, %4, %cst_15 {dimension_numbers = #tpu.dot_dimension_numbers<[1], [0], [0], [1], [0, 0, 1, 1], [], []>} : vector<256x256xbf16>, vector<256x128xbf16>, vector<256x128xf32> -> vector<256x128xf32>
    %27 = arith.addf %24, %26 : vector<256x128xf32>
    %c0_16 = arith.constant 0 : index
    %c0_17 = arith.constant 0 : index
    %28 = vector.load %arg11[%c0_16, %c0_17] : memref<256x128xf32, #tpu.memory_space<vmem>>, vector<256x128xf32>
    tpu.vector_store %arg11[%c0_16, %c0_17], %27 {strides = array<i32>} : memref<256x128xf32, #tpu.memory_space<vmem>>, vector<256x128xf32>,
    %c0_18 = arith.constant 0 : index
    %c0_19 = arith.constant 0 : index
    %29 = vector.load %arg9[%c0_18, %c0_19] : memref<256x1xf32, #tpu.memory_space<vmem>>, vector<256x1xf32>
    tpu.vector_store %arg9[%c0_18, %c0_19], %10 {strides = array<i32>} : memref<256x1xf32, #tpu.memory_space<vmem>>, vector<256x1xf32>,
    %c0_i32_20 = arith.constant 0 : i32
    %30 = arith.cmpi eq, %arg2, %c0_i32_20 : i32
    %31 = arith.extui %30 : i1 to i32
    %c0_i32_21 = arith.constant 0 : i32
    %32 = arith.cmpi ne, %31, %c0_i32_21 : i32
    scf.if %32 {
      %c0_22 = arith.constant 0 : index
      %c0_23 = arith.constant 0 : index
      %33 = vector.load %arg10[%c0_22, %c0_23] : memref<256x1xf32, #tpu.memory_space<vmem>>, vector<256x1xf32>
      %34 = tpu.reciprocal %33 {approx = true} : vector<256x1xf32> -> vector<256x1xf32>
      %c0_24 = arith.constant 0 : index
      %c0_25 = arith.constant 0 : index
      %35 = vector.load %arg11[%c0_24, %c0_25] : memref<256x128xf32, #tpu.memory_space<vmem>>, vector<256x128xf32>
      %36 = vector.broadcast %34 : vector<256x1xf32> to vector<256x128xf32>
      %37 = arith.mulf %35, %36 : vector<256x128xf32>
      %38 = arith.truncf %37 : vector<256x128xf32> to vector<256x128xbf16>
      %c0_26 = arith.constant 0 : index
      %c0_27 = arith.constant 0 : index
      %39 = vector.load %arg6[%c0_26, %c0_27] : memref<128x128xbf16, #tpu.memory_space<vmem>>, vector<128x128xbf16>
      %cst_28 = arith.constant dense<0.000000e+00> : vector<256x128xf32>
      %40 = tpu.matmul %38, %39, %cst_28 {dimension_numbers = #tpu.dot_dimension_numbers<[1], [0], [0], [1], [0, 0, 1, 1], [], []>} : vector<256x128xbf16>, vector<128x128xbf16>, vector<256x128xf32> -> vector<256x128xf32>
      %c0_29 = arith.constant 0 : index
      %c0_30 = arith.constant 0 : index
      %c0_31 = arith.constant 0 : index
      %41 = vector.load %arg7[%c0_29, %c0_30, %c0_31] : memref<1x256x128xf32, #tpu.memory_space<vmem>>, vector<1x256x128xf32>
      %42 = vector.shape_cast %41 : vector<1x256x128xf32> to vector<256x128xf32>
      %43 = vector.shape_cast %40 : vector<256x128xf32> to vector<1x256x128xf32>
      tpu.vector_store %arg7[%c0_29, %c0_30, %c0_31], %43 {strides = array<i32>} : memref<1x256x128xf32, #tpu.memory_space<vmem>>, vector<1x256x128xf32>,
    } else {
    }
    return
  }
  func.func @transform_0(%arg0: i32, %arg1: i32, %arg2: i32) -> (i32, i32, i32) {
    %c0_i32 = arith.constant 0 : i32
    %c0_i32_0 = arith.constant 0 : i32
    return %arg0, %arg1, %c0_i32 : i32, i32, i32
  }
  func.func @transform_1(%arg0: i32, %arg1: i32, %arg2: i32) -> (i32, i32, i32) {
    %c0_i32 = arith.constant 0 : i32
    %c0_i32_0 = arith.constant 0 : i32
    return %arg0, %arg2, %c0_i32 : i32, i32, i32
  }
  func.func @transform_2(%arg0: i32, %arg1: i32, %arg2: i32) -> (i32, i32) {
    %c0_i32 = arith.constant 0 : i32
    %c0_i32_0 = arith.constant 0 : i32
    %c0_i32_1 = arith.constant 0 : i32
    return %c0_i32, %c0_i32_0 : i32, i32
  }
  func.func @transform_3(%arg0: i32, %arg1: i32, %arg2: i32) -> (i32, i32) {
    %c0_i32 = arith.constant 0 : i32
    %c0_i32_0 = arith.constant 0 : i32
    %c0_i32_1 = arith.constant 0 : i32
    return %c0_i32, %c0_i32_0 : i32, i32
  }
  func.func @transform_4(%arg0: i32, %arg1: i32, %arg2: i32) -> (i32, i32, i32) {
    %c0_i32 = arith.constant 0 : i32
    %c0_i32_0 = arith.constant 0 : i32
    return %arg0, %arg1, %c0_i32 : i32, i32, i32
  }
}

</mosaic_0001>

<llo_original>
// kernel: tpu_custom_call.1
$region0: #{tpu_custom_call.1}
  #allocation0 [shape = 'u32[]', space=smem, size = 0x4, offset = 0x4, fixed_abs, tag = 'smem constant byte address 0x4 - core index']
  #allocation1 [shape = 'u32[144,128]{1,0:T(1,128)}', space=vmem, size = 0x12000, scoped, tag = 'internal scratch']
  #allocation2 [shape = 'bf16[256,128]{1,0:T(16,128)(2,1)}', space=vmem, size = 0x10000, scoped, tag = 'scratch operand']
  #allocation3 [shape = 'f32[256,1]{1,0:T(8,128)}', space=vmem, size = 0x20000, scoped, tag = 'scratch operand']
  #allocation4 [shape = 'f32[256,1]{1,0:T(8,128)}', space=vmem, size = 0x20000, scoped, tag = 'scratch operand']
  #allocation5 [shape = 'f32[256,128]{1,0:T(8,128)}', space=vmem, size = 0x20000, scoped, tag = 'scratch operand']
  %s0 = inlined_call_operand.hbm [shape: bf16[2,256,128], index: 0, kind: input, shape index: {}]
  %s1 = inlined_call_operand.hbm [shape: bf16[2,256,128], index: 1, kind: input, shape index: {}]
  %s2 = inlined_call_operand.hbm [shape: bf16[128,128], index: 2, kind: input, shape index: {}]
  %s3 = inlined_call_operand.hbm [shape: bf16[128,128], index: 3, kind: input, shape index: {}]
  %s4 = inlined_call_operand.hbm [shape: f32[2,256,128], index: 4, kind: output, shape index: {}]
  %s5 = sld [smem:[#allocation0]]
  $region73: #{tpu_custom_call.1} parent=0
    _
  %s7 = ssub.s32 1, %s5
  %s8 = scalar_select 0, %s7, %s5
  $region1: #{tpu_custom_call.1} parent=0
    #allocation6 [shape = 'u8[131072]{0}', space=vmem, size = 0x20000, scoped, tag = 'input window, operand 0']
    #allocation7 [shape = 's32[2]{0}', space=sflag, size = 0x8, scoped, tag = 'scoped memory for tpu_custom_call.1']
    #allocation8 [shape = 's32[2]{0}', space=sflag, size = 0x8, scoped, tag = 'scoped memory for tpu_custom_call.1']
    #allocation9 [shape = 'u8[131072]{0}', space=vmem, size = 0x20000, scoped, tag = 'input window, operand 1']
    #allocation10 [shape = 's32[2]{0}', space=sflag, size = 0x8, scoped, tag = 'scoped memory for tpu_custom_call.1']
    #allocation11 [shape = 'u8[32768]{0}', space=vmem, size = 0x8000, scoped, tag = 'input window, operand 2, single buffered']
    #allocation12 [shape = 'u8[32768]{0}', space=vmem, size = 0x8000, scoped, tag = 'input window, operand 3, single buffered']
    #allocation13 [shape = 's32[1]{0}', space=sflag, size = 0x4, scoped, tag = 'scoped memory for tpu_custom_call.1']
    #allocation14 [shape = 'u8[262144]{0}', space=vmem, size = 0x40000, scoped, tag = 'output window, operand 0']
    %9 = vsyncpa [#allocation7], 0
    %s10 = scalar_lea.sflag [#allocation7], 1
    %11 = vsyncpa %s10, 0
    %12 = vsyncpa [#allocation10], 0
    %s13 = scalar_lea.sflag [#allocation10], 1
    %14 = vsyncpa %s13, 0
    %15 = vsyncpa [#allocation13], 0
    %16 = vsyncpa [#allocation8], 0
    %s17 = scalar_lea.sflag [#allocation8], 1
    %18 = vsyncpa %s17, 0
    loop: start=0, step=1, limit=4
    $region2: #{tpu_custom_call.1} parent=1 // loop_pre_header
      _
    $region3: #{tpu_custom_call.1} parent=1 // loop_header
      %s20 = sphi 0, %s24
      %p21 = scmp.ge.s32.totalorder %s20, 4
      %s27 = sphi 0, %s46
      %s28 = sphi 0, %s42
      %s29 = sphi 0, %s38
      %s30 = sphi 0, %s27
      %s31 = sphi 0, %s28
      %s32 = sphi 0, %s29
      %s33 = sphi 0, %s30
      %s34 = sphi 0, %s31
      %s35 = sphi 0, %s32
      %s51 = sphi 0, %s53
      %s54 = sphi 0, %s51
      %s55 = sphi 0, %s54
      %s71 = sphi 0, %s55
      %s79 = sphi 0, %s81
      %s82 = sphi 0, %s79
      %s83 = sphi 0, %s82
      %s99 = sphi 0, %s83
      %s103 = sphi 0, %s103
      %s105 = sphi 0, %s103
      %s106 = sphi 0, %s105
      %s120 = sphi 0, %s106
      %s124 = sphi 0, %s124
      %s126 = sphi 0, %s124
      %s127 = sphi 0, %s126
      %s141 = sphi 0, %s127
      %s149 = sphi 0, %s151
      %s152 = sphi 0, %s149
      %s153 = sphi 0, %s152
      %s169 = sphi 0, %s153
    $region4: #{tpu_custom_call.1} parent=1 // loop_header_branch
      %23 = sbr.rel (%p21) target = $region8
    $region5: #{tpu_custom_call.1} parent=1 // loop_body
      %s25 = ssub.s32 %s20, 1
      %s26 = ssub.s32 %s20, 2
      %s36 = sadd.s32 1, %s29
      %p37 = scmp.ge.s32.totalorder %s36, 1
      %s38 = scalar_select %p37, 0, %s36
      %s39 = sadd.s32 1, %s28
      %s40 = scalar_select %p37, %s39, %s28
      %p41 = scmp.ge.s32.totalorder %s40, 1
      %s42 = scalar_select %p41, 0, %s40
      %s43 = sadd.s32 1, %s27
      %s44 = scalar_select %p41, %s43, %s27
      %p45 = scmp.ge.s32.totalorder %s44, 2
      %s46 = scalar_select %p45, 0, %s44
      %s47 = ssub.s32 %s27, %s46
      %s48 = ssub.s32 %s28, %s42
      %s49 = sor.u32 %s47, %s48
      %p50 = scmp.eq.s32.totalorder %s49, 0
      %s52 = sadd.s32 %s51, 1
      %s53 = scalar_select %p50, %s51, %s52
      %p56 = pneg %p50
      %p57 = scmp.eq.s32.totalorder %s20, 1
      %p58 = por %p56, %p57
      %p59 = scmp.ne.s32.totalorder %s51, %s54
      %p60 = scmp.eq.s32.totalorder %s20, 0
      %p61 = por %p59, %p60
      %p62 = scmp.ne.s32.totalorder %s51, %s54
      %p63 = scmp.eq.s32.totalorder %s25, 1
      %p64 = por %p62, %p63
      %p65 = scmp.ne.s32.totalorder %s54, %s55
      %p66 = scmp.eq.s32.totalorder %s25, 0
      %p67 = por %p65, %p66
      %p68 = scmp.ne.s32.totalorder %s54, %s55
      %p69 = scmp.eq.s32.totalorder %s26, 1
      %p70 = por %p68, %p69
      %p72 = scmp.ne.s32.totalorder %s55, %s71
      %p73 = scmp.eq.s32.totalorder %s26, 0
      %p74 = por %p72, %p73
      %s75 = ssub.s32 %s27, %s46
      %s76 = ssub.s32 %s29, %s38
      %s77 = sor.u32 %s75, %s76
      %p78 = scmp.eq.s32.totalorder %s77, 0
      %s80 = sadd.s32 %s79, 1
      %s81 = scalar_select %p78, %s79, %s80
      %p84 = pneg %p78
      %p85 = scmp.eq.s32.totalorder %s20, 1
      %p86 = por %p84, %p85
      %p87 = scmp.ne.s32.totalorder %s79, %s82
      %p88 = scmp.eq.s32.totalorder %s20, 0
      %p89 = por %p87, %p88
      %p90 = scmp.ne.s32.totalorder %s79, %s82
      %p91 = scmp.eq.s32.totalorder %s25, 1
      %p92 = por %p90, %p91
      %p93 = scmp.ne.s32.totalorder %s82, %s83
      %p94 = scmp.eq.s32.totalorder %s25, 0
      %p95 = por %p93, %p94
      %p96 = scmp.ne.s32.totalorder %s82, %s83
      %p97 = scmp.eq.s32.totalorder %s26, 1
      %p98 = por %p96, %p97
      %p100 = scmp.ne.s32.totalorder %s83, %s99
      %p101 = scmp.eq.s32.totalorder %s26, 0
      %p102 = por %p100, %p101
      %s104 = sadd.s32 %s103, 1
      %p107 = scmp.eq.s32.totalorder %s20, 1
      %p108 = scmp.ne.s32.totalorder %s103, %s105
      %p109 = scmp.eq.s32.totalorder %s20, 0
      %p110 = por %p108, %p109
      %p111 = scmp.ne.s32.totalorder %s103, %s105
      %p112 = scmp.eq.s32.totalorder %s25, 1
      %p113 = por %p111, %p112
      %p114 = scmp.ne.s32.totalorder %s105, %s106
      %p115 = scmp.eq.s32.totalorder %s25, 0
      %p116 = por %p114, %p115
      %p117 = scmp.ne.s32.totalorder %s105, %s106
      %p118 = scmp.eq.s32.totalorder %s26, 1
      %p119 = por %p117, %p118
      %p121 = scmp.ne.s32.totalorder %s106, %s120
      %p122 = scmp.eq.s32.totalorder %s26, 0
      %p123 = por %p121, %p122
      %s125 = sadd.s32 %s124, 1
      %p128 = scmp.eq.s32.totalorder %s20, 1
      %p129 = scmp.ne.s32.totalorder %s124, %s126
      %p130 = scmp.eq.s32.totalorder %s20, 0
      %p131 = por %p129, %p130
      %p132 = scmp.ne.s32.totalorder %s124, %s126
      %p133 = scmp.eq.s32.totalorder %s25, 1
      %p134 = por %p132, %p133
      %p135 = scmp.ne.s32.totalorder %s126, %s127
      %p136 = scmp.eq.s32.totalorder %s25, 0
      %p137 = por %p135, %p136
      %p138 = scmp.ne.s32.totalorder %s126, %s127
      %p139 = scmp.eq.s32.totalorder %s26, 1
      %p140 = por %p138, %p139
      %p142 = scmp.ne.s32.totalorder %s127, %s141
      %p143 = scmp.eq.s32.totalorder %s26, 0
      %p144 = por %p142, %p143
      %s145 = ssub.s32 %s27, %s46
      %s146 = ssub.s32 %s28, %s42
      %s147 = sor.u32 %s145, %s146
      %p148 = scmp.eq.s32.totalorder %s147, 0
      %s150 = sadd.s32 %s149, 1
      %s151 = scalar_select %p148, %s149, %s150
      %p154 = pneg %p148
      %p155 = scmp.eq.s32.totalorder %s20, 1
      %p156 = por %p154, %p155
      %p157 = scmp.ne.s32.totalorder %s149, %s152
      %p158 = scmp.eq.s32.totalorder %s20, 0
      %p159 = por %p157, %p158
      %p160 = scmp.ne.s32.totalorder %s149, %s152
      %p161 = scmp.eq.s32.totalorder %s25, 1
      %p162 = por %p160, %p161
      %p163 = scmp.ne.s32.totalorder %s152, %s153
      %p164 = scmp.eq.s32.totalorder %s25, 0
      %p165 = por %p163, %p164
      %p166 = scmp.ne.s32.totalorder %s152, %s153
      %p167 = scmp.eq.s32.totalorder %s26, 1
      %p168 = por %p166, %p167
      %p170 = scmp.ne.s32.totalorder %s153, %s169
      %p171 = scmp.eq.s32.totalorder %s26, 0
      %p172 = por %p170, %p171
      %p173 = scmp.le.s32.totalorder 1, %s20
      %p174 = scmp.lt.s32.totalorder %s20, 3
      %p175 = pnand %p173, %p174
      %p176 = pneg %p175
      // Predicated region
      $region9: #{tpu_custom_call.1} parent=5 // pred_check
        _
      $region10: #{tpu_custom_call.1} parent=5 // pred_check_branch
        %178 = sbr.rel (%p175) target = $region12
      $region11: #{tpu_custom_call.1} parent=5 // pred_region
        %s179 = ssub.s32 %s20, 1
        // Predicated region
        $region13: #{tpu_custom_call.1} parent=11 // pred_check
          %p180 = pneg %p116
        $region14: #{tpu_custom_call.1} parent=11 // pred_check_branch
          %182 = sbr.rel (%p180) target = $region16
        $region15: #{tpu_custom_call.1} parent=11 // pred_region
          %s184 = ssub.s32 1024, 1024
          %185 = vsyncadd [#allocation10], %s184
          %s186 = sshll.u32 [#allocation11], 4
          %s187 = int_to_ptr.vmem [resolvable:$true] %s186
          %192 = dma.hbm_to_vmem [thread:$0]  %s2, 1024, %s187, [#allocation10], 64, 64, 4
        $region16: #{tpu_custom_call.1} parent=11 // pred_fallthru
          _
        // Predicated region
        $region17: #{tpu_custom_call.1} parent=11 // pred_check
          %p193 = pneg %p137
        $region18: #{tpu_custom_call.1} parent=11 // pred_check_branch
          %195 = sbr.rel (%p193) target = $region20
        $region19: #{tpu_custom_call.1} parent=11 // pred_region
          %s197 = ssub.s32 1024, 1024
          %198 = vsyncadd [#allocation13], %s197
          %s199 = sshll.u32 [#allocation12], 4
          %s200 = int_to_ptr.vmem [resolvable:$true] %s199
          %205 = dma.hbm_to_vmem [thread:$0]  %s3, 1024, %s200, [#allocation13], 64, 64, 4
        $region20: #{tpu_custom_call.1} parent=11 // pred_fallthru
          _
      $region12: #{tpu_custom_call.1} parent=5 // pred_fallthru
        _
      %p206 = scmp.lt.s32.totalorder %s20, 2
      // Predicated region
      $region21: #{tpu_custom_call.1} parent=5 // pred_check
        %p207 = pneg %p206
      $region22: #{tpu_custom_call.1} parent=5 // pred_check_branch
        %209 = sbr.rel (%p207) target = $region24
      $region23: #{tpu_custom_call.1} parent=5 // pred_region
        // Predicated region
        $region25: #{tpu_custom_call.1} parent=23 // pred_check
          %p210 = pneg %p61
        $region26: #{tpu_custom_call.1} parent=23 // pred_check_branch
          %212 = sbr.rel (%p210) target = $region28
        $region27: #{tpu_custom_call.1} parent=23 // pred_region
          %s213 = sand.u32 %s51, 1
          %s214 = scalar_lea.sflag [#allocation7], %s213
          %s215 = sand.u32 %s51, 1
          %s216 = smul.addr %s215, 128
          %s217 = scalar_lea.vmem [#allocation6], %s216
          %s218 = smul.u32 32, %s28
          %s220 = ssub.s32 2048, 2048
          %221 = vsyncadd %s214, %s220
          %s222 = smul.addr %s27, 32
          %s223 = sadd.s32 %s218, %s222
          %s224 = smul.addr %s223, 64
          %s225 = scalar_lea.hbm %s0, %s224
          %s226 = sshll.u32 %s217, 4
          %s227 = int_to_ptr.vmem [resolvable:$true] %s226
          %232 = dma.hbm_to_vmem [thread:$0]  %s225, 2048, %s227, %s214, 64, 64, 4
        $region28: #{tpu_custom_call.1} parent=23 // pred_fallthru
          _
        // Predicated region
        $region29: #{tpu_custom_call.1} parent=23 // pred_check
          %p233 = pneg %p89
        $region30: #{tpu_custom_call.1} parent=23 // pred_check_branch
          %235 = sbr.rel (%p233) target = $region32
        $region31: #{tpu_custom_call.1} parent=23 // pred_region
          %s236 = sand.u32 %s20, 1
          %s237 = scalar_lea.sflag [#allocation10], %s236
          %s238 = sand.u32 %s79, 1
          %s239 = smul.addr %s238, 128
          %s240 = scalar_lea.vmem [#allocation9], %s239
          %s241 = smul.u32 32, %s29
          %s243 = ssub.s32 2048, 2048
          %244 = vsyncadd %s237, %s243
          %s245 = smul.addr %s27, 32
          %s246 = sadd.s32 %s241, %s245
          %s247 = smul.addr %s246, 64
          %s248 = scalar_lea.hbm %s1, %s247
          %s249 = sshll.u32 %s240, 4
          %s250 = int_to_ptr.vmem [resolvable:$true] %s249
          %255 = dma.hbm_to_vmem [thread:$0]  %s248, 2048, %s250, %s237, 64, 64, 4
        $region32: #{tpu_custom_call.1} parent=23 // pred_fallthru
          _
      $region24: #{tpu_custom_call.1} parent=5 // pred_fallthru
        _
      %p256 = scmp.le.s32.totalorder 1, %s20
      %p257 = scmp.lt.s32.totalorder %s20, 3
      %p258 = pnand %p256, %p257
      %p259 = pneg %p258
      // Predicated region
      $region33: #{tpu_custom_call.1} parent=5 // pred_check
        _
      $region34: #{tpu_custom_call.1} parent=5 // pred_check_branch
        %261 = sbr.rel (%p258) target = $region36
      $region35: #{tpu_custom_call.1} parent=5 // pred_region
        %s262 = ssub.s32 %s20, 1
        %s263 = sand.u32 %s54, 1
        %s264 = scalar_lea.sflag [#allocation7], %s263
        %s265 = sand.u32 %s54, 1
        %s266 = smul.addr %s265, 128
        %s267 = scalar_lea.vmem [#allocation6], %s266
        // Predicated region
        $region37: #{tpu_custom_call.1} parent=35 // pred_check
          %p268 = pneg %p67
        $region38: #{tpu_custom_call.1} parent=35 // pred_check_branch
          %270 = sbr.rel (%p268) target = $region40
        $region39: #{tpu_custom_call.1} parent=35 // pred_region
          %271 = dma.done %s264, 2048
        $region40: #{tpu_custom_call.1} parent=35 // pred_fallthru
          _
        %s272 = sand.u32 %s25, 1
        %s273 = scalar_lea.sflag [#allocation10], %s272
        %s274 = sand.u32 %s82, 1
        %s275 = smul.addr %s274, 128
        %s276 = scalar_lea.vmem [#allocation9], %s275
        // Predicated region
        $region41: #{tpu_custom_call.1} parent=35 // pred_check
          %p277 = pneg %p95
        $region42: #{tpu_custom_call.1} parent=35 // pred_check_branch
          %279 = sbr.rel (%p277) target = $region44
        $region43: #{tpu_custom_call.1} parent=35 // pred_region
          %280 = dma.done %s273, 2048
        $region44: #{tpu_custom_call.1} parent=35 // pred_fallthru
          _
        // Predicated region
        $region45: #{tpu_custom_call.1} parent=35 // pred_check
          %p281 = pneg %p116
        $region46: #{tpu_custom_call.1} parent=35 // pred_check_branch
          %283 = sbr.rel (%p281) target = $region48
        $region47: #{tpu_custom_call.1} parent=35 // pred_region
          %284 = dma.done [#allocation10], 1024
        $region48: #{tpu_custom_call.1} parent=35 // pred_fallthru
          _
        // Predicated region
        $region49: #{tpu_custom_call.1} parent=35 // pred_check
          %p285 = pneg %p137
        $region50: #{tpu_custom_call.1} parent=35 // pred_check_branch
          %287 = sbr.rel (%p285) target = $region52
        $region51: #{tpu_custom_call.1} parent=35 // pred_region
          %288 = dma.done [#allocation13], 1024
        $region52: #{tpu_custom_call.1} parent=35 // pred_fallthru
          _
        %s289 = sand.u32 %s54, 1
        %s290 = scalar_lea.sflag [#allocation7], %s289
        %s291 = sand.u32 %s54, 1
        %s292 = smul.addr %s291, 128
        %s293 = scalar_lea.vmem [#allocation6], %s292
        %p294 = pneg %p67
        %p295 = pneg %p64
        %s296 = sand.u32 %s25, 1
        %s297 = scalar_lea.sflag [#allocation10], %s296
        %s298 = sand.u32 %s82, 1
        %s299 = smul.addr %s298, 128
        %s300 = scalar_lea.vmem [#allocation9], %s299
        %p301 = pneg %p95
        %p302 = pneg %p92
        %p303 = pneg %p116
        %p304 = pneg %p113
        %p305 = pneg %p137
        %p306 = pneg %p134
        %p307 = pneg %p165
        %p308 = pneg %p162
        %s309 = sand.u32 %s152, 1
        %s310 = scalar_lea.sflag [#allocation8], %s309
        %s311 = sand.u32 %s152, 1
        %s312 = smul.addr %s311, 256
        %s313 = scalar_lea.vmem [#allocation14], %s312
        %s314 = smul.u32 32, %s31
        %s315 = smul.u32 32, %s32
        %s316 = smul.u32 32, %s31
        %p318 = scmp.eq.s32.totalorder %s32, 0
        // Predicated region
        $region53: #{tpu_custom_call.1} parent=35 // pred_check
          %p319 = pneg %p318
        $region54: #{tpu_custom_call.1} parent=35 // pred_check_branch
          %321 = sbr.rel (%p319) target = $region56
        $region55: #{tpu_custom_call.1} parent=35 // pred_region
          %vm322 = vcmask 7168
          %323 = vst.msk [vmem:[#allocation3] sm:$0xff] %vm322, -inf
          %324 = vst.msk [vmem:[#allocation3 + $0x8] sm:$0xff] %vm322, -inf
          %325 = vst.msk [vmem:[#allocation3 + $0x10] sm:$0xff] %vm322, -inf
          %326 = vst.msk [vmem:[#allocation3 + $0x18] sm:$0xff] %vm322, -inf
          %327 = vst.msk [vmem:[#allocation3 + $0x20] sm:$0xff] %vm322, -inf
          %328 = vst.msk [vmem:[#allocation3 + $0x28] sm:$0xff] %vm322, -inf
          %329 = vst.msk [vmem:[#allocation3 + $0x30] sm:$0xff] %vm322, -inf
          %330 = vst.msk [vmem:[#allocation3 + $0x38] sm:$0xff] %vm322, -inf
          %331 = vst.msk [vmem:[#allocation3 + $0x40] sm:$0xff] %vm322, -inf
          %332 = vst.msk [vmem:[#allocation3 + $0x48] sm:$0xff] %vm322, -inf
          %333 = vst.msk [vmem:[#allocation3 + $0x50] sm:$0xff] %vm322, -inf
          %334 = vst.msk [vmem:[#allocation3 + $0x58] sm:$0xff] %vm322, -inf
          %335 = vst.msk [vmem:[#allocation3 + $0x60] sm:$0xff] %vm322, -inf
          %336 = vst.msk [vmem:[#allocation3 + $0x68] sm:$0xff] %vm322, -inf
          %337 = vst.msk [vmem:[#allocation3 + $0x70] sm:$0xff] %vm322, -inf
          %338 = vst.msk [vmem:[#allocation3 + $0x78] sm:$0xff] %vm322, -inf
          %339 = vst.msk [vmem:[#allocation3 + $0x80] sm:$0xff] %vm322, -inf
          %340 = vst.msk [vmem:[#allocation3 + $0x88] sm:$0xff] %vm322, -inf
          %341 = vst.msk [vmem:[#allocation3 + $0x90] sm:$0xff] %vm322, -inf
          %342 = vst.msk [vmem:[#allocation3 + $0x98] sm:$0xff] %vm322, -inf
          %343 = vst.msk [vmem:[#allocation3 + $0xa0] sm:$0xff] %vm322, -inf
          %344 = vst.msk [vmem:[#allocation3 + $0xa8] sm:$0xff] %vm322, -inf
          %345 = vst.msk [vmem:[#allocation3 + $0xb0] sm:$0xff] %vm322, -inf
          %346 = vst.msk [vmem:[#allocation3 + $0xb8] sm:$0xff] %vm322, -inf
          %347 = vst.msk [vmem:[#allocation3 + $0xc0] sm:$0xff] %vm322, -inf
          %348 = vst.msk [vmem:[#allocation3 + $0xc8] sm:$0xff] %vm322, -inf
          %349 = vst.msk [vmem:[#allocation3 + $0xd0] sm:$0xff] %vm322, -inf
          %350 = vst.msk [vmem:[#allocation3 + $0xd8] sm:$0xff] %vm322, -inf
          %351 = vst.msk [vmem:[#allocation3 + $0xe0] sm:$0xff] %vm322, -inf
          %352 = vst.msk [vmem:[#allocation3 + $0xe8] sm:$0xff] %vm322, -inf
          %353 = vst.msk [vmem:[#allocation3 + $0xf0] sm:$0xff] %vm322, -inf
          %354 = vst.msk [vmem:[#allocation3 + $0xf8] sm:$0xff] %vm322, -inf
          %355 = vst.msk [vmem:[#allocation4] sm:$0xff] %vm322, 0.0
          %356 = vst.msk [vmem:[#allocation4 + $0x8] sm:$0xff] %vm322, 0.0
          %357 = vst.msk [vmem:[#allocation4 + $0x10] sm:$0xff] %vm322, 0.0
          %358 = vst.msk [vmem:[#allocation4 + $0x18] sm:$0xff] %vm322, 0.0
          %359 = vst.msk [vmem:[#allocation4 + $0x20] sm:$0xff] %vm322, 0.0
          %360 = vst.msk [vmem:[#allocation4 + $0x28] sm:$0xff] %vm322, 0.0
          %361 = vst.msk [vmem:[#allocation4 + $0x30] sm:$0xff] %vm322, 0.0
          %362 = vst.msk [vmem:[#allocation4 + $0x38] sm:$0xff] %vm322, 0.0
          %363 = vst.msk [vmem:[#allocation4 + $0x40] sm:$0xff] %vm322, 0.0
          %364 = vst.msk [vmem:[#allocation4 + $0x48] sm:$0xff] %vm322, 0.0
          %365 = vst.msk [vmem:[#allocation4 + $0x50] sm:$0xff] %vm322, 0.0
          %366 = vst.msk [vmem:[#allocation4 + $0x58] sm:$0xff] %vm322, 0.0
          %367 = vst.msk [vmem:[#allocation4 + $0x60] sm:$0xff] %vm322, 0.0
          %368 = vst.msk [vmem:[#allocation4 + $0x68] sm:$0xff] %vm322, 0.0
          %369 = vst.msk [vmem:[#allocation4 + $0x70] sm:$0xff] %vm322, 0.0
          %370 = vst.msk [vmem:[#allocation4 + $0x78] sm:$0xff] %vm322, 0.0
          %371 = vst.msk [vmem:[#allocation4 + $0x80] sm:$0xff] %vm322, 0.0
          %372 = vst.msk [vmem:[#allocation4 + $0x88] sm:$0xff] %vm322, 0.0
          %373 = vst.msk [vmem:[#allocation4 + $0x90] sm:$0xff] %vm322, 0.0
          %374 = vst.msk [vmem:[#allocation4 + $0x98] sm:$0xff] %vm322, 0.0
          %375 = vst.msk [vmem:[#allocation4 + $0xa0] sm:$0xff] %vm322, 0.0
          %376 = vst.msk [vmem:[#allocation4 + $0xa8] sm:$0xff] %vm322, 0.0
          %377 = vst.msk [vmem:[#allocation4 + $0xb0] sm:$0xff] %vm322, 0.0
          %378 = vst.msk [vmem:[#allocation4 + $0xb8] sm:$0xff] %vm322, 0.0
          %379 = vst.msk [vmem:[#allocation4 + $0xc0] sm:$0xff] %vm322, 0.0
          %380 = vst.msk [vmem:[#allocation4 + $0xc8] sm:$0xff] %vm322, 0.0
          %381 = vst.msk [vmem:[#allocation4 + $0xd0] sm:$0xff] %vm322, 0.0
          %382 = vst.msk [vmem:[#allocation4 + $0xd8] sm:$0xff] %vm322, 0.0
          %383 = vst.msk [vmem:[#allocation4 + $0xe0] sm:$0xff] %vm322, 0.0
          %384 = vst.msk [vmem:[#allocation4 + $0xe8] sm:$0xff] %vm322, 0.0
          %385 = vst.msk [vmem:[#allocation4 + $0xf0] sm:$0xff] %vm322, 0.0
          %386 = vst.msk [vmem:[#allocation4 + $0xf8] sm:$0xff] %vm322, 0.0
          %387 = vst [vmem:[#allocation5] sm:$0xff] 0.0
          %388 = vst [vmem:[#allocation5 + $0x8] sm:$0xff] 0.0
          %389 = vst [vmem:[#allocation5 + $0x10] sm:$0xff] 0.0
          %390 = vst [vmem:[#allocation5 + $0x18] sm:$0xff] 0.0
          %391 = vst [vmem:[#allocation5 + $0x20] sm:$0xff] 0.0
          %392 = vst [vmem:[#allocation5 + $0x28] sm:$0xff] 0.0
          %393 = vst [vmem:[#allocation5 + $0x30] sm:$0xff] 0.0
          %394 = vst [vmem:[#allocation5 + $0x38] sm:$0xff] 0.0
          %395 = vst [vmem:[#allocation5 + $0x40] sm:$0xff] 0.0
          %396 = vst [vmem:[#allocation5 + $0x48] sm:$0xff] 0.0
          %397 = vst [vmem:[#allocation5 + $0x50] sm:$0xff] 0.0
          %398 = vst [vmem:[#allocation5 + $0x58] sm:$0xff] 0.0
          %399 = vst [vmem:[#allocation5 + $0x60] sm:$0xff] 0.0
          %400 = vst [vmem:[#allocation5 + $0x68] sm:$0xff] 0.0
          %401 = vst [vmem:[#allocation5 + $0x70] sm:$0xff] 0.0
          %402 = vst [vmem:[#allocation5 + $0x78] sm:$0xff] 0.0
          %403 = vst [vmem:[#allocation5 + $0x80] sm:$0xff] 0.0
          %404 = vst [vmem:[#allocation5 + $0x88] sm:$0xff] 0.0
          %405 = vst [vmem:[#allocation5 + $0x90] sm:$0xff] 0.0
          %406 = vst [vmem:[#allocation5 + $0x98] sm:$0xff] 0.0
          %407 = vst [vmem:[#allocation5 + $0xa0] sm:$0xff] 0.0
          %408 = vst [vmem:[#allocation5 + $0xa8] sm:$0xff] 0.0
          %409 = vst [vmem:[#allocation5 + $0xb0] sm:$0xff] 0.0
          %410 = vst [vmem:[#allocation5 + $0xb8] sm:$0xff] 0.0
          %411 = vst [vmem:[#allocation5 + $0xc0] sm:$0xff] 0.0
          %412 = vst [vmem:[#allocation5 + $0xc8] sm:$0xff] 0.0
          %413 = vst [vmem:[#allocation5 + $0xd0] sm:$0xff] 0.0
          %414 = vst [vmem:[#allocation5 + $0xd8] sm:$0xff] 0.0
          %415 = vst [vmem:[#allocation5 + $0xe0] sm:$0xff] 0.0
          %416 = vst [vmem:[#allocation5 + $0xe8] sm:$0xff] 0.0
          %417 = vst [vmem:[#allocation5 + $0xf0] sm:$0xff] 0.0
          %418 = vst [vmem:[#allocation5 + $0xf8] sm:$0xff] 0.0
          %v419 = vld [vmem:[%s267] sm:$0xf]
          %v420 = vld [vmem:[%s267 + $0x4] sm:$0xf]
          %v421 = vld [vmem:[%s267 + $0x8] sm:$0xf]
          %v422 = vld [vmem:[%s267 + $0xc] sm:$0xf]
          %v423 = vld [vmem:[%s267 + $0x10] sm:$0xf]
          %v424 = vld [vmem:[%s267 + $0x14] sm:$0xf]
          %v425 = vld [vmem:[%s267 + $0x18] sm:$0xf]
          %v426 = vld [vmem:[%s267 + $0x1c] sm:$0xf]
          %v427 = vld [vmem:[%s267 + $0x20] sm:$0xf]
          %v428 = vld [vmem:[%s267 + $0x24] sm:$0xf]
          %v429 = vld [vmem:[%s267 + $0x28] sm:$0xf]
          %v430 = vld [vmem:[%s267 + $0x2c] sm:$0xf]
          %v431 = vld [vmem:[%s267 + $0x30] sm:$0xf]
          %v432 = vld [vmem:[%s267 + $0x34] sm:$0xf]
          %v433 = vld [vmem:[%s267 + $0x38] sm:$0xf]
          %v434 = vld [vmem:[%s267 + $0x3c] sm:$0xf]
          %v435 = vld [vmem:[%s267 + $0x40] sm:$0xf]
          %v436 = vld [vmem:[%s267 + $0x44] sm:$0xf]
          %v437 = vld [vmem:[%s267 + $0x48] sm:$0xf]
          %v438 = vld [vmem:[%s267 + $0x4c] sm:$0xf]
          %v439 = vld [vmem:[%s267 + $0x50] sm:$0xf]
          %v440 = vld [vmem:[%s267 + $0x54] sm:$0xf]
          %v441 = vld [vmem:[%s267 + $0x58] sm:$0xf]
          %v442 = vld [vmem:[%s267 + $0x5c] sm:$0xf]
          %v443 = vld [vmem:[%s267 + $0x60] sm:$0xf]
          %v444 = vld [vmem:[%s267 + $0x64] sm:$0xf]
          %v445 = vld [vmem:[%s267 + $0x68] sm:$0xf]
          %v446 = vld [vmem:[%s267 + $0x6c] sm:$0xf]
          %v447 = vld [vmem:[%s267 + $0x70] sm:$0xf]
          %v448 = vld [vmem:[%s267 + $0x74] sm:$0xf]
          %v449 = vld [vmem:[%s267 + $0x78] sm:$0xf]
          %v450 = vld [vmem:[%s267 + $0x7c] sm:$0xf]
          %v451 = vld [vmem:[#allocation11] sm:$0xf]
          %v452 = vld [vmem:[#allocation11 + $0x4] sm:$0xf]
          %v453 = vld [vmem:[#allocation11 + $0x8] sm:$0xf]
          %v454 = vld [vmem:[#allocation11 + $0xc] sm:$0xf]
          %v455 = vld [vmem:[#allocation11 + $0x10] sm:$0xf]
          %v456 = vld [vmem:[#allocation11 + $0x14] sm:$0xf]
          %v457 = vld [vmem:[#allocation11 + $0x18] sm:$0xf]
          %v458 = vld [vmem:[#allocation11 + $0x1c] sm:$0xf]
          %v459 = vld [vmem:[#allocation11 + $0x20] sm:$0xf]
          %v460 = vld [vmem:[#allocation11 + $0x24] sm:$0xf]
          %v461 = vld [vmem:[#allocation11 + $0x28] sm:$0xf]
          %v462 = vld [vmem:[#allocation11 + $0x2c] sm:$0xf]
          %v463 = vld [vmem:[#allocation11 + $0x30] sm:$0xf]
          %v464 = vld [vmem:[#allocation11 + $0x34] sm:$0xf]
          %v465 = vld [vmem:[#allocation11 + $0x38] sm:$0xf]
          %v466 = vld [vmem:[#allocation11 + $0x3c] sm:$0xf]
          %v499 = vunpack.c.l.b16 %v419
          %v500 = vunpack.c.l.b16 %v420
          %v501 = vunpack.c.l.b16 %v421
          %v502 = vunpack.c.l.b16 %v422
          %v503 = vunpack.c.l.b16 %v423
          %v504 = vunpack.c.l.b16 %v424
          %v505 = vunpack.c.l.b16 %v425
          %v506 = vunpack.c.l.b16 %v426
          %v507 = vunpack.c.l.b16 %v427
          %v508 = vunpack.c.l.b16 %v428
          %v509 = vunpack.c.l.b16 %v429
          %v510 = vunpack.c.l.b16 %v430
          %v511 = vunpack.c.l.b16 %v431
          %v512 = vunpack.c.l.b16 %v432
          %v513 = vunpack.c.l.b16 %v433
          %v514 = vunpack.c.l.b16 %v434
          %v515 = vunpack.c.l.b16 %v435
          %v516 = vunpack.c.l.b16 %v436
          %v517 = vunpack.c.l.b16 %v437
          %v518 = vunpack.c.l.b16 %v438
          %v519 = vunpack.c.l.b16 %v439
          %v520 = vunpack.c.l.b16 %v440
          %v521 = vunpack.c.l.b16 %v441
          %v522 = vunpack.c.l.b16 %v442
          %v523 = vunpack.c.l.b16 %v443
          %v524 = vunpack.c.l.b16 %v444
          %v525 = vunpack.c.l.b16 %v445
          %v526 = vunpack.c.l.b16 %v446
          %v527 = vunpack.c.l.b16 %v447
          %v528 = vunpack.c.l.b16 %v448
          %v529 = vunpack.c.l.b16 %v449
          %v530 = vunpack.c.l.b16 %v450
          %v531 = vpack.c.b16 %v500, %v499
          %v532 = vpack.c.b16 %v502, %v501
          %v533 = vpack.c.b16 %v504, %v503
          %v534 = vpack.c.b16 %v506, %v505
          %v535 = vpack.c.b16 %v508, %v507
          %v536 = vpack.c.b16 %v510, %v509
          %v537 = vpack.c.b16 %v512, %v511
          %v538 = vpack.c.b16 %v514, %v513
          %v539 = vpack.c.b16 %v516, %v515
          %v540 = vpack.c.b16 %v518, %v517
          %v541 = vpack.c.b16 %v520, %v519
          %v542 = vpack.c.b16 %v522, %v521
          %v543 = vpack.c.b16 %v524, %v523
          %v544 = vpack.c.b16 %v526, %v525
          %v545 = vpack.c.b16 %v528, %v527
          %v546 = vpack.c.b16 %v530, %v529
          %v579 = vunpack.c.l.b16 %v451
          %v580 = vunpack.c.l.b16 %v452
          %v581 = vunpack.c.l.b16 %v453
          %v582 = vunpack.c.l.b16 %v454
          %v583 = vunpack.c.l.b16 %v455
          %v584 = vunpack.c.l.b16 %v456
          %v585 = vunpack.c.l.b16 %v457
          %v586 = vunpack.c.l.b16 %v458
          %v587 = vunpack.c.l.b16 %v459
          %v588 = vunpack.c.l.b16 %v460
          %v589 = vunpack.c.l.b16 %v461
          %v590 = vunpack.c.l.b16 %v462
          %v591 = vunpack.c.l.b16 %v463
          %v592 = vunpack.c.l.b16 %v464
          %v593 = vunpack.c.l.b16 %v465
          %v594 = vunpack.c.l.b16 %v466
          %v595 = vpack.c.b16 %v580, %v579
          %v596 = vpack.c.b16 %v582, %v581
          %v597 = vpack.c.b16 %v584, %v583
          %v598 = vpack.c.b16 %v586, %v585
          %v599 = vpack.c.b16 %v588, %v587
          %v600 = vpack.c.b16 %v590, %v589
          %v601 = vpack.c.b16 %v592, %v591
          %v602 = vpack.c.b16 %v594, %v593
          %611 = vmatprep.subr.bf16.mxu0 0
          %612 = vmatpush1.bf16.msra.mxu0 %v595
          %613 = vmatprep.subr.bf16.mxu0 0
          %614 = vmatpush1.bf16.msra.mxu0 %v596
          %615 = vmatprep.subr.bf16.mxu0 0
          %616 = vmatpush1.bf16.msra.mxu0 %v597
          %617 = vmatprep.subr.bf16.mxu0 0
          %618 = vmatpush1.bf16.msra.mxu0 %v598
          %619 = vmatprep.subr.bf16.mxu0 0
          %620 = vmatpush1.bf16.msra.mxu0 %v599
          %621 = vmatprep.subr.bf16.mxu0 0
          %622 = vmatpush1.bf16.msra.mxu0 %v600
          %623 = vmatprep.subr.bf16.mxu0 0
          %624 = vmatpush1.bf16.msra.mxu0 %v601
          %625 = vmatprep.subr.bf16.mxu0 0
          %626 = vmatpush1.bf16.msra.mxu0 %v602
          %627 = vmatprep.subr.bf16.mxu0 0
          %628 = vmatpush1.bf16.msra.mxu0 0
          %629 = vmatprep.subr.bf16.mxu0 0
          %630 = vmatpush1.bf16.msra.mxu0 0
          %631 = vmatprep.subr.bf16.mxu0 0
          %632 = vmatpush1.bf16.msra.mxu0 0
          %633 = vmatprep.subr.bf16.mxu0 0
          %634 = vmatpush1.bf16.msra.mxu0 0
          %635 = vmatprep.subr.bf16.mxu0 0
          %636 = vmatpush1.bf16.msra.mxu0 0
          %637 = vmatprep.subr.bf16.mxu0 0
          %638 = vmatpush1.bf16.msra.mxu0 0
          %639 = vmatprep.subr.bf16.mxu0 0
          %640 = vmatpush1.bf16.msra.mxu0 0
          %641 = vmatprep.subr.bf16.mxu0 0
          %642 = vmatpush1.bf16.msra.mxu0 0
          %643 = vmatprep.mubr.bf16.mxu0 0
          %644 = vmatmul.mubr.bf16.gmra.mrb[0].mxu0 %v531
          %v645 = vpop.f32.mrb[0].mxu0
          %v646 = vadd.f32 0.0, %v645
          %v647 = vpop.f32.mrb[0].mxu0
          %v648 = vpop.f32.mrb[0].mxu0
          %v649 = vadd.f32 0.0, %v648
          %v650 = vpop.f32.mrb[0].mxu0
          %651 = vmatprep.mubr.bf16.mxu0 0
          %652 = vmatmul.mubr.bf16.gmra.mrb[0].mxu0 %v532
          %v653 = vpop.f32.mrb[0].mxu0
          %v654 = vadd.f32 0.0, %v653
          %v655 = vpop.f32.mrb[0].mxu0
          %v656 = vpop.f32.mrb[0].mxu0
          %v657 = vadd.f32 0.0, %v656
          %v658 = vpop.f32.mrb[0].mxu0
          %659 = vmatprep.mubr.bf16.mxu0 0
          %660 = vmatmul.mubr.bf16.gmra.mrb[0].mxu0 %v533
          %v661 = vpop.f32.mrb[0].mxu0
          %v662 = vadd.f32 0.0, %v661
          %v663 = vpop.f32.mrb[0].mxu0
          %v664 = vpop.f32.mrb[0].mxu0
          %v665 = vadd.f32 0.0, %v664
          %v666 = vpop.f32.mrb[0].mxu0
          %667 = vmatprep.mubr.bf16.mxu0 0
          %668 = vmatmul.mubr.bf16.gmra.mrb[0].mxu0 %v534
          %v669 = vpop.f32.mrb[0].mxu0
          %v670 = vadd.f32 0.0, %v669
          %v671 = vpop.f32.mrb[0].mxu0
          %v672 = vpop.f32.mrb[0].mxu0
          %v673 = vadd.f32 0.0, %v672
          %v674 = vpop.f32.mrb[0].mxu0
          %675 = vmatprep.mubr.bf16.mxu0 0
          %676 = vmatmul.mubr.bf16.gmra.mrb[0].mxu0 %v535
          %v677 = vpop.f32.mrb[0].mxu0
          %v678 = vadd.f32 0.0, %v677
          %v679 = vpop.f32.mrb[0].mxu0
          %v680 = vpop.f32.mrb[0].mxu0
          %v681 = vadd.f32 0.0, %v680
          %v682 = vpop.f32.mrb[0].mxu0
          %683 = vmatprep.mubr.bf16.mxu0 0
          %684 = vmatmul.mubr.bf16.gmra.mrb[0].mxu0 %v536
          %v685 = vpop.f32.mrb[0].mxu0
          %v686 = vadd.f32 0.0, %v685
          %v687 = vpop.f32.mrb[0].mxu0
          %v688 = vpop.f32.mrb[0].mxu0
          %v689 = vadd.f32 0.0, %v688
          %v690 = vpop.f32.mrb[0].mxu0
          %691 = vmatprep.mubr.bf16.mxu0 0
          %692 = vmatmul.mubr.bf16.gmra.mrb[0].mxu0 %v537
          %v693 = vpop.f32.mrb[0].mxu0
          %v694 = vadd.f32 0.0, %v693
          %v695 = vpop.f32.mrb[0].mxu0
          %v696 = vpop.f32.mrb[0].mxu0
          %v697 = vadd.f32 0.0, %v696
          %v698 = vpop.f32.mrb[0].mxu0
          %699 = vmatprep.mubr.bf16.mxu0 0
          %700 = vmatmul.mubr.bf16.gmra.mrb[0].mxu0 %v538
          %v701 = vpop.f32.mrb[0].mxu0
          %v702 = vadd.f32 0.0, %v701
          %v703 = vpop.f32.mrb[0].mxu0
          %v704 = vpop.f32.mrb[0].mxu0
          %v705 = vadd.f32 0.0, %v704
          %v706 = vpop.f32.mrb[0].mxu0
          %707 = vmatprep.mubr.bf16.mxu0 0
          %708 = vmatmul.mubr.bf16.gmra.mrb[0].mxu0 %v539
          %v709 = vpop.f32.mrb[0].mxu0
          %v710 = vadd.f32 0.0, %v709
          %v711 = vpop.f32.mrb[0].mxu0
          %v712 = vpop.f32.mrb[0].mxu0
          %v713 = vadd.f32 0.0, %v712
          %v714 = vpop.f32.mrb[0].mxu0
          %715 = vmatprep.mubr.bf16.mxu0 0
          %716 = vmatmul.mubr.bf16.gmra.mrb[0].mxu0 %v540
          %v717 = vpop.f32.mrb[0].mxu0
          %v718 = vadd.f32 0.0, %v717
          %v719 = vpop.f32.mrb[0].mxu0
          %v720 = vpop.f32.mrb[0].mxu0
          %v721 = vadd.f32 0.0, %v720
          %v722 = vpop.f32.mrb[0].mxu0
          %723 = vmatprep.mubr.bf16.mxu0 0
          %724 = vmatmul.mubr.bf16.gmra.mrb[0].mxu0 %v541
          %v725 = vpop.f32.mrb[0].mxu0
          %v726 = vadd.f32 0.0, %v725
          %v727 = vpop.f32.mrb[0].mxu0
          %v728 = vpop.f32.mrb[0].mxu0
          %v729 = vadd.f32 0.0, %v728
          %v730 = vpop.f32.mrb[0].mxu0
          %731 = vmatprep.mubr.bf16.mxu0 0
          %732 = vmatmul.mubr.bf16.gmra.mrb[0].mxu0 %v542
          %v733 = vpop.f32.mrb[0].mxu0
          %v734 = vadd.f32 0.0, %v733
          %v735 = vpop.f32.mrb[0].mxu0
          %v736 = vpop.f32.mrb[0].mxu0
          %v737 = vadd.f32 0.0, %v736
          %v738 = vpop.f32.mrb[0].mxu0
          %739 = vmatprep.mubr.bf16.mxu0 0
          %740 = vmatmul.mubr.bf16.gmra.mrb[0].mxu0 %v543
          %v741 = vpop.f32.mrb[0].mxu0
          %v742 = vadd.f32 0.0, %v741
          %v743 = vpop.f32.mrb[0].mxu0
          %v744 = vpop.f32.mrb[0].mxu0
          %v745 = vadd.f32 0.0, %v744
          %v746 = vpop.f32.mrb[0].mxu0
          %747 = vmatprep.mubr.bf16.mxu0 0
          %748 = vmatmul.mubr.bf16.gmra.mrb[0].mxu0 %v544
          %v749 = vpop.f32.mrb[0].mxu0
          %v750 = vadd.f32 0.0, %v749
          %v751 = vpop.f32.mrb[0].mxu0
          %v752 = vpop.f32.mrb[0].mxu0
          %v753 = vadd.f32 0.0, %v752
          %v754 = vpop.f32.mrb[0].mxu0
          %755 = vmatprep.mubr.bf16.mxu0 0
          %756 = vmatmul.mubr.bf16.gmra.mrb[0].mxu0 %v545
          %v757 = vpop.f32.mrb[0].mxu0
          %v758 = vadd.f32 0.0, %v757
          %v759 = vpop.f32.mrb[0].mxu0
          %v760 = vpop.f32.mrb[0].mxu0
          %v761 = vadd.f32 0.0, %v760
          %v762 = vpop.f32.mrb[0].mxu0
          %763 = vmatprep.mubr.bf16.mxu0 0
          %764 = vmatmul.mubr.bf16.gmra.mrb[0].mxu0 %v546
          %v765 = vpop.f32.mrb[0].mxu0
          %v766 = vadd.f32 0.0, %v765
          %v767 = vpop.f32.mrb[0].mxu0
          %v768 = vpop.f32.mrb[0].mxu0
          %v769 = vadd.f32 0.0, %v768
          %v770 = vpop.f32.mrb[0].mxu0
          %771 = vdwg.mxu0
          %v772 = vpack.c.bf16 %v649, %v646
          %v773 = vpack.c.bf16 %v657, %v654
          %v774 = vpack.c.bf16 %v665, %v662
          %v775 = vpack.c.bf16 %v673, %v670
          %v776 = vpack.c.bf16 %v681, %v678
          %v777 = vpack.c.bf16 %v689, %v686
          %v778 = vpack.c.bf16 %v697, %v694
          %v779 = vpack.c.bf16 %v705, %v702
          %v780 = vpack.c.bf16 %v713, %v710
          %v781 = vpack.c.bf16 %v721, %v718
          %v782 = vpack.c.bf16 %v729, %v726
          %v783 = vpack.c.bf16 %v737, %v734
          %v784 = vpack.c.bf16 %v745, %v742
          %v785 = vpack.c.bf16 %v753, %v750
          %v786 = vpack.c.bf16 %v761, %v758
          %v787 = vpack.c.bf16 %v769, %v766
          %788 = vst [vmem:[#allocation2] sm:$0xff] %v772
          %789 = vst [vmem:[#allocation2 + $0x8] sm:$0xff] %v773
          %790 = vst [vmem:[#allocation2 + $0x10] sm:$0xff] %v774
          %791 = vst [vmem:[#allocation2 + $0x18] sm:$0xff] %v775
          %792 = vst [vmem:[#allocation2 + $0x20] sm:$0xff] %v776
          %793 = vst [vmem:[#allocation2 + $0x28] sm:$0xff] %v777
          %794 = vst [vmem:[#allocation2 + $0x30] sm:$0xff] %v778
          %795 = vst [vmem:[#allocation2 + $0x38] sm:$0xff] %v779
          %796 = vst [vmem:[#allocation2 + $0x40] sm:$0xff] %v780
          %797 = vst [vmem:[#allocation2 + $0x48] sm:$0xff] %v781
          %798 = vst [vmem:[#allocation2 + $0x50] sm:$0xff] %v782
          %799 = vst [vmem:[#allocation2 + $0x58] sm:$0xff] %v783
          %800 = vst [vmem:[#allocation2 + $0x60] sm:$0xff] %v784
          %801 = vst [vmem:[#allocation2 + $0x68] sm:$0xff] %v785
          %802 = vst [vmem:[#allocation2 + $0x70] sm:$0xff] %v786
          %803 = vst [vmem:[#allocation2 + $0x78] sm:$0xff] %v787
        $region56: #{tpu_custom_call.1} parent=35 // pred_fallthru
          _
        %v804 = vld [vmem:[%s276] sm:$0xf]
        %v805 = vld [vmem:[%s276 + $0x4] sm:$0xf]
        %v806 = vld [vmem:[%s276 + $0x8] sm:$0xf]
        %v807 = vld [vmem:[%s276 + $0xc] sm:$0xf]
        %v808 = vld [vmem:[%s276 + $0x10] sm:$0xf]
        %v809 = vld [vmem:[%s276 + $0x14] sm:$0xf]
        %v810 = vld [vmem:[%s276 + $0x18] sm:$0xf]
        %v811 = vld [vmem:[%s276 + $0x1c] sm:$0xf]
        %v812 = vld [vmem:[%s276 + $0x20] sm:$0xf]
        %v813 = vld [vmem:[%s276 + $0x24] sm:$0xf]
        %v814 = vld [vmem:[%s276 + $0x28] sm:$0xf]
        %v815 = vld [vmem:[%s276 + $0x2c] sm:$0xf]
        %v816 = vld [vmem:[%s276 + $0x30] sm:$0xf]
        %v817 = vld [vmem:[%s276 + $0x34] sm:$0xf]
        %v818 = vld [vmem:[%s276 + $0x38] sm:$0xf]
        %v819 = vld [vmem:[%s276 + $0x3c] sm:$0xf]
        %v820 = vld [vmem:[%s276 + $0x40] sm:$0xf]
        %v821 = vld [vmem:[%s276 + $0x44] sm:$0xf]
        %v822 = vld [vmem:[%s276 + $0x48] sm:$0xf]
        %v823 = vld [vmem:[%s276 + $0x4c] sm:$0xf]
        %v824 = vld [vmem:[%s276 + $0x50] sm:$0xf]
        %v825 = vld [vmem:[%s276 + $0x54] sm:$0xf]
        %v826 = vld [vmem:[%s276 + $0x58] sm:$0xf]
        %v827 = vld [vmem:[%s276 + $0x5c] sm:$0xf]
        %v828 = vld [vmem:[%s276 + $0x60] sm:$0xf]
        %v829 = vld [vmem:[%s276 + $0x64] sm:$0xf]
        %v830 = vld [vmem:[%s276 + $0x68] sm:$0xf]
        %v831 = vld [vmem:[%s276 + $0x6c] sm:$0xf]
        %v832 = vld [vmem:[%s276 + $0x70] sm:$0xf]
        %v833 = vld [vmem:[%s276 + $0x74] sm:$0xf]
        %v834 = vld [vmem:[%s276 + $0x78] sm:$0xf]
        %v835 = vld [vmem:[%s276 + $0x7c] sm:$0xf]
        %v836 = vld [vmem:[#allocation2] sm:$0xff]
        %v837 = vld [vmem:[#allocation2 + $0x8] sm:$0xff]
        %v838 = vld [vmem:[#allocation2 + $0x10] sm:$0xff]
        %v839 = vld [vmem:[#allocation2 + $0x18] sm:$0xff]
        %v840 = vld [vmem:[#allocation2 + $0x20] sm:$0xff]
        %v841 = vld [vmem:[#allocation2 + $0x28] sm:$0xff]
        %v842 = vld [vmem:[#allocation2 + $0x30] sm:$0xff]
        %v843 = vld [vmem:[#allocation2 + $0x38] sm:$0xff]
        %v844 = vld [vmem:[#allocation2 + $0x40] sm:$0xff]
        %v845 = vld [vmem:[#allocation2 + $0x48] sm:$0xff]
        %v846 = vld [vmem:[#allocation2 + $0x50] sm:$0xff]
        %v847 = vld [vmem:[#allocation2 + $0x58] sm:$0xff]
        %v848 = vld [vmem:[#allocation2 + $0x60] sm:$0xff]
        %v849 = vld [vmem:[#allocation2 + $0x68] sm:$0xff]
        %v850 = vld [vmem:[#allocation2 + $0x70] sm:$0xff]
        %v851 = vld [vmem:[#allocation2 + $0x78] sm:$0xff]
        %v884 = vunpack.c.l.b16 %v804
        %v885 = vunpack.c.l.b16 %v805
        %v886 = vunpack.c.l.b16 %v806
        %v887 = vunpack.c.l.b16 %v807
        %v888 = vunpack.c.l.b16 %v808
        %v889 = vunpack.c.l.b16 %v809
        %v890 = vunpack.c.l.b16 %v810
        %v891 = vunpack.c.l.b16 %v811
        %v892 = vunpack.c.l.b16 %v812
        %v893 = vunpack.c.l.b16 %v813
        %v894 = vunpack.c.l.b16 %v814
        %v895 = vunpack.c.l.b16 %v815
        %v896 = vunpack.c.l.b16 %v816
        %v897 = vunpack.c.l.b16 %v817
        %v898 = vunpack.c.l.b16 %v818
        %v899 = vunpack.c.l.b16 %v819
        %v900 = vunpack.c.l.b16 %v820
        %v901 = vunpack.c.l.b16 %v821
        %v902 = vunpack.c.l.b16 %v822
        %v903 = vunpack.c.l.b16 %v823
        %v904 = vunpack.c.l.b16 %v824
        %v905 = vunpack.c.l.b16 %v825
        %v906 = vunpack.c.l.b16 %v826
        %v907 = vunpack.c.l.b16 %v827
        %v908 = vunpack.c.l.b16 %v828
        %v909 = vunpack.c.l.b16 %v829
        %v910 = vunpack.c.l.b16 %v830
        %v911 = vunpack.c.l.b16 %v831
        %v912 = vunpack.c.l.b16 %v832
        %v913 = vunpack.c.l.b16 %v833
        %v914 = vunpack.c.l.b16 %v834
        %v915 = vunpack.c.l.b16 %v835
        %v916 = vpack.c.b16 %v885, %v884
        %v917 = vpack.c.b16 %v887, %v886
        %v918 = vpack.c.b16 %v889, %v888
        %v919 = vpack.c.b16 %v891, %v890
        %v920 = vpack.c.b16 %v893, %v892
        %v921 = vpack.c.b16 %v895, %v894
        %v922 = vpack.c.b16 %v897, %v896
        %v923 = vpack.c.b16 %v899, %v898
        %v924 = vpack.c.b16 %v901, %v900
        %v925 = vpack.c.b16 %v903, %v902
        %v926 = vpack.c.b16 %v905, %v904
        %v927 = vpack.c.b16 %v907, %v906
        %v928 = vpack.c.b16 %v909, %v908
        %v929 = vpack.c.b16 %v911, %v910
        %v930 = vpack.c.b16 %v913, %v912
        %v931 = vpack.c.b16 %v915, %v914
        %948 = vmatprep.subr.bf16.mxu0 0
        %949 = vmatpush1.bf16.xpose.msra.mxu0 %v916
        %950 = vmatprep.subr.bf16.mxu0 0
        %951 = vmatpush1.bf16.xpose.msra.mxu0 %v917
        %952 = vmatprep.subr.bf16.mxu0 0
        %953 = vmatpush1.bf16.xpose.msra.mxu0 %v918
        %954 = vmatprep.subr.bf16.mxu0 0
        %955 = vmatpush1.bf16.xpose.msra.mxu0 %v919
        %956 = vmatprep.subr.bf16.mxu0 0
        %957 = vmatpush1.bf16.xpose.msra.mxu0 %v920
        %958 = vmatprep.subr.bf16.mxu0 0
        %959 = vmatpush1.bf16.xpose.msra.mxu0 %v921
        %960 = vmatprep.subr.bf16.mxu0 0
        %961 = vmatpush1.bf16.xpose.msra.mxu0 %v922
        %962 = vmatprep.subr.bf16.mxu0 0
        %963 = vmatpush1.bf16.xpose.msra.mxu0 %v923
        %964 = vmatprep.subr.bf16.mxu0 0
        %965 = vmatpush1.bf16.xpose.msra.mxu0 %v924
        %966 = vmatprep.subr.bf16.mxu0 0
        %967 = vmatpush1.bf16.xpose.msra.mxu0 %v925
        %968 = vmatprep.subr.bf16.mxu0 0
        %969 = vmatpush1.bf16.xpose.msra.mxu0 %v926
        %970 = vmatprep.subr.bf16.mxu0 0
        %971 = vmatpush1.bf16.xpose.msra.mxu0 %v927
        %972 = vmatprep.subr.bf16.mxu0 0
        %973 = vmatpush1.bf16.xpose.msra.mxu0 %v928
        %974 = vmatprep.subr.bf16.mxu0 0
        %975 = vmatpush1.bf16.xpose.msra.mxu0 %v929
        %976 = vmatprep.subr.bf16.mxu0 0
        %977 = vmatpush1.bf16.xpose.msra.mxu0 %v930
        %978 = vmatprep.subr.bf16.mxu0 0
        %979 = vmatpush1.bf16.xpose.msra.mxu0 %v931
        %980 = vmatprep.mubr.bf16.mxu0 0
        %981 = vmatmul.mubr.bf16.gmra.mrb[0].mxu0 %v836
        %v982 = vpop.f32.mrb[0].mxu0
        %v983 = vadd.f32 0.0, %v982
        %v984 = vpop.f32.mrb[0].mxu0
        %v985 = vadd.f32 0.0, %v984
        %v986 = vpop.f32.mrb[0].mxu0
        %v987 = vadd.f32 0.0, %v986
        %v988 = vpop.f32.mrb[0].mxu0
        %v989 = vadd.f32 0.0, %v988
        %990 = vmatprep.mubr.bf16.mxu0 0
        %991 = vmatmul.mubr.bf16.gmra.mrb[0].mxu0 %v837
        %v992 = vpop.f32.mrb[0].mxu0
        %v993 = vadd.f32 0.0, %v992
        %v994 = vpop.f32.mrb[0].mxu0
        %v995 = vadd.f32 0.0, %v994
        %v996 = vpop.f32.mrb[0].mxu0
        %v997 = vadd.f32 0.0, %v996
        %v998 = vpop.f32.mrb[0].mxu0
        %v999 = vadd.f32 0.0, %v998
        %1000 = vmatprep.mubr.bf16.mxu0 0
        %1001 = vmatmul.mubr.bf16.gmra.mrb[0].mxu0 %v838
        %v1002 = vpop.f32.mrb[0].mxu0
        %v1003 = vadd.f32 0.0, %v1002
        %v1004 = vpop.f32.mrb[0].mxu0
        %v1005 = vadd.f32 0.0, %v1004
        %v1006 = vpop.f32.mrb[0].mxu0
        %v1007 = vadd.f32 0.0, %v1006
        %v1008 = vpop.f32.mrb[0].mxu0
        %v1009 = vadd.f32 0.0, %v1008
        %1010 = vmatprep.mubr.bf16.mxu0 0
        %1011 = vmatmul.mubr.bf16.gmra.mrb[0].mxu0 %v839
        %v1012 = vpop.f32.mrb[0].mxu0
        %v1013 = vadd.f32 0.0, %v1012
        %v1014 = vpop.f32.mrb[0].mxu0
        %v1015 = vadd.f32 0.0, %v1014
        %v1016 = vpop.f32.mrb[0].mxu0
        %v1017 = vadd.f32 0.0, %v1016
        %v1018 = vpop.f32.mrb[0].mxu0
        %v1019 = vadd.f32 0.0, %v1018
        %1020 = vmatprep.mubr.bf16.mxu0 0
        %1021 = vmatmul.mubr.bf16.gmra.mrb[0].mxu0 %v840
        %v1022 = vpop.f32.mrb[0].mxu0
        %v1023 = vadd.f32 0.0, %v1022
        %v1024 = vpop.f32.mrb[0].mxu0
        %v1025 = vadd.f32 0.0, %v1024
        %v1026 = vpop.f32.mrb[0].mxu0
        %v1027 = vadd.f32 0.0, %v1026
        %v1028 = vpop.f32.mrb[0].mxu0
        %v1029 = vadd.f32 0.0, %v1028
        %1030 = vmatprep.mubr.bf16.mxu0 0
        %1031 = vmatmul.mubr.bf16.gmra.mrb[0].mxu0 %v841
        %v1032 = vpop.f32.mrb[0].mxu0
        %v1033 = vadd.f32 0.0, %v1032
        %v1034 = vpop.f32.mrb[0].mxu0
        %v1035 = vadd.f32 0.0, %v1034
        %v1036 = vpop.f32.mrb[0].mxu0
        %v1037 = vadd.f32 0.0, %v1036
        %v1038 = vpop.f32.mrb[0].mxu0
        %v1039 = vadd.f32 0.0, %v1038
        %1040 = vmatprep.mubr.bf16.mxu0 0
        %1041 = vmatmul.mubr.bf16.gmra.mrb[0].mxu0 %v842
        %v1042 = vpop.f32.mrb[0].mxu0
        %v1043 = vadd.f32 0.0, %v1042
        %v1044 = vpop.f32.mrb[0].mxu0
        %v1045 = vadd.f32 0.0, %v1044
        %v1046 = vpop.f32.mrb[0].mxu0
        %v1047 = vadd.f32 0.0, %v1046
        %v1048 = vpop.f32.mrb[0].mxu0
        %v1049 = vadd.f32 0.0, %v1048
        %1050 = vmatprep.mubr.bf16.mxu0 0
        %1051 = vmatmul.mubr.bf16.gmra.mrb[0].mxu0 %v843
        %v1052 = vpop.f32.mrb[0].mxu0
        %v1053 = vadd.f32 0.0, %v1052
        %v1054 = vpop.f32.mrb[0].mxu0
        %v1055 = vadd.f32 0.0, %v1054
        %v1056 = vpop.f32.mrb[0].mxu0
        %v1057 = vadd.f32 0.0, %v1056
        %v1058 = vpop.f32.mrb[0].mxu0
        %v1059 = vadd.f32 0.0, %v1058
        %1060 = vmatprep.mubr.bf16.mxu0 0
        %1061 = vmatmul.mubr.bf16.gmra.mrb[0].mxu0 %v844
        %v1062 = vpop.f32.mrb[0].mxu0
        %v1063 = vadd.f32 0.0, %v1062
        %v1064 = vpop.f32.mrb[0].mxu0
        %v1065 = vadd.f32 0.0, %v1064
        %v1066 = vpop.f32.mrb[0].mxu0
        %v1067 = vadd.f32 0.0, %v1066
        %v1068 = vpop.f32.mrb[0].mxu0
        %v1069 = vadd.f32 0.0, %v1068
        %1070 = vmatprep.mubr.bf16.mxu0 0
        %1071 = vmatmul.mubr.bf16.gmra.mrb[0].mxu0 %v845
        %v1072 = vpop.f32.mrb[0].mxu0
        %v1073 = vadd.f32 0.0, %v1072
        %v1074 = vpop.f32.mrb[0].mxu0
        %v1075 = vadd.f32 0.0, %v1074
        %v1076 = vpop.f32.mrb[0].mxu0
        %v1077 = vadd.f32 0.0, %v1076
        %v1078 = vpop.f32.mrb[0].mxu0
        %v1079 = vadd.f32 0.0, %v1078
        %1080 = vmatprep.mubr.bf16.mxu0 0
        %1081 = vmatmul.mubr.bf16.gmra.mrb[0].mxu0 %v846
        %v1082 = vpop.f32.mrb[0].mxu0
        %v1083 = vadd.f32 0.0, %v1082
        %v1084 = vpop.f32.mrb[0].mxu0
        %v1085 = vadd.f32 0.0, %v1084
        %v1086 = vpop.f32.mrb[0].mxu0
        %v1087 = vadd.f32 0.0, %v1086
        %v1088 = vpop.f32.mrb[0].mxu0
        %v1089 = vadd.f32 0.0, %v1088
        %1090 = vmatprep.mubr.bf16.mxu0 0
        %1091 = vmatmul.mubr.bf16.gmra.mrb[0].mxu0 %v847
        %v1092 = vpop.f32.mrb[0].mxu0
        %v1093 = vadd.f32 0.0, %v1092
        %v1094 = vpop.f32.mrb[0].mxu0
        %v1095 = vadd.f32 0.0, %v1094
        %v1096 = vpop.f32.mrb[0].mxu0
        %v1097 = vadd.f32 0.0, %v1096
        %v1098 = vpop.f32.mrb[0].mxu0
        %v1099 = vadd.f32 0.0, %v1098
        %1100 = vmatprep.mubr.bf16.mxu0 0
        %1101 = vmatmul.mubr.bf16.gmra.mrb[0].mxu0 %v848
        %v1102 = vpop.f32.mrb[0].mxu0
        %v1103 = vadd.f32 0.0, %v1102
        %v1104 = vpop.f32.mrb[0].mxu0
        %v1105 = vadd.f32 0.0, %v1104
        %v1106 = vpop.f32.mrb[0].mxu0
        %v1107 = vadd.f32 0.0, %v1106
        %v1108 = vpop.f32.mrb[0].mxu0
        %v1109 = vadd.f32 0.0, %v1108
        %1110 = vmatprep.mubr.bf16.mxu0 0
        %1111 = vmatmul.mubr.bf16.gmra.mrb[0].mxu0 %v849
        %v1112 = vpop.f32.mrb[0].mxu0
        %v1113 = vadd.f32 0.0, %v1112
        %v1114 = vpop.f32.mrb[0].mxu0
        %v1115 = vadd.f32 0.0, %v1114
        %v1116 = vpop.f32.mrb[0].mxu0
        %v1117 = vadd.f32 0.0, %v1116
        %v1118 = vpop.f32.mrb[0].mxu0
        %v1119 = vadd.f32 0.0, %v1118
        %1120 = vmatprep.mubr.bf16.mxu0 0
        %1121 = vmatmul.mubr.bf16.gmra.mrb[0].mxu0 %v850
        %v1122 = vpop.f32.mrb[0].mxu0
        %v1123 = vadd.f32 0.0, %v1122
        %v1124 = vpop.f32.mrb[0].mxu0
        %v1125 = vadd.f32 0.0, %v1124
        %v1126 = vpop.f32.mrb[0].mxu0
        %v1127 = vadd.f32 0.0, %v1126
        %v1128 = vpop.f32.mrb[0].mxu0
        %v1129 = vadd.f32 0.0, %v1128
        %1130 = vmatprep.mubr.bf16.mxu0 0
        %1131 = vmatmul.mubr.bf16.gmra.mrb[0].mxu0 %v851
        %v1132 = vpop.f32.mrb[0].mxu0
        %v1133 = vadd.f32 0.0, %v1132
        %v1134 = vpop.f32.mrb[0].mxu0
        %v1135 = vadd.f32 0.0, %v1134
        %v1136 = vpop.f32.mrb[0].mxu0
        %v1137 = vadd.f32 0.0, %v1136
        %v1138 = vpop.f32.mrb[0].mxu0
        %v1139 = vadd.f32 0.0, %v1138
        %1140 = vdwg.mxu0
        %v1141 = vld [vmem:[#allocation3] sm:$0xff]
        %v1142 = vld [vmem:[#allocation3 + $0x8] sm:$0xff]
        %v1143 = vld [vmem:[#allocation3 + $0x10] sm:$0xff]
        %v1144 = vld [vmem:[#allocation3 + $0x18] sm:$0xff]
        %v1145 = vld [vmem:[#allocation3 + $0x20] sm:$0xff]
        %v1146 = vld [vmem:[#allocation3 + $0x28] sm:$0xff]
        %v1147 = vld [vmem:[#allocation3 + $0x30] sm:$0xff]
        %v1148 = vld [vmem:[#allocation3 + $0x38] sm:$0xff]
        %v1149 = vld [vmem:[#allocation3 + $0x40] sm:$0xff]
        %v1150 = vld [vmem:[#allocation3 + $0x48] sm:$0xff]
        %v1151 = vld [vmem:[#allocation3 + $0x50] sm:$0xff]
        %v1152 = vld [vmem:[#allocation3 + $0x58] sm:$0xff]
        %v1153 = vld [vmem:[#allocation3 + $0x60] sm:$0xff]
        %v1154 = vld [vmem:[#allocation3 + $0x68] sm:$0xff]
        %v1155 = vld [vmem:[#allocation3 + $0x70] sm:$0xff]
        %v1156 = vld [vmem:[#allocation3 + $0x78] sm:$0xff]
        %v1157 = vld [vmem:[#allocation3 + $0x80] sm:$0xff]
        %v1158 = vld [vmem:[#allocation3 + $0x88] sm:$0xff]
        %v1159 = vld [vmem:[#allocation3 + $0x90] sm:$0xff]
        %v1160 = vld [vmem:[#allocation3 + $0x98] sm:$0xff]
        %v1161 = vld [vmem:[#allocation3 + $0xa0] sm:$0xff]
        %v1162 = vld [vmem:[#allocation3 + $0xa8] sm:$0xff]
        %v1163 = vld [vmem:[#allocation3 + $0xb0] sm:$0xff]
        %v1164 = vld [vmem:[#allocation3 + $0xb8] sm:$0xff]
        %v1165 = vld [vmem:[#allocation3 + $0xc0] sm:$0xff]
        %v1166 = vld [vmem:[#allocation3 + $0xc8] sm:$0xff]
        %v1167 = vld [vmem:[#allocation3 + $0xd0] sm:$0xff]
        %v1168 = vld [vmem:[#allocation3 + $0xd8] sm:$0xff]
        %v1169 = vld [vmem:[#allocation3 + $0xe0] sm:$0xff]
        %v1170 = vld [vmem:[#allocation3 + $0xe8] sm:$0xff]
        %v1171 = vld [vmem:[#allocation3 + $0xf0] sm:$0xff]
        %v1172 = vld [vmem:[#allocation3 + $0xf8] sm:$0xff]
        %v1173 = vmax.f32 %v983, %v985
        %1174 = vmax.xlane.f32.xlu0 %v1173
        %v1175 = vpop.xlane.xlu0 %1174
        %v1176 = vmax.f32 %v987, %v989
        %1177 = vmax.xlane.f32.xlu0 %v1176
        %v1178 = vpop.xlane.xlu0 %1177
        %v1179 = vmax.f32 %v993, %v995
        %1180 = vmax.xlane.f32.xlu0 %v1179
        %v1181 = vpop.xlane.xlu0 %1180
        %v1182 = vmax.f32 %v997, %v999
        %1183 = vmax.xlane.f32.xlu0 %v1182
        %v1184 = vpop.xlane.xlu0 %1183
        %v1185 = vmax.f32 %v1003, %v1005
        %1186 = vmax.xlane.f32.xlu0 %v1185
        %v1187 = vpop.xlane.xlu0 %1186
        %v1188 = vmax.f32 %v1007, %v1009
        %1189 = vmax.xlane.f32.xlu0 %v1188
        %v1190 = vpop.xlane.xlu0 %1189
        %v1191 = vmax.f32 %v1013, %v1015
        %1192 = vmax.xlane.f32.xlu0 %v1191
        %v1193 = vpop.xlane.xlu0 %1192
        %v1194 = vmax.f32 %v1017, %v1019
        %1195 = vmax.xlane.f32.xlu0 %v1194
        %v1196 = vpop.xlane.xlu0 %1195
        %v1197 = vmax.f32 %v1023, %v1025
        %1198 = vmax.xlane.f32.xlu0 %v1197
        %v1199 = vpop.xlane.xlu0 %1198
        %v1200 = vmax.f32 %v1027, %v1029
        %1201 = vmax.xlane.f32.xlu0 %v1200
        %v1202 = vpop.xlane.xlu0 %1201
        %v1203 = vmax.f32 %v1033, %v1035
        %1204 = vmax.xlane.f32.xlu0 %v1203
        %v1205 = vpop.xlane.xlu0 %1204
        %v1206 = vmax.f32 %v1037, %v1039
        %1207 = vmax.xlane.f32.xlu0 %v1206
        %v1208 = vpop.xlane.xlu0 %1207
        %v1209 = vmax.f32 %v1043, %v1045
        %1210 = vmax.xlane.f32.xlu0 %v1209
        %v1211 = vpop.xlane.xlu0 %1210
        %v1212 = vmax.f32 %v1047, %v1049
        %1213 = vmax.xlane.f32.xlu0 %v1212
        %v1214 = vpop.xlane.xlu0 %1213
        %v1215 = vmax.f32 %v1053, %v1055
        %1216 = vmax.xlane.f32.xlu0 %v1215
        %v1217 = vpop.xlane.xlu0 %1216
        %v1218 = vmax.f32 %v1057, %v1059
        %1219 = vmax.xlane.f32.xlu0 %v1218
        %v1220 = vpop.xlane.xlu0 %1219
        %v1221 = vmax.f32 %v1063, %v1065
        %1222 = vmax.xlane.f32.xlu0 %v1221
        %v1223 = vpop.xlane.xlu0 %1222
        %v1224 = vmax.f32 %v1067, %v1069
        %1225 = vmax.xlane.f32.xlu0 %v1224
        %v1226 = vpop.xlane.xlu0 %1225
        %v1227 = vmax.f32 %v1073, %v1075
        %1228 = vmax.xlane.f32.xlu0 %v1227
        %v1229 = vpop.xlane.xlu0 %1228
        %v1230 = vmax.f32 %v1077, %v1079
        %1231 = vmax.xlane.f32.xlu0 %v1230
        %v1232 = vpop.xlane.xlu0 %1231
        %v1233 = vmax.f32 %v1083, %v1085
        %1234 = vmax.xlane.f32.xlu0 %v1233
        %v1235 = vpop.xlane.xlu0 %1234
        %v1236 = vmax.f32 %v1087, %v1089
        %1237 = vmax.xlane.f32.xlu0 %v1236
        %v1238 = vpop.xlane.xlu0 %1237
        %v1239 = vmax.f32 %v1093, %v1095
        %1240 = vmax.xlane.f32.xlu0 %v1239
        %v1241 = vpop.xlane.xlu0 %1240
        %v1242 = vmax.f32 %v1097, %v1099
        %1243 = vmax.xlane.f32.xlu0 %v1242
        %v1244 = vpop.xlane.xlu0 %1243
        %v1245 = vmax.f32 %v1103, %v1105
        %1246 = vmax.xlane.f32.xlu0 %v1245
        %v1247 = vpop.xlane.xlu0 %1246
        %v1248 = vmax.f32 %v1107, %v1109
        %1249 = vmax.xlane.f32.xlu0 %v1248
        %v1250 = vpop.xlane.xlu0 %1249
        %v1251 = vmax.f32 %v1113, %v1115
        %1252 = vmax.xlane.f32.xlu0 %v1251
        %v1253 = vpop.xlane.xlu0 %1252
        %v1254 = vmax.f32 %v1117, %v1119
        %1255 = vmax.xlane.f32.xlu0 %v1254
        %v1256 = vpop.xlane.xlu0 %1255
        %v1257 = vmax.f32 %v1123, %v1125
        %1258 = vmax.xlane.f32.xlu0 %v1257
        %v1259 = vpop.xlane.xlu0 %1258
        %v1260 = vmax.f32 %v1127, %v1129
        %1261 = vmax.xlane.f32.xlu0 %v1260
        %v1262 = vpop.xlane.xlu0 %1261
        %v1263 = vmax.f32 %v1133, %v1135
        %1264 = vmax.xlane.f32.xlu0 %v1263
        %v1265 = vpop.xlane.xlu0 %1264
        %v1266 = vmax.f32 %v1137, %v1139
        %1267 = vmax.xlane.f32.xlu0 %v1266
        %v1268 = vpop.xlane.xlu0 %1267
        %v1269 = vmax.f32 %v1141, %v1175
        %v1270 = vmax.f32 %v1142, %v1178
        %v1271 = vmax.f32 %v1143, %v1181
        %v1272 = vmax.f32 %v1144, %v1184
        %v1273 = vmax.f32 %v1145, %v1187
        %v1274 = vmax.f32 %v1146, %v1190
        %v1275 = vmax.f32 %v1147, %v1193
        %v1276 = vmax.f32 %v1148, %v1196
        %v1277 = vmax.f32 %v1149, %v1199
        %v1278 = vmax.f32 %v1150, %v1202
        %v1279 = vmax.f32 %v1151, %v1205
        %v1280 = vmax.f32 %v1152, %v1208
        %v1281 = vmax.f32 %v1153, %v1211
        %v1282 = vmax.f32 %v1154, %v1214
        %v1283 = vmax.f32 %v1155, %v1217
        %v1284 = vmax.f32 %v1156, %v1220
        %v1285 = vmax.f32 %v1157, %v1223
        %v1286 = vmax.f32 %v1158, %v1226
        %v1287 = vmax.f32 %v1159, %v1229
        %v1288 = vmax.f32 %v1160, %v1232
        %v1289 = vmax.f32 %v1161, %v1235
        %v1290 = vmax.f32 %v1162, %v1238
        %v1291 = vmax.f32 %v1163, %v1241
        %v1292 = vmax.f32 %v1164, %v1244
        %v1293 = vmax.f32 %v1165, %v1247
        %v1294 = vmax.f32 %v1166, %v1250
        %v1295 = vmax.f32 %v1167, %v1253
        %v1296 = vmax.f32 %v1168, %v1256
        %v1297 = vmax.f32 %v1169, %v1259
        %v1298 = vmax.f32 %v1170, %v1262
        %v1299 = vmax.f32 %v1171, %v1265
        %v1300 = vmax.f32 %v1172, %v1268
        %v1301 = vsub.f32 %v1141, %v1269
        %v1302 = vsub.f32 %v1142, %v1270
        %v1303 = vsub.f32 %v1143, %v1271
        %v1304 = vsub.f32 %v1144, %v1272
        %v1305 = vsub.f32 %v1145, %v1273
        %v1306 = vsub.f32 %v1146, %v1274
        %v1307 = vsub.f32 %v1147, %v1275
        %v1308 = vsub.f32 %v1148, %v1276
        %v1309 = vsub.f32 %v1149, %v1277
        %v1310 = vsub.f32 %v1150, %v1278
        %v1311 = vsub.f32 %v1151, %v1279
        %v1312 = vsub.f32 %v1152, %v1280
        %v1313 = vsub.f32 %v1153, %v1281
        %v1314 = vsub.f32 %v1154, %v1282
        %v1315 = vsub.f32 %v1155, %v1283
        %v1316 = vsub.f32 %v1156, %v1284
        %v1317 = vsub.f32 %v1157, %v1285
        %v1318 = vsub.f32 %v1158, %v1286
        %v1319 = vsub.f32 %v1159, %v1287
        %v1320 = vsub.f32 %v1160, %v1288
        %v1321 = vsub.f32 %v1161, %v1289
        %v1322 = vsub.f32 %v1162, %v1290
        %v1323 = vsub.f32 %v1163, %v1291
        %v1324 = vsub.f32 %v1164, %v1292
        %v1325 = vsub.f32 %v1165, %v1293
        %v1326 = vsub.f32 %v1166, %v1294
        %v1327 = vsub.f32 %v1167, %v1295
        %v1328 = vsub.f32 %v1168, %v1296
        %v1329 = vsub.f32 %v1169, %v1297
        %v1330 = vsub.f32 %v1170, %v1298
        %v1331 = vsub.f32 %v1171, %v1299
        %v1332 = vsub.f32 %v1172, %v1300
        %v1333 = vmul.f32 %v1301, 1.442695
        %v1334 = vpow.pop %v1333
        %v1335 = vmul.f32 %v1302, 1.442695
        %v1336 = vpow.pop %v1335
        %v1337 = vmul.f32 %v1303, 1.442695
        %v1338 = vpow.pop %v1337
        %v1339 = vmul.f32 %v1304, 1.442695
        %v1340 = vpow.pop %v1339
        %v1341 = vmul.f32 %v1305, 1.442695
        %v1342 = vpow.pop %v1341
        %v1343 = vmul.f32 %v1306, 1.442695
        %v1344 = vpow.pop %v1343
        %v1345 = vmul.f32 %v1307, 1.442695
        %v1346 = vpow.pop %v1345
        %v1347 = vmul.f32 %v1308, 1.442695
        %v1348 = vpow.pop %v1347
        %v1349 = vmul.f32 %v1309, 1.442695
        %v1350 = vpow.pop %v1349
        %v1351 = vmul.f32 %v1310, 1.442695
        %v1352 = vpow.pop %v1351
        %v1353 = vmul.f32 %v1311, 1.442695
        %v1354 = vpow.pop %v1353
        %v1355 = vmul.f32 %v1312, 1.442695
        %v1356 = vpow.pop %v1355
        %v1357 = vmul.f32 %v1313, 1.442695
        %v1358 = vpow.pop %v1357
        %v1359 = vmul.f32 %v1314, 1.442695
        %v1360 = vpow.pop %v1359
        %v1361 = vmul.f32 %v1315, 1.442695
        %v1362 = vpow.pop %v1361
        %v1363 = vmul.f32 %v1316, 1.442695
        %v1364 = vpow.pop %v1363
        %v1365 = vmul.f32 %v1317, 1.442695
        %v1366 = vpow.pop %v1365
        %v1367 = vmul.f32 %v1318, 1.442695
        %v1368 = vpow.pop %v1367
        %v1369 = vmul.f32 %v1319, 1.442695
        %v1370 = vpow.pop %v1369
        %v1371 = vmul.f32 %v1320, 1.442695
        %v1372 = vpow.pop %v1371
        %v1373 = vmul.f32 %v1321, 1.442695
        %v1374 = vpow.pop %v1373
        %v1375 = vmul.f32 %v1322, 1.442695
        %v1376 = vpow.pop %v1375
        %v1377 = vmul.f32 %v1323, 1.442695
        %v1378 = vpow.pop %v1377
        %v1379 = vmul.f32 %v1324, 1.442695
        %v1380 = vpow.pop %v1379
        %v1381 = vmul.f32 %v1325, 1.442695
        %v1382 = vpow.pop %v1381
        %v1383 = vmul.f32 %v1326, 1.442695
        %v1384 = vpow.pop %v1383
        %v1385 = vmul.f32 %v1327, 1.442695
        %v1386 = vpow.pop %v1385
        %v1387 = vmul.f32 %v1328, 1.442695
        %v1388 = vpow.pop %v1387
        %v1389 = vmul.f32 %v1329, 1.442695
        %v1390 = vpow.pop %v1389
        %v1391 = vmul.f32 %v1330, 1.442695
        %v1392 = vpow.pop %v1391
        %v1393 = vmul.f32 %v1331, 1.442695
        %v1394 = vpow.pop %v1393
        %v1395 = vmul.f32 %v1332, 1.442695
        %v1396 = vpow.pop %v1395
        %1398 = vset.pattern.permute.xlu0 0
        %1399 = vperm.xlu0 %1398, %v1269
        %v1400 = vpop.permute.xlu0 %1399
        %1403 = vset.pattern.permute.xlu0 0
        %1404 = vperm.xlu0 %1403, %v1270
        %v1405 = vpop.permute.xlu0 %1404
        %1408 = vset.pattern.permute.xlu0 0
        %1409 = vperm.xlu0 %1408, %v1271
        %v1410 = vpop.permute.xlu0 %1409
        %1413 = vset.pattern.permute.xlu0 0
        %1414 = vperm.xlu0 %1413, %v1272
        %v1415 = vpop.permute.xlu0 %1414
        %1418 = vset.pattern.permute.xlu0 0
        %1419 = vperm.xlu0 %1418, %v1273
        %v1420 = vpop.permute.xlu0 %1419
        %1423 = vset.pattern.permute.xlu0 0
        %1424 = vperm.xlu0 %1423, %v1274
        %v1425 = vpop.permute.xlu0 %1424
        %1428 = vset.pattern.permute.xlu0 0
        %1429 = vperm.xlu0 %1428, %v1275
        %v1430 = vpop.permute.xlu0 %1429
        %1433 = vset.pattern.permute.xlu0 0
        %1434 = vperm.xlu0 %1433, %v1276
        %v1435 = vpop.permute.xlu0 %1434
        %1438 = vset.pattern.permute.xlu0 0
        %1439 = vperm.xlu0 %1438, %v1277
        %v1440 = vpop.permute.xlu0 %1439
        %1443 = vset.pattern.permute.xlu0 0
        %1444 = vperm.xlu0 %1443, %v1278
        %v1445 = vpop.permute.xlu0 %1444
        %1448 = vset.pattern.permute.xlu0 0
        %1449 = vperm.xlu0 %1448, %v1279
        %v1450 = vpop.permute.xlu0 %1449
        %1453 = vset.pattern.permute.xlu0 0
        %1454 = vperm.xlu0 %1453, %v1280
        %v1455 = vpop.permute.xlu0 %1454
        %1458 = vset.pattern.permute.xlu0 0
        %1459 = vperm.xlu0 %1458, %v1281
        %v1460 = vpop.permute.xlu0 %1459
        %1463 = vset.pattern.permute.xlu0 0
        %1464 = vperm.xlu0 %1463, %v1282
        %v1465 = vpop.permute.xlu0 %1464
        %1468 = vset.pattern.permute.xlu0 0
        %1469 = vperm.xlu0 %1468, %v1283
        %v1470 = vpop.permute.xlu0 %1469
        %1473 = vset.pattern.permute.xlu0 0
        %1474 = vperm.xlu0 %1473, %v1284
        %v1475 = vpop.permute.xlu0 %1474
        %1478 = vset.pattern.permute.xlu0 0
        %1479 = vperm.xlu0 %1478, %v1285
        %v1480 = vpop.permute.xlu0 %1479
        %1483 = vset.pattern.permute.xlu0 0
        %1484 = vperm.xlu0 %1483, %v1286
        %v1485 = vpop.permute.xlu0 %1484
        %1488 = vset.pattern.permute.xlu0 0
        %1489 = vperm.xlu0 %1488, %v1287
        %v1490 = vpop.permute.xlu0 %1489
        %1493 = vset.pattern.permute.xlu0 0
        %1494 = vperm.xlu0 %1493, %v1288
        %v1495 = vpop.permute.xlu0 %1494
        %1498 = vset.pattern.permute.xlu0 0
        %1499 = vperm.xlu0 %1498, %v1289
        %v1500 = vpop.permute.xlu0 %1499
        %1503 = vset.pattern.permute.xlu0 0
        %1504 = vperm.xlu0 %1503, %v1290
        %v1505 = vpop.permute.xlu0 %1504
        %1508 = vset.pattern.permute.xlu0 0
        %1509 = vperm.xlu0 %1508, %v1291
        %v1510 = vpop.permute.xlu0 %1509
        %1513 = vset.pattern.permute.xlu0 0
        %1514 = vperm.xlu0 %1513, %v1292
        %v1515 = vpop.permute.xlu0 %1514
        %1518 = vset.pattern.permute.xlu0 0
        %1519 = vperm.xlu0 %1518, %v1293
        %v1520 = vpop.permute.xlu0 %1519
        %1523 = vset.pattern.permute.xlu0 0
        %1524 = vperm.xlu0 %1523, %v1294
        %v1525 = vpop.permute.xlu0 %1524
        %1528 = vset.pattern.permute.xlu0 0
        %1529 = vperm.xlu0 %1528, %v1295
        %v1530 = vpop.permute.xlu0 %1529
        %1533 = vset.pattern.permute.xlu0 0
        %1534 = vperm.xlu0 %1533, %v1296
        %v1535 = vpop.permute.xlu0 %1534
        %1538 = vset.pattern.permute.xlu0 0
        %1539 = vperm.xlu0 %1538, %v1297
        %v1540 = vpop.permute.xlu0 %1539
        %1543 = vset.pattern.permute.xlu0 0
        %1544 = vperm.xlu0 %1543, %v1298
        %v1545 = vpop.permute.xlu0 %1544
        %1548 = vset.pattern.permute.xlu0 0
        %1549 = vperm.xlu0 %1548, %v1299
        %v1550 = vpop.permute.xlu0 %1549
        %1553 = vset.pattern.permute.xlu0 0
        %1554 = vperm.xlu0 %1553, %v1300
        %v1555 = vpop.permute.xlu0 %1554
        %v1557 = vsub.f32 %v983, %v1400
        %v1558 = vsub.f32 %v985, %v1400
        %v1559 = vsub.f32 %v987, %v1405
        %v1560 = vsub.f32 %v989, %v1405
        %v1561 = vsub.f32 %v993, %v1410
        %v1562 = vsub.f32 %v995, %v1410
        %v1563 = vsub.f32 %v997, %v1415
        %v1564 = vsub.f32 %v999, %v1415
        %v1565 = vsub.f32 %v1003, %v1420
        %v1566 = vsub.f32 %v1005, %v1420
        %v1567 = vsub.f32 %v1007, %v1425
        %v1568 = vsub.f32 %v1009, %v1425
        %v1569 = vsub.f32 %v1013, %v1430
        %v1570 = vsub.f32 %v1015, %v1430
        %v1571 = vsub.f32 %v1017, %v1435
        %v1572 = vsub.f32 %v1019, %v1435
        %v1573 = vsub.f32 %v1023, %v1440
        %v1574 = vsub.f32 %v1025, %v1440
        %v1575 = vsub.f32 %v1027, %v1445
        %v1576 = vsub.f32 %v1029, %v1445
        %v1577 = vsub.f32 %v1033, %v1450
        %v1578 = vsub.f32 %v1035, %v1450
        %v1579 = vsub.f32 %v1037, %v1455
        %v1580 = vsub.f32 %v1039, %v1455
        %v1581 = vsub.f32 %v1043, %v1460
        %v1582 = vsub.f32 %v1045, %v1460
        %v1583 = vsub.f32 %v1047, %v1465
        %v1584 = vsub.f32 %v1049, %v1465
        %v1585 = vsub.f32 %v1053, %v1470
        %v1586 = vsub.f32 %v1055, %v1470
        %v1587 = vsub.f32 %v1057, %v1475
        %v1588 = vsub.f32 %v1059, %v1475
        %v1589 = vsub.f32 %v1063, %v1480
        %v1590 = vsub.f32 %v1065, %v1480
        %v1591 = vsub.f32 %v1067, %v1485
        %v1592 = vsub.f32 %v1069, %v1485
        %v1593 = vsub.f32 %v1073, %v1490
        %v1594 = vsub.f32 %v1075, %v1490
        %v1595 = vsub.f32 %v1077, %v1495
        %v1596 = vsub.f32 %v1079, %v1495
        %v1597 = vsub.f32 %v1083, %v1500
        %v1598 = vsub.f32 %v1085, %v1500
        %v1599 = vsub.f32 %v1087, %v1505
        %v1600 = vsub.f32 %v1089, %v1505
        %v1601 = vsub.f32 %v1093, %v1510
        %v1602 = vsub.f32 %v1095, %v1510
        %v1603 = vsub.f32 %v1097, %v1515
        %v1604 = vsub.f32 %v1099, %v1515
        %v1605 = vsub.f32 %v1103, %v1520
        %v1606 = vsub.f32 %v1105, %v1520
        %v1607 = vsub.f32 %v1107, %v1525
        %v1608 = vsub.f32 %v1109, %v1525
        %v1609 = vsub.f32 %v1113, %v1530
        %v1610 = vsub.f32 %v1115, %v1530
        %v1611 = vsub.f32 %v1117, %v1535
        %v1612 = vsub.f32 %v1119, %v1535
        %v1613 = vsub.f32 %v1123, %v1540
        %v1614 = vsub.f32 %v1125, %v1540
        %v1615 = vsub.f32 %v1127, %v1545
        %v1616 = vsub.f32 %v1129, %v1545
        %v1617 = vsub.f32 %v1133, %v1550
        %v1618 = vsub.f32 %v1135, %v1550
        %v1619 = vsub.f32 %v1137, %v1555
        %v1620 = vsub.f32 %v1139, %v1555
        %v1621 = vmul.f32 %v1557, 1.442695
        %v1622 = vpow.pop %v1621
        %v1623 = vmul.f32 %v1558, 1.442695
        %v1624 = vpow.pop %v1623
        %v1625 = vmul.f32 %v1559, 1.442695
        %v1626 = vpow.pop %v1625
        %v1627 = vmul.f32 %v1560, 1.442695
        %v1628 = vpow.pop %v1627
        %v1629 = vmul.f32 %v1561, 1.442695
        %v1630 = vpow.pop %v1629
        %v1631 = vmul.f32 %v1562, 1.442695
        %v1632 = vpow.pop %v1631
        %v1633 = vmul.f32 %v1563, 1.442695
        %v1634 = vpow.pop %v1633
        %v1635 = vmul.f32 %v1564, 1.442695
        %v1636 = vpow.pop %v1635
        %v1637 = vmul.f32 %v1565, 1.442695
        %v1638 = vpow.pop %v1637
        %v1639 = vmul.f32 %v1566, 1.442695
        %v1640 = vpow.pop %v1639
        %v1641 = vmul.f32 %v1567, 1.442695
        %v1642 = vpow.pop %v1641
        %v1643 = vmul.f32 %v1568, 1.442695
        %v1644 = vpow.pop %v1643
        %v1645 = vmul.f32 %v1569, 1.442695
        %v1646 = vpow.pop %v1645
        %v1647 = vmul.f32 %v1570, 1.442695
        %v1648 = vpow.pop %v1647
        %v1649 = vmul.f32 %v1571, 1.442695
        %v1650 = vpow.pop %v1649
        %v1651 = vmul.f32 %v1572, 1.442695
        %v1652 = vpow.pop %v1651
        %v1653 = vmul.f32 %v1573, 1.442695
        %v1654 = vpow.pop %v1653
        %v1655 = vmul.f32 %v1574, 1.442695
        %v1656 = vpow.pop %v1655
        %v1657 = vmul.f32 %v1575, 1.442695
        %v1658 = vpow.pop %v1657
        %v1659 = vmul.f32 %v1576, 1.442695
        %v1660 = vpow.pop %v1659
        %v1661 = vmul.f32 %v1577, 1.442695
        %v1662 = vpow.pop %v1661
        %v1663 = vmul.f32 %v1578, 1.442695
        %v1664 = vpow.pop %v1663
        %v1665 = vmul.f32 %v1579, 1.442695
        %v1666 = vpow.pop %v1665
        %v1667 = vmul.f32 %v1580, 1.442695
        %v1668 = vpow.pop %v1667
        %v1669 = vmul.f32 %v1581, 1.442695
        %v1670 = vpow.pop %v1669
        %v1671 = vmul.f32 %v1582, 1.442695
        %v1672 = vpow.pop %v1671
        %v1673 = vmul.f32 %v1583, 1.442695
        %v1674 = vpow.pop %v1673
        %v1675 = vmul.f32 %v1584, 1.442695
        %v1676 = vpow.pop %v1675
        %v1677 = vmul.f32 %v1585, 1.442695
        %v1678 = vpow.pop %v1677
        %v1679 = vmul.f32 %v1586, 1.442695
        %v1680 = vpow.pop %v1679
        %v1681 = vmul.f32 %v1587, 1.442695
        %v1682 = vpow.pop %v1681
        %v1683 = vmul.f32 %v1588, 1.442695
        %v1684 = vpow.pop %v1683
        %v1685 = vmul.f32 %v1589, 1.442695
        %v1686 = vpow.pop %v1685
        %v1687 = vmul.f32 %v1590, 1.442695
        %v1688 = vpow.pop %v1687
        %v1689 = vmul.f32 %v1591, 1.442695
        %v1690 = vpow.pop %v1689
        %v1691 = vmul.f32 %v1592, 1.442695
        %v1692 = vpow.pop %v1691
        %v1693 = vmul.f32 %v1593, 1.442695
        %v1694 = vpow.pop %v1693
        %v1695 = vmul.f32 %v1594, 1.442695
        %v1696 = vpow.pop %v1695
        %v1697 = vmul.f32 %v1595, 1.442695
        %v1698 = vpow.pop %v1697
        %v1699 = vmul.f32 %v1596, 1.442695
        %v1700 = vpow.pop %v1699
        %v1701 = vmul.f32 %v1597, 1.442695
        %v1702 = vpow.pop %v1701
        %v1703 = vmul.f32 %v1598, 1.442695
        %v1704 = vpow.pop %v1703
        %v1705 = vmul.f32 %v1599, 1.442695
        %v1706 = vpow.pop %v1705
        %v1707 = vmul.f32 %v1600, 1.442695
        %v1708 = vpow.pop %v1707
        %v1709 = vmul.f32 %v1601, 1.442695
        %v1710 = vpow.pop %v1709
        %v1711 = vmul.f32 %v1602, 1.442695
        %v1712 = vpow.pop %v1711
        %v1713 = vmul.f32 %v1603, 1.442695
        %v1714 = vpow.pop %v1713
        %v1715 = vmul.f32 %v1604, 1.442695
        %v1716 = vpow.pop %v1715
        %v1717 = vmul.f32 %v1605, 1.442695
        %v1718 = vpow.pop %v1717
        %v1719 = vmul.f32 %v1606, 1.442695
        %v1720 = vpow.pop %v1719
        %v1721 = vmul.f32 %v1607, 1.442695
        %v1722 = vpow.pop %v1721
        %v1723 = vmul.f32 %v1608, 1.442695
        %v1724 = vpow.pop %v1723
        %v1725 = vmul.f32 %v1609, 1.442695
        %v1726 = vpow.pop %v1725
        %v1727 = vmul.f32 %v1610, 1.442695
        %v1728 = vpow.pop %v1727
        %v1729 = vmul.f32 %v1611, 1.442695
        %v1730 = vpow.pop %v1729
        %v1731 = vmul.f32 %v1612, 1.442695
        %v1732 = vpow.pop %v1731
        %v1733 = vmul.f32 %v1613, 1.442695
        %v1734 = vpow.pop %v1733
        %v1735 = vmul.f32 %v1614, 1.442695
        %v1736 = vpow.pop %v1735
        %v1737 = vmul.f32 %v1615, 1.442695
        %v1738 = vpow.pop %v1737
        %v1739 = vmul.f32 %v1616, 1.442695
        %v1740 = vpow.pop %v1739
        %v1741 = vmul.f32 %v1617, 1.442695
        %v1742 = vpow.pop %v1741
        %v1743 = vmul.f32 %v1618, 1.442695
        %v1744 = vpow.pop %v1743
        %v1745 = vmul.f32 %v1619, 1.442695
        %v1746 = vpow.pop %v1745
        %v1747 = vmul.f32 %v1620, 1.442695
        %v1748 = vpow.pop %v1747
        %v1749 = vld [vmem:[#allocation4] sm:$0xff]
        %v1750 = vld [vmem:[#allocation4 + $0x8] sm:$0xff]
        %v1751 = vld [vmem:[#allocation4 + $0x10] sm:$0xff]
        %v1752 = vld [vmem:[#allocation4 + $0x18] sm:$0xff]
        %v1753 = vld [vmem:[#allocation4 + $0x20] sm:$0xff]
        %v1754 = vld [vmem:[#allocation4 + $0x28] sm:$0xff]
        %v1755 = vld [vmem:[#allocation4 + $0x30] sm:$0xff]
        %v1756 = vld [vmem:[#allocation4 + $0x38] sm:$0xff]
        %v1757 = vld [vmem:[#allocation4 + $0x40] sm:$0xff]
        %v1758 = vld [vmem:[#allocation4 + $0x48] sm:$0xff]
        %v1759 = vld [vmem:[#allocation4 + $0x50] sm:$0xff]
        %v1760 = vld [vmem:[#allocation4 + $0x58] sm:$0xff]
        %v1761 = vld [vmem:[#allocation4 + $0x60] sm:$0xff]
        %v1762 = vld [vmem:[#allocation4 + $0x68] sm:$0xff]
        %v1763 = vld [vmem:[#allocation4 + $0x70] sm:$0xff]
        %v1764 = vld [vmem:[#allocation4 + $0x78] sm:$0xff]
        %v1765 = vld [vmem:[#allocation4 + $0x80] sm:$0xff]
        %v1766 = vld [vmem:[#allocation4 + $0x88] sm:$0xff]
        %v1767 = vld [vmem:[#allocation4 + $0x90] sm:$0xff]
        %v1768 = vld [vmem:[#allocation4 + $0x98] sm:$0xff]
        %v1769 = vld [vmem:[#allocation4 + $0xa0] sm:$0xff]
        %v1770 = vld [vmem:[#allocation4 + $0xa8] sm:$0xff]
        %v1771 = vld [vmem:[#allocation4 + $0xb0] sm:$0xff]
        %v1772 = vld [vmem:[#allocation4 + $0xb8] sm:$0xff]
        %v1773 = vld [vmem:[#allocation4 + $0xc0] sm:$0xff]
        %v1774 = vld [vmem:[#allocation4 + $0xc8] sm:$0xff]
        %v1775 = vld [vmem:[#allocation4 + $0xd0] sm:$0xff]
        %v1776 = vld [vmem:[#allocation4 + $0xd8] sm:$0xff]
        %v1777 = vld [vmem:[#allocation4 + $0xe0] sm:$0xff]
        %v1778 = vld [vmem:[#allocation4 + $0xe8] sm:$0xff]
        %v1779 = vld [vmem:[#allocation4 + $0xf0] sm:$0xff]
        %v1780 = vld [vmem:[#allocation4 + $0xf8] sm:$0xff]
        %v1781 = vmul.f32 %v1334, %v1749
        %v1782 = vmul.f32 %v1336, %v1750
        %v1783 = vmul.f32 %v1338, %v1751
        %v1784 = vmul.f32 %v1340, %v1752
        %v1785 = vmul.f32 %v1342, %v1753
        %v1786 = vmul.f32 %v1344, %v1754
        %v1787 = vmul.f32 %v1346, %v1755
        %v1788 = vmul.f32 %v1348, %v1756
        %v1789 = vmul.f32 %v1350, %v1757
        %v1790 = vmul.f32 %v1352, %v1758
        %v1791 = vmul.f32 %v1354, %v1759
        %v1792 = vmul.f32 %v1356, %v1760
        %v1793 = vmul.f32 %v1358, %v1761
        %v1794 = vmul.f32 %v1360, %v1762
        %v1795 = vmul.f32 %v1362, %v1763
        %v1796 = vmul.f32 %v1364, %v1764
        %v1797 = vmul.f32 %v1366, %v1765
        %v1798 = vmul.f32 %v1368, %v1766
        %v1799 = vmul.f32 %v1370, %v1767
        %v1800 = vmul.f32 %v1372, %v1768
        %v1801 = vmul.f32 %v1374, %v1769
        %v1802 = vmul.f32 %v1376, %v1770
        %v1803 = vmul.f32 %v1378, %v1771
        %v1804 = vmul.f32 %v1380, %v1772
        %v1805 = vmul.f32 %v1382, %v1773
        %v1806 = vmul.f32 %v1384, %v1774
        %v1807 = vmul.f32 %v1386, %v1775
        %v1808 = vmul.f32 %v1388, %v1776
        %v1809 = vmul.f32 %v1390, %v1777
        %v1810 = vmul.f32 %v1392, %v1778
        %v1811 = vmul.f32 %v1394, %v1779
        %v1812 = vmul.f32 %v1396, %v1780
        %v1813 = vadd.f32 %v1622, %v1624
        %1814 = vadd.xlane.f32.xlu0 %v1813
        %v1815 = vpop.xlane.xlu0 %1814
        %v1816 = vadd.f32 %v1626, %v1628
        %1817 = vadd.xlane.f32.xlu0 %v1816
        %v1818 = vpop.xlane.xlu0 %1817
        %v1819 = vadd.f32 %v1630, %v1632
        %1820 = vadd.xlane.f32.xlu0 %v1819
        %v1821 = vpop.xlane.xlu0 %1820
        %v1822 = vadd.f32 %v1634, %v1636
        %1823 = vadd.xlane.f32.xlu0 %v1822
        %v1824 = vpop.xlane.xlu0 %1823
        %v1825 = vadd.f32 %v1638, %v1640
        %1826 = vadd.xlane.f32.xlu0 %v1825
        %v1827 = vpop.xlane.xlu0 %1826
        %v1828 = vadd.f32 %v1642, %v1644
        %1829 = vadd.xlane.f32.xlu0 %v1828
        %v1830 = vpop.xlane.xlu0 %1829
        %v1831 = vadd.f32 %v1646, %v1648
        %1832 = vadd.xlane.f32.xlu0 %v1831
        %v1833 = vpop.xlane.xlu0 %1832
        %v1834 = vadd.f32 %v1650, %v1652
        %1835 = vadd.xlane.f32.xlu0 %v1834
        %v1836 = vpop.xlane.xlu0 %1835
        %v1837 = vadd.f32 %v1654, %v1656
        %1838 = vadd.xlane.f32.xlu0 %v1837
        %v1839 = vpop.xlane.xlu0 %1838
        %v1840 = vadd.f32 %v1658, %v1660
        %1841 = vadd.xlane.f32.xlu0 %v1840
        %v1842 = vpop.xlane.xlu0 %1841
        %v1843 = vadd.f32 %v1662, %v1664
        %1844 = vadd.xlane.f32.xlu0 %v1843
        %v1845 = vpop.xlane.xlu0 %1844
        %v1846 = vadd.f32 %v1666, %v1668
        %1847 = vadd.xlane.f32.xlu0 %v1846
        %v1848 = vpop.xlane.xlu0 %1847
        %v1849 = vadd.f32 %v1670, %v1672
        %1850 = vadd.xlane.f32.xlu0 %v1849
        %v1851 = vpop.xlane.xlu0 %1850
        %v1852 = vadd.f32 %v1674, %v1676
        %1853 = vadd.xlane.f32.xlu0 %v1852
        %v1854 = vpop.xlane.xlu0 %1853
        %v1855 = vadd.f32 %v1678, %v1680
        %1856 = vadd.xlane.f32.xlu0 %v1855
        %v1857 = vpop.xlane.xlu0 %1856
        %v1858 = vadd.f32 %v1682, %v1684
        %1859 = vadd.xlane.f32.xlu0 %v1858
        %v1860 = vpop.xlane.xlu0 %1859
        %v1861 = vadd.f32 %v1686, %v1688
        %1862 = vadd.xlane.f32.xlu0 %v1861
        %v1863 = vpop.xlane.xlu0 %1862
        %v1864 = vadd.f32 %v1690, %v1692
        %1865 = vadd.xlane.f32.xlu0 %v1864
        %v1866 = vpop.xlane.xlu0 %1865
        %v1867 = vadd.f32 %v1694, %v1696
        %1868 = vadd.xlane.f32.xlu0 %v1867
        %v1869 = vpop.xlane.xlu0 %1868
        %v1870 = vadd.f32 %v1698, %v1700
        %1871 = vadd.xlane.f32.xlu0 %v1870
        %v1872 = vpop.xlane.xlu0 %1871
        %v1873 = vadd.f32 %v1702, %v1704
        %1874 = vadd.xlane.f32.xlu0 %v1873
        %v1875 = vpop.xlane.xlu0 %1874
        %v1876 = vadd.f32 %v1706, %v1708
        %1877 = vadd.xlane.f32.xlu0 %v1876
        %v1878 = vpop.xlane.xlu0 %1877
        %v1879 = vadd.f32 %v1710, %v1712
        %1880 = vadd.xlane.f32.xlu0 %v1879
        %v1881 = vpop.xlane.xlu0 %1880
        %v1882 = vadd.f32 %v1714, %v1716
        %1883 = vadd.xlane.f32.xlu0 %v1882
        %v1884 = vpop.xlane.xlu0 %1883
        %v1885 = vadd.f32 %v1718, %v1720
        %1886 = vadd.xlane.f32.xlu0 %v1885
        %v1887 = vpop.xlane.xlu0 %1886
        %v1888 = vadd.f32 %v1722, %v1724
        %1889 = vadd.xlane.f32.xlu0 %v1888
        %v1890 = vpop.xlane.xlu0 %1889
        %v1891 = vadd.f32 %v1726, %v1728
        %1892 = vadd.xlane.f32.xlu0 %v1891
        %v1893 = vpop.xlane.xlu0 %1892
        %v1894 = vadd.f32 %v1730, %v1732
        %1895 = vadd.xlane.f32.xlu0 %v1894
        %v1896 = vpop.xlane.xlu0 %1895
        %v1897 = vadd.f32 %v1734, %v1736
        %1898 = vadd.xlane.f32.xlu0 %v1897
        %v1899 = vpop.xlane.xlu0 %1898
        %v1900 = vadd.f32 %v1738, %v1740
        %1901 = vadd.xlane.f32.xlu0 %v1900
        %v1902 = vpop.xlane.xlu0 %1901
        %v1903 = vadd.f32 %v1742, %v1744
        %1904 = vadd.xlane.f32.xlu0 %v1903
        %v1905 = vpop.xlane.xlu0 %1904
        %v1906 = vadd.f32 %v1746, %v1748
        %1907 = vadd.xlane.f32.xlu0 %v1906
        %v1908 = vpop.xlane.xlu0 %1907
        %v1909 = vadd.f32 %v1781, %v1815
        %v1910 = vadd.f32 %v1782, %v1818
        %v1911 = vadd.f32 %v1783, %v1821
        %v1912 = vadd.f32 %v1784, %v1824
        %v1913 = vadd.f32 %v1785, %v1827
        %v1914 = vadd.f32 %v1786, %v1830
        %v1915 = vadd.f32 %v1787, %v1833
        %v1916 = vadd.f32 %v1788, %v1836
        %v1917 = vadd.f32 %v1789, %v1839
        %v1918 = vadd.f32 %v1790, %v1842
        %v1919 = vadd.f32 %v1791, %v1845
        %v1920 = vadd.f32 %v1792, %v1848
        %v1921 = vadd.f32 %v1793, %v1851
        %v1922 = vadd.f32 %v1794, %v1854
        %v1923 = vadd.f32 %v1795, %v1857
        %v1924 = vadd.f32 %v1796, %v1860
        %v1925 = vadd.f32 %v1797, %v1863
        %v1926 = vadd.f32 %v1798, %v1866
        %v1927 = vadd.f32 %v1799, %v1869
        %v1928 = vadd.f32 %v1800, %v1872
        %v1929 = vadd.f32 %v1801, %v1875
        %v1930 = vadd.f32 %v1802, %v1878
        %v1931 = vadd.f32 %v1803, %v1881
        %v1932 = vadd.f32 %v1804, %v1884
        %v1933 = vadd.f32 %v1805, %v1887
        %v1934 = vadd.f32 %v1806, %v1890
        %v1935 = vadd.f32 %v1807, %v1893
        %v1936 = vadd.f32 %v1808, %v1896
        %v1937 = vadd.f32 %v1809, %v1899
        %v1938 = vadd.f32 %v1810, %v1902
        %v1939 = vadd.f32 %v1811, %v1905
        %v1940 = vadd.f32 %v1812, %v1908
        %vm1941 = vcmask 7168
        %1942 = vst.msk [vmem:[#allocation4] sm:$0xff] %vm1941, %v1909
        %1943 = vst.msk [vmem:[#allocation4 + $0x8] sm:$0xff] %vm1941, %v1910
        %1944 = vst.msk [vmem:[#allocation4 + $0x10] sm:$0xff] %vm1941, %v1911
        %1945 = vst.msk [vmem:[#allocation4 + $0x18] sm:$0xff] %vm1941, %v1912
        %1946 = vst.msk [vmem:[#allocation4 + $0x20] sm:$0xff] %vm1941, %v1913
        %1947 = vst.msk [vmem:[#allocation4 + $0x28] sm:$0xff] %vm1941, %v1914
        %1948 = vst.msk [vmem:[#allocation4 + $0x30] sm:$0xff] %vm1941, %v1915
        %1949 = vst.msk [vmem:[#allocation4 + $0x38] sm:$0xff] %vm1941, %v1916
        %1950 = vst.msk [vmem:[#allocation4 + $0x40] sm:$0xff] %vm1941, %v1917
        %1951 = vst.msk [vmem:[#allocation4 + $0x48] sm:$0xff] %vm1941, %v1918
        %1952 = vst.msk [vmem:[#allocation4 + $0x50] sm:$0xff] %vm1941, %v1919
        %1953 = vst.msk [vmem:[#allocation4 + $0x58] sm:$0xff] %vm1941, %v1920
        %1954 = vst.msk [vmem:[#allocation4 + $0x60] sm:$0xff] %vm1941, %v1921
        %1955 = vst.msk [vmem:[#allocation4 + $0x68] sm:$0xff] %vm1941, %v1922
        %1956 = vst.msk [vmem:[#allocation4 + $0x70] sm:$0xff] %vm1941, %v1923
        %1957 = vst.msk [vmem:[#allocation4 + $0x78] sm:$0xff] %vm1941, %v1924
        %1958 = vst.msk [vmem:[#allocation4 + $0x80] sm:$0xff] %vm1941, %v1925
        %1959 = vst.msk [vmem:[#allocation4 + $0x88] sm:$0xff] %vm1941, %v1926
        %1960 = vst.msk [vmem:[#allocation4 + $0x90] sm:$0xff] %vm1941, %v1927
        %1961 = vst.msk [vmem:[#allocation4 + $0x98] sm:$0xff] %vm1941, %v1928
        %1962 = vst.msk [vmem:[#allocation4 + $0xa0] sm:$0xff] %vm1941, %v1929
        %1963 = vst.msk [vmem:[#allocation4 + $0xa8] sm:$0xff] %vm1941, %v1930
        %1964 = vst.msk [vmem:[#allocation4 + $0xb0] sm:$0xff] %vm1941, %v1931
        %1965 = vst.msk [vmem:[#allocation4 + $0xb8] sm:$0xff] %vm1941, %v1932
        %1966 = vst.msk [vmem:[#allocation4 + $0xc0] sm:$0xff] %vm1941, %v1933
        %1967 = vst.msk [vmem:[#allocation4 + $0xc8] sm:$0xff] %vm1941, %v1934
        %1968 = vst.msk [vmem:[#allocation4 + $0xd0] sm:$0xff] %vm1941, %v1935
        %1969 = vst.msk [vmem:[#allocation4 + $0xd8] sm:$0xff] %vm1941, %v1936
        %1970 = vst.msk [vmem:[#allocation4 + $0xe0] sm:$0xff] %vm1941, %v1937
        %1971 = vst.msk [vmem:[#allocation4 + $0xe8] sm:$0xff] %vm1941, %v1938
        %1972 = vst.msk [vmem:[#allocation4 + $0xf0] sm:$0xff] %vm1941, %v1939
        %1973 = vst.msk [vmem:[#allocation4 + $0xf8] sm:$0xff] %vm1941, %v1940
        %v1974 = vld [vmem:[#allocation5] sm:$0xff]
        %v1975 = vld [vmem:[#allocation5 + $0x8] sm:$0xff]
        %v1976 = vld [vmem:[#allocation5 + $0x10] sm:$0xff]
        %v1977 = vld [vmem:[#allocation5 + $0x18] sm:$0xff]
        %v1978 = vld [vmem:[#allocation5 + $0x20] sm:$0xff]
        %v1979 = vld [vmem:[#allocation5 + $0x28] sm:$0xff]
        %v1980 = vld [vmem:[#allocation5 + $0x30] sm:$0xff]
        %v1981 = vld [vmem:[#allocation5 + $0x38] sm:$0xff]
        %v1982 = vld [vmem:[#allocation5 + $0x40] sm:$0xff]
        %v1983 = vld [vmem:[#allocation5 + $0x48] sm:$0xff]
        %v1984 = vld [vmem:[#allocation5 + $0x50] sm:$0xff]
        %v1985 = vld [vmem:[#allocation5 + $0x58] sm:$0xff]
        %v1986 = vld [vmem:[#allocation5 + $0x60] sm:$0xff]
        %v1987 = vld [vmem:[#allocation5 + $0x68] sm:$0xff]
        %v1988 = vld [vmem:[#allocation5 + $0x70] sm:$0xff]
        %v1989 = vld [vmem:[#allocation5 + $0x78] sm:$0xff]
        %v1990 = vld [vmem:[#allocation5 + $0x80] sm:$0xff]
        %v1991 = vld [vmem:[#allocation5 + $0x88] sm:$0xff]
        %v1992 = vld [vmem:[#allocation5 + $0x90] sm:$0xff]
        %v1993 = vld [vmem:[#allocation5 + $0x98] sm:$0xff]
        %v1994 = vld [vmem:[#allocation5 + $0xa0] sm:$0xff]
        %v1995 = vld [vmem:[#allocation5 + $0xa8] sm:$0xff]
        %v1996 = vld [vmem:[#allocation5 + $0xb0] sm:$0xff]
        %v1997 = vld [vmem:[#allocation5 + $0xb8] sm:$0xff]
        %v1998 = vld [vmem:[#allocation5 + $0xc0] sm:$0xff]
        %v1999 = vld [vmem:[#allocation5 + $0xc8] sm:$0xff]
        %v2000 = vld [vmem:[#allocation5 + $0xd0] sm:$0xff]
        %v2001 = vld [vmem:[#allocation5 + $0xd8] sm:$0xff]
        %v2002 = vld [vmem:[#allocation5 + $0xe0] sm:$0xff]
        %v2003 = vld [vmem:[#allocation5 + $0xe8] sm:$0xff]
        %v2004 = vld [vmem:[#allocation5 + $0xf0] sm:$0xff]
        %v2005 = vld [vmem:[#allocation5 + $0xf8] sm:$0xff]
        %2007 = vset.pattern.permute.xlu0 0
        %2008 = vperm.xlu0 %2007, %v1334
        %v2009 = vpop.permute.xlu0 %2008
        %2012 = vset.pattern.permute.xlu0 0
        %2013 = vperm.xlu0 %2012, %v1336
        %v2014 = vpop.permute.xlu0 %2013
        %2017 = vset.pattern.permute.xlu0 0
        %2018 = vperm.xlu0 %2017, %v1338
        %v2019 = vpop.permute.xlu0 %2018
        %2022 = vset.pattern.permute.xlu0 0
        %2023 = vperm.xlu0 %2022, %v1340
        %v2024 = vpop.permute.xlu0 %2023
        %2027 = vset.pattern.permute.xlu0 0
        %2028 = vperm.xlu0 %2027, %v1342
        %v2029 = vpop.permute.xlu0 %2028
        %2032 = vset.pattern.permute.xlu0 0
        %2033 = vperm.xlu0 %2032, %v1344
        %v2034 = vpop.permute.xlu0 %2033
        %2037 = vset.pattern.permute.xlu0 0
        %2038 = vperm.xlu0 %2037, %v1346
        %v2039 = vpop.permute.xlu0 %2038
        %2042 = vset.pattern.permute.xlu0 0
        %2043 = vperm.xlu0 %2042, %v1348
        %v2044 = vpop.permute.xlu0 %2043
        %2047 = vset.pattern.permute.xlu0 0
        %2048 = vperm.xlu0 %2047, %v1350
        %v2049 = vpop.permute.xlu0 %2048
        %2052 = vset.pattern.permute.xlu0 0
        %2053 = vperm.xlu0 %2052, %v1352
        %v2054 = vpop.permute.xlu0 %2053
        %2057 = vset.pattern.permute.xlu0 0
        %2058 = vperm.xlu0 %2057, %v1354
        %v2059 = vpop.permute.xlu0 %2058
        %2062 = vset.pattern.permute.xlu0 0
        %2063 = vperm.xlu0 %2062, %v1356
        %v2064 = vpop.permute.xlu0 %2063
        %2067 = vset.pattern.permute.xlu0 0
        %2068 = vperm.xlu0 %2067, %v1358
        %v2069 = vpop.permute.xlu0 %2068
        %2072 = vset.pattern.permute.xlu0 0
        %2073 = vperm.xlu0 %2072, %v1360
        %v2074 = vpop.permute.xlu0 %2073
        %2077 = vset.pattern.permute.xlu0 0
        %2078 = vperm.xlu0 %2077, %v1362
        %v2079 = vpop.permute.xlu0 %2078
        %2082 = vset.pattern.permute.xlu0 0
        %2083 = vperm.xlu0 %2082, %v1364
        %v2084 = vpop.permute.xlu0 %2083
        %2087 = vset.pattern.permute.xlu0 0
        %2088 = vperm.xlu0 %2087, %v1366
        %v2089 = vpop.permute.xlu0 %2088
        %2092 = vset.pattern.permute.xlu0 0
        %2093 = vperm.xlu0 %2092, %v1368
        %v2094 = vpop.permute.xlu0 %2093
        %2097 = vset.pattern.permute.xlu0 0
        %2098 = vperm.xlu0 %2097, %v1370
        %v2099 = vpop.permute.xlu0 %2098
        %2102 = vset.pattern.permute.xlu0 0
        %2103 = vperm.xlu0 %2102, %v1372
        %v2104 = vpop.permute.xlu0 %2103
        %2107 = vset.pattern.permute.xlu0 0
        %2108 = vperm.xlu0 %2107, %v1374
        %v2109 = vpop.permute.xlu0 %2108
        %2112 = vset.pattern.permute.xlu0 0
        %2113 = vperm.xlu0 %2112, %v1376
        %v2114 = vpop.permute.xlu0 %2113
        %2117 = vset.pattern.permute.xlu0 0
        %2118 = vperm.xlu0 %2117, %v1378
        %v2119 = vpop.permute.xlu0 %2118
        %2122 = vset.pattern.permute.xlu0 0
        %2123 = vperm.xlu0 %2122, %v1380
        %v2124 = vpop.permute.xlu0 %2123
        %2127 = vset.pattern.permute.xlu0 0
        %2128 = vperm.xlu0 %2127, %v1382
        %v2129 = vpop.permute.xlu0 %2128
        %2132 = vset.pattern.permute.xlu0 0
        %2133 = vperm.xlu0 %2132, %v1384
        %v2134 = vpop.permute.xlu0 %2133
        %2137 = vset.pattern.permute.xlu0 0
        %2138 = vperm.xlu0 %2137, %v1386
        %v2139 = vpop.permute.xlu0 %2138
        %2142 = vset.pattern.permute.xlu0 0
        %2143 = vperm.xlu0 %2142, %v1388
        %v2144 = vpop.permute.xlu0 %2143
        %2147 = vset.pattern.permute.xlu0 0
        %2148 = vperm.xlu0 %2147, %v1390
        %v2149 = vpop.permute.xlu0 %2148
        %2152 = vset.pattern.permute.xlu0 0
        %2153 = vperm.xlu0 %2152, %v1392
        %v2154 = vpop.permute.xlu0 %2153
        %2157 = vset.pattern.permute.xlu0 0
        %2158 = vperm.xlu0 %2157, %v1394
        %v2159 = vpop.permute.xlu0 %2158
        %2162 = vset.pattern.permute.xlu0 0
        %2163 = vperm.xlu0 %2162, %v1396
        %v2164 = vpop.permute.xlu0 %2163
        %v2166 = vmul.f32 %v2009, %v1974
        %v2167 = vmul.f32 %v2014, %v1975
        %v2168 = vmul.f32 %v2019, %v1976
        %v2169 = vmul.f32 %v2024, %v1977
        %v2170 = vmul.f32 %v2029, %v1978
        %v2171 = vmul.f32 %v2034, %v1979
        %v2172 = vmul.f32 %v2039, %v1980
        %v2173 = vmul.f32 %v2044, %v1981
        %v2174 = vmul.f32 %v2049, %v1982
        %v2175 = vmul.f32 %v2054, %v1983
        %v2176 = vmul.f32 %v2059, %v1984
        %v2177 = vmul.f32 %v2064, %v1985
        %v2178 = vmul.f32 %v2069, %v1986
        %v2179 = vmul.f32 %v2074, %v1987
        %v2180 = vmul.f32 %v2079, %v1988
        %v2181 = vmul.f32 %v2084, %v1989
        %v2182 = vmul.f32 %v2089, %v1990
        %v2183 = vmul.f32 %v2094, %v1991
        %v2184 = vmul.f32 %v2099, %v1992
        %v2185 = vmul.f32 %v2104, %v1993
        %v2186 = vmul.f32 %v2109, %v1994
        %v2187 = vmul.f32 %v2114, %v1995
        %v2188 = vmul.f32 %v2119, %v1996
        %v2189 = vmul.f32 %v2124, %v1997
        %v2190 = vmul.f32 %v2129, %v1998
        %v2191 = vmul.f32 %v2134, %v1999
        %v2192 = vmul.f32 %v2139, %v2000
        %v2193 = vmul.f32 %v2144, %v2001
        %v2194 = vmul.f32 %v2149, %v2002
        %v2195 = vmul.f32 %v2154, %v2003
        %v2196 = vmul.f32 %v2159, %v2004
        %v2197 = vmul.f32 %v2164, %v2005
        %v2198 = vpack.c.bf16 %v1626, %v1622
        %v2199 = vpack.c.bf16 %v1628, %v1624
        %v2200 = vpack.c.bf16 %v1634, %v1630
        %v2201 = vpack.c.bf16 %v1636, %v1632
        %v2202 = vpack.c.bf16 %v1642, %v1638
        %v2203 = vpack.c.bf16 %v1644, %v1640
        %v2204 = vpack.c.bf16 %v1650, %v1646
        %v2205 = vpack.c.bf16 %v1652, %v1648
        %v2206 = vpack.c.bf16 %v1658, %v1654
        %v2207 = vpack.c.bf16 %v1660, %v1656
        %v2208 = vpack.c.bf16 %v1666, %v1662
        %v2209 = vpack.c.bf16 %v1668, %v1664
        %v2210 = vpack.c.bf16 %v1674, %v1670
        %v2211 = vpack.c.bf16 %v1676, %v1672
        %v2212 = vpack.c.bf16 %v1682, %v1678
        %v2213 = vpack.c.bf16 %v1684, %v1680
        %v2214 = vpack.c.bf16 %v1690, %v1686
        %v2215 = vpack.c.bf16 %v1692, %v1688
        %v2216 = vpack.c.bf16 %v1698, %v1694
        %v2217 = vpack.c.bf16 %v1700, %v1696
        %v2218 = vpack.c.bf16 %v1706, %v1702
        %v2219 = vpack.c.bf16 %v1708, %v1704
        %v2220 = vpack.c.bf16 %v1714, %v1710
        %v2221 = vpack.c.bf16 %v1716, %v1712
        %v2222 = vpack.c.bf16 %v1722, %v1718
        %v2223 = vpack.c.bf16 %v1724, %v1720
        %v2224 = vpack.c.bf16 %v1730, %v1726
        %v2225 = vpack.c.bf16 %v1732, %v1728
        %v2226 = vpack.c.bf16 %v1738, %v1734
        %v2227 = vpack.c.bf16 %v1740, %v1736
        %v2228 = vpack.c.bf16 %v1746, %v1742
        %v2229 = vpack.c.bf16 %v1748, %v1744
        %2230 = vmatprep.subr.bf16.mxu0 0
        %2231 = vmatpush1.bf16.msra.mxu0 %v916
        %2232 = vmatprep.subr.bf16.mxu0 0
        %2233 = vmatpush1.bf16.msra.mxu0 %v917
        %2234 = vmatprep.subr.bf16.mxu0 0
        %2235 = vmatpush1.bf16.msra.mxu0 %v918
        %2236 = vmatprep.subr.bf16.mxu0 0
        %2237 = vmatpush1.bf16.msra.mxu0 %v919
        %2238 = vmatprep.subr.bf16.mxu0 0
        %2239 = vmatpush1.bf16.msra.mxu0 %v920
        %2240 = vmatprep.subr.bf16.mxu0 0
        %2241 = vmatpush1.bf16.msra.mxu0 %v921
        %2242 = vmatprep.subr.bf16.mxu0 0
        %2243 = vmatpush1.bf16.msra.mxu0 %v922
        %2244 = vmatprep.subr.bf16.mxu0 0
        %2245 = vmatpush1.bf16.msra.mxu0 %v923
        %2246 = vmatprep.subr.bf16.mxu0 0
        %2247 = vmatpush1.bf16.msra.mxu0 %v924
        %2248 = vmatprep.subr.bf16.mxu0 0
        %2249 = vmatpush1.bf16.msra.mxu0 %v925
        %2250 = vmatprep.subr.bf16.mxu0 0
        %2251 = vmatpush1.bf16.msra.mxu0 %v926
        %2252 = vmatprep.subr.bf16.mxu0 0
        %2253 = vmatpush1.bf16.msra.mxu0 %v927
        %2254 = vmatprep.subr.bf16.mxu0 0
        %2255 = vmatpush1.bf16.msra.mxu0 %v928
        %2256 = vmatprep.subr.bf16.mxu0 0
        %2257 = vmatpush1.bf16.msra.mxu0 %v929
        %2258 = vmatprep.subr.bf16.mxu0 0
        %2259 = vmatpush1.bf16.msra.mxu0 %v930
        %2260 = vmatprep.subr.bf16.mxu0 0
        %2261 = vmatpush1.bf16.msra.mxu0 %v931
        %2262 = vmatprep.mubr.bf16.mxu0 %v2199
        %2263 = vmatmul.mubr.bf16.gmra.mrb[0].mxu0 %v2198
        %v2264 = vpop.f32.mrb[0].mxu0
        %v2265 = vadd.f32 0.0, %v2264
        %v2266 = vpop.f32.mrb[0].mxu0
        %v2267 = vpop.f32.mrb[0].mxu0
        %v2268 = vadd.f32 0.0, %v2267
        %v2269 = vpop.f32.mrb[0].mxu0
        %2270 = vmatprep.mubr.bf16.mxu0 %v2201
        %2271 = vmatmul.mubr.bf16.gmra.mrb[0].mxu0 %v2200
        %v2272 = vpop.f32.mrb[0].mxu0
        %v2273 = vadd.f32 0.0, %v2272
        %v2274 = vpop.f32.mrb[0].mxu0
        %v2275 = vpop.f32.mrb[0].mxu0
        %v2276 = vadd.f32 0.0, %v2275
        %v2277 = vpop.f32.mrb[0].mxu0
        %2278 = vmatprep.mubr.bf16.mxu0 %v2203
        %2279 = vmatmul.mubr.bf16.gmra.mrb[0].mxu0 %v2202
        %v2280 = vpop.f32.mrb[0].mxu0
        %v2281 = vadd.f32 0.0, %v2280
        %v2282 = vpop.f32.mrb[0].mxu0
        %v2283 = vpop.f32.mrb[0].mxu0
        %v2284 = vadd.f32 0.0, %v2283
        %v2285 = vpop.f32.mrb[0].mxu0
        %2286 = vmatprep.mubr.bf16.mxu0 %v2205
        %2287 = vmatmul.mubr.bf16.gmra.mrb[0].mxu0 %v2204
        %v2288 = vpop.f32.mrb[0].mxu0
        %v2289 = vadd.f32 0.0, %v2288
        %v2290 = vpop.f32.mrb[0].mxu0
        %v2291 = vpop.f32.mrb[0].mxu0
        %v2292 = vadd.f32 0.0, %v2291
        %v2293 = vpop.f32.mrb[0].mxu0
        %2294 = vmatprep.mubr.bf16.mxu0 %v2207
        %2295 = vmatmul.mubr.bf16.gmra.mrb[0].mxu0 %v2206
        %v2296 = vpop.f32.mrb[0].mxu0
        %v2297 = vadd.f32 0.0, %v2296
        %v2298 = vpop.f32.mrb[0].mxu0
        %v2299 = vpop.f32.mrb[0].mxu0
        %v2300 = vadd.f32 0.0, %v2299
        %v2301 = vpop.f32.mrb[0].mxu0
        %2302 = vmatprep.mubr.bf16.mxu0 %v2209
        %2303 = vmatmul.mubr.bf16.gmra.mrb[0].mxu0 %v2208
        %v2304 = vpop.f32.mrb[0].mxu0
        %v2305 = vadd.f32 0.0, %v2304
        %v2306 = vpop.f32.mrb[0].mxu0
        %v2307 = vpop.f32.mrb[0].mxu0
        %v2308 = vadd.f32 0.0, %v2307
        %v2309 = vpop.f32.mrb[0].mxu0
        %2310 = vmatprep.mubr.bf16.mxu0 %v2211
        %2311 = vmatmul.mubr.bf16.gmra.mrb[0].mxu0 %v2210
        %v2312 = vpop.f32.mrb[0].mxu0
        %v2313 = vadd.f32 0.0, %v2312
        %v2314 = vpop.f32.mrb[0].mxu0
        %v2315 = vpop.f32.mrb[0].mxu0
        %v2316 = vadd.f32 0.0, %v2315
        %v2317 = vpop.f32.mrb[0].mxu0
        %2318 = vmatprep.mubr.bf16.mxu0 %v2213
        %2319 = vmatmul.mubr.bf16.gmra.mrb[0].mxu0 %v2212
        %v2320 = vpop.f32.mrb[0].mxu0
        %v2321 = vadd.f32 0.0, %v2320
        %v2322 = vpop.f32.mrb[0].mxu0
        %v2323 = vpop.f32.mrb[0].mxu0
        %v2324 = vadd.f32 0.0, %v2323
        %v2325 = vpop.f32.mrb[0].mxu0
        %2326 = vmatprep.mubr.bf16.mxu0 %v2215
        %2327 = vmatmul.mubr.bf16.gmra.mrb[0].mxu0 %v2214
        %v2328 = vpop.f32.mrb[0].mxu0
        %v2329 = vadd.f32 0.0, %v2328
        %v2330 = vpop.f32.mrb[0].mxu0
        %v2331 = vpop.f32.mrb[0].mxu0
        %v2332 = vadd.f32 0.0, %v2331
        %v2333 = vpop.f32.mrb[0].mxu0
        %2334 = vmatprep.mubr.bf16.mxu0 %v2217
        %2335 = vmatmul.mubr.bf16.gmra.mrb[0].mxu0 %v2216
        %v2336 = vpop.f32.mrb[0].mxu0
        %v2337 = vadd.f32 0.0, %v2336
        %v2338 = vpop.f32.mrb[0].mxu0
        %v2339 = vpop.f32.mrb[0].mxu0
        %v2340 = vadd.f32 0.0, %v2339
        %v2341 = vpop.f32.mrb[0].mxu0
        %2342 = vmatprep.mubr.bf16.mxu0 %v2219
        %2343 = vmatmul.mubr.bf16.gmra.mrb[0].mxu0 %v2218
        %v2344 = vpop.f32.mrb[0].mxu0
        %v2345 = vadd.f32 0.0, %v2344
        %v2346 = vpop.f32.mrb[0].mxu0
        %v2347 = vpop.f32.mrb[0].mxu0
        %v2348 = vadd.f32 0.0, %v2347
        %v2349 = vpop.f32.mrb[0].mxu0
        %2350 = vmatprep.mubr.bf16.mxu0 %v2221
        %2351 = vmatmul.mubr.bf16.gmra.mrb[0].mxu0 %v2220
        %v2352 = vpop.f32.mrb[0].mxu0
        %v2353 = vadd.f32 0.0, %v2352
        %v2354 = vpop.f32.mrb[0].mxu0
        %v2355 = vpop.f32.mrb[0].mxu0
        %v2356 = vadd.f32 0.0, %v2355
        %v2357 = vpop.f32.mrb[0].mxu0
        %2358 = vmatprep.mubr.bf16.mxu0 %v2223
        %2359 = vmatmul.mubr.bf16.gmra.mrb[0].mxu0 %v2222
        %v2360 = vpop.f32.mrb[0].mxu0
        %v2361 = vadd.f32 0.0, %v2360
        %v2362 = vpop.f32.mrb[0].mxu0
        %v2363 = vpop.f32.mrb[0].mxu0
        %v2364 = vadd.f32 0.0, %v2363
        %v2365 = vpop.f32.mrb[0].mxu0
        %2366 = vmatprep.mubr.bf16.mxu0 %v2225
        %2367 = vmatmul.mubr.bf16.gmra.mrb[0].mxu0 %v2224
        %v2368 = vpop.f32.mrb[0].mxu0
        %v2369 = vadd.f32 0.0, %v2368
        %v2370 = vpop.f32.mrb[0].mxu0
        %v2371 = vpop.f32.mrb[0].mxu0
        %v2372 = vadd.f32 0.0, %v2371
        %v2373 = vpop.f32.mrb[0].mxu0
        %2374 = vmatprep.mubr.bf16.mxu0 %v2227
        %2375 = vmatmul.mubr.bf16.gmra.mrb[0].mxu0 %v2226
        %v2376 = vpop.f32.mrb[0].mxu0
        %v2377 = vadd.f32 0.0, %v2376
        %v2378 = vpop.f32.mrb[0].mxu0
        %v2379 = vpop.f32.mrb[0].mxu0
        %v2380 = vadd.f32 0.0, %v2379
        %v2381 = vpop.f32.mrb[0].mxu0
        %2382 = vmatprep.mubr.bf16.mxu0 %v2229
        %2383 = vmatmul.mubr.bf16.gmra.mrb[0].mxu0 %v2228
        %v2384 = vpop.f32.mrb[0].mxu0
        %v2385 = vadd.f32 0.0, %v2384
        %v2386 = vpop.f32.mrb[0].mxu0
        %v2387 = vpop.f32.mrb[0].mxu0
        %v2388 = vadd.f32 0.0, %v2387
        %v2389 = vpop.f32.mrb[0].mxu0
        %2390 = vdwg.mxu0
        %v2391 = vadd.f32 %v2166, %v2265
        %v2392 = vadd.f32 %v2167, %v2268
        %v2393 = vadd.f32 %v2168, %v2273
        %v2394 = vadd.f32 %v2169, %v2276
        %v2395 = vadd.f32 %v2170, %v2281
        %v2396 = vadd.f32 %v2171, %v2284
        %v2397 = vadd.f32 %v2172, %v2289
        %v2398 = vadd.f32 %v2173, %v2292
        %v2399 = vadd.f32 %v2174, %v2297
        %v2400 = vadd.f32 %v2175, %v2300
        %v2401 = vadd.f32 %v2176, %v2305
        %v2402 = vadd.f32 %v2177, %v2308
        %v2403 = vadd.f32 %v2178, %v2313
        %v2404 = vadd.f32 %v2179, %v2316
        %v2405 = vadd.f32 %v2180, %v2321
        %v2406 = vadd.f32 %v2181, %v2324
        %v2407 = vadd.f32 %v2182, %v2329
        %v2408 = vadd.f32 %v2183, %v2332
        %v2409 = vadd.f32 %v2184, %v2337
        %v2410 = vadd.f32 %v2185, %v2340
        %v2411 = vadd.f32 %v2186, %v2345
        %v2412 = vadd.f32 %v2187, %v2348
        %v2413 = vadd.f32 %v2188, %v2353
        %v2414 = vadd.f32 %v2189, %v2356
        %v2415 = vadd.f32 %v2190, %v2361
        %v2416 = vadd.f32 %v2191, %v2364
        %v2417 = vadd.f32 %v2192, %v2369
        %v2418 = vadd.f32 %v2193, %v2372
        %v2419 = vadd.f32 %v2194, %v2377
        %v2420 = vadd.f32 %v2195, %v2380
        %v2421 = vadd.f32 %v2196, %v2385
        %v2422 = vadd.f32 %v2197, %v2388
        %2423 = vst [vmem:[#allocation5] sm:$0xff] %v2391
        %2424 = vst [vmem:[#allocation5 + $0x8] sm:$0xff] %v2392
        %2425 = vst [vmem:[#allocation5 + $0x10] sm:$0xff] %v2393
        %2426 = vst [vmem:[#allocation5 + $0x18] sm:$0xff] %v2394
        %2427 = vst [vmem:[#allocation5 + $0x20] sm:$0xff] %v2395
        %2428 = vst [vmem:[#allocation5 + $0x28] sm:$0xff] %v2396
        %2429 = vst [vmem:[#allocation5 + $0x30] sm:$0xff] %v2397
        %2430 = vst [vmem:[#allocation5 + $0x38] sm:$0xff] %v2398
        %2431 = vst [vmem:[#allocation5 + $0x40] sm:$0xff] %v2399
        %2432 = vst [vmem:[#allocation5 + $0x48] sm:$0xff] %v2400
        %2433 = vst [vmem:[#allocation5 + $0x50] sm:$0xff] %v2401
        %2434 = vst [vmem:[#allocation5 + $0x58] sm:$0xff] %v2402
        %2435 = vst [vmem:[#allocation5 + $0x60] sm:$0xff] %v2403
        %2436 = vst [vmem:[#allocation5 + $0x68] sm:$0xff] %v2404
        %2437 = vst [vmem:[#allocation5 + $0x70] sm:$0xff] %v2405
        %2438 = vst [vmem:[#allocation5 + $0x78] sm:$0xff] %v2406
        %2439 = vst [vmem:[#allocation5 + $0x80] sm:$0xff] %v2407
        %2440 = vst [vmem:[#allocation5 + $0x88] sm:$0xff] %v2408
        %2441 = vst [vmem:[#allocation5 + $0x90] sm:$0xff] %v2409
        %2442 = vst [vmem:[#allocation5 + $0x98] sm:$0xff] %v2410
        %2443 = vst [vmem:[#allocation5 + $0xa0] sm:$0xff] %v2411
        %2444 = vst [vmem:[#allocation5 + $0xa8] sm:$0xff] %v2412
        %2445 = vst [vmem:[#allocation5 + $0xb0] sm:$0xff] %v2413
        %2446 = vst [vmem:[#allocation5 + $0xb8] sm:$0xff] %v2414
        %2447 = vst [vmem:[#allocation5 + $0xc0] sm:$0xff] %v2415
        %2448 = vst [vmem:[#allocation5 + $0xc8] sm:$0xff] %v2416
        %2449 = vst [vmem:[#allocation5 + $0xd0] sm:$0xff] %v2417
        %2450 = vst [vmem:[#allocation5 + $0xd8] sm:$0xff] %v2418
        %2451 = vst [vmem:[#allocation5 + $0xe0] sm:$0xff] %v2419
        %2452 = vst [vmem:[#allocation5 + $0xe8] sm:$0xff] %v2420
        %2453 = vst [vmem:[#allocation5 + $0xf0] sm:$0xff] %v2421
        %2454 = vst [vmem:[#allocation5 + $0xf8] sm:$0xff] %v2422
        %2455 = vst.msk [vmem:[#allocation3] sm:$0xff] %vm1941, %v1269
        %2456 = vst.msk [vmem:[#allocation3 + $0x8] sm:$0xff] %vm1941, %v1270
        %2457 = vst.msk [vmem:[#allocation3 + $0x10] sm:$0xff] %vm1941, %v1271
        %2458 = vst.msk [vmem:[#allocation3 + $0x18] sm:$0xff] %vm1941, %v1272
        %2459 = vst.msk [vmem:[#allocation3 + $0x20] sm:$0xff] %vm1941, %v1273
        %2460 = vst.msk [vmem:[#allocation3 + $0x28] sm:$0xff] %vm1941, %v1274
        %2461 = vst.msk [vmem:[#allocation3 + $0x30] sm:$0xff] %vm1941, %v1275
        %2462 = vst.msk [vmem:[#allocation3 + $0x38] sm:$0xff] %vm1941, %v1276
        %2463 = vst.msk [vmem:[#allocation3 + $0x40] sm:$0xff] %vm1941, %v1277
        %2464 = vst.msk [vmem:[#allocation3 + $0x48] sm:$0xff] %vm1941, %v1278
        %2465 = vst.msk [vmem:[#allocation3 + $0x50] sm:$0xff] %vm1941, %v1279
        %2466 = vst.msk [vmem:[#allocation3 + $0x58] sm:$0xff] %vm1941, %v1280
        %2467 = vst.msk [vmem:[#allocation3 + $0x60] sm:$0xff] %vm1941, %v1281
        %2468 = vst.msk [vmem:[#allocation3 + $0x68] sm:$0xff] %vm1941, %v1282
        %2469 = vst.msk [vmem:[#allocation3 + $0x70] sm:$0xff] %vm1941, %v1283
        %2470 = vst.msk [vmem:[#allocation3 + $0x78] sm:$0xff] %vm1941, %v1284
        %2471 = vst.msk [vmem:[#allocation3 + $0x80] sm:$0xff] %vm1941, %v1285
        %2472 = vst.msk [vmem:[#allocation3 + $0x88] sm:$0xff] %vm1941, %v1286
        %2473 = vst.msk [vmem:[#allocation3 + $0x90] sm:$0xff] %vm1941, %v1287
        %2474 = vst.msk [vmem:[#allocation3 + $0x98] sm:$0xff] %vm1941, %v1288
        %2475 = vst.msk [vmem:[#allocation3 + $0xa0] sm:$0xff] %vm1941, %v1289
        %2476 = vst.msk [vmem:[#allocation3 + $0xa8] sm:$0xff] %vm1941, %v1290
        %2477 = vst.msk [vmem:[#allocation3 + $0xb0] sm:$0xff] %vm1941, %v1291
        %2478 = vst.msk [vmem:[#allocation3 + $0xb8] sm:$0xff] %vm1941, %v1292
        %2479 = vst.msk [vmem:[#allocation3 + $0xc0] sm:$0xff] %vm1941, %v1293
        %2480 = vst.msk [vmem:[#allocation3 + $0xc8] sm:$0xff] %vm1941, %v1294
        %2481 = vst.msk [vmem:[#allocation3 + $0xd0] sm:$0xff] %vm1941, %v1295
        %2482 = vst.msk [vmem:[#allocation3 + $0xd8] sm:$0xff] %vm1941, %v1296
        %2483 = vst.msk [vmem:[#allocation3 + $0xe0] sm:$0xff] %vm1941, %v1297
        %2484 = vst.msk [vmem:[#allocation3 + $0xe8] sm:$0xff] %vm1941, %v1298
        %2485 = vst.msk [vmem:[#allocation3 + $0xf0] sm:$0xff] %vm1941, %v1299
        %2486 = vst.msk [vmem:[#allocation3 + $0xf8] sm:$0xff] %vm1941, %v1300
        // Predicated region
        $region57: #{tpu_custom_call.1} parent=35 // pred_check
          %p2487 = pneg %p318
        $region58: #{tpu_custom_call.1} parent=35 // pred_check_branch
          %2489 = sbr.rel (%p2487) target = $region60
        $region59: #{tpu_custom_call.1} parent=35 // pred_region
          %v2490 = vld [vmem:[#allocation4] sm:$0xff]
          %v2491 = vld [vmem:[#allocation4 + $0x8] sm:$0xff]
          %v2492 = vld [vmem:[#allocation4 + $0x10] sm:$0xff]
          %v2493 = vld [vmem:[#allocation4 + $0x18] sm:$0xff]
          %v2494 = vld [vmem:[#allocation4 + $0x20] sm:$0xff]
          %v2495 = vld [vmem:[#allocation4 + $0x28] sm:$0xff]
          %v2496 = vld [vmem:[#allocation4 + $0x30] sm:$0xff]
          %v2497 = vld [vmem:[#allocation4 + $0x38] sm:$0xff]
          %v2498 = vld [vmem:[#allocation4 + $0x40] sm:$0xff]
          %v2499 = vld [vmem:[#allocation4 + $0x48] sm:$0xff]
          %v2500 = vld [vmem:[#allocation4 + $0x50] sm:$0xff]
          %v2501 = vld [vmem:[#allocation4 + $0x58] sm:$0xff]
          %v2502 = vld [vmem:[#allocation4 + $0x60] sm:$0xff]
          %v2503 = vld [vmem:[#allocation4 + $0x68] sm:$0xff]
          %v2504 = vld [vmem:[#allocation4 + $0x70] sm:$0xff]
          %v2505 = vld [vmem:[#allocation4 + $0x78] sm:$0xff]
          %v2506 = vld [vmem:[#allocation4 + $0x80] sm:$0xff]
          %v2507 = vld [vmem:[#allocation4 + $0x88] sm:$0xff]
          %v2508 = vld [vmem:[#allocation4 + $0x90] sm:$0xff]
          %v2509 = vld [vmem:[#allocation4 + $0x98] sm:$0xff]
          %v2510 = vld [vmem:[#allocation4 + $0xa0] sm:$0xff]
          %v2511 = vld [vmem:[#allocation4 + $0xa8] sm:$0xff]
          %v2512 = vld [vmem:[#allocation4 + $0xb0] sm:$0xff]
          %v2513 = vld [vmem:[#allocation4 + $0xb8] sm:$0xff]
          %v2514 = vld [vmem:[#allocation4 + $0xc0] sm:$0xff]
          %v2515 = vld [vmem:[#allocation4 + $0xc8] sm:$0xff]
          %v2516 = vld [vmem:[#allocation4 + $0xd0] sm:$0xff]
          %v2517 = vld [vmem:[#allocation4 + $0xd8] sm:$0xff]
          %v2518 = vld [vmem:[#allocation4 + $0xe0] sm:$0xff]
          %v2519 = vld [vmem:[#allocation4 + $0xe8] sm:$0xff]
          %v2520 = vld [vmem:[#allocation4 + $0xf0] sm:$0xff]
          %v2521 = vld [vmem:[#allocation4 + $0xf8] sm:$0xff]
          %v2522 = vrcp.pop %v2490
          %v2523 = vrcp.pop %v2491
          %v2524 = vrcp.pop %v2492
          %v2525 = vrcp.pop %v2493
          %v2526 = vrcp.pop %v2494
          %v2527 = vrcp.pop %v2495
          %v2528 = vrcp.pop %v2496
          %v2529 = vrcp.pop %v2497
          %v2530 = vrcp.pop %v2498
          %v2531 = vrcp.pop %v2499
          %v2532 = vrcp.pop %v2500
          %v2533 = vrcp.pop %v2501
          %v2534 = vrcp.pop %v2502
          %v2535 = vrcp.pop %v2503
          %v2536 = vrcp.pop %v2504
          %v2537 = vrcp.pop %v2505
          %v2538 = vrcp.pop %v2506
          %v2539 = vrcp.pop %v2507
          %v2540 = vrcp.pop %v2508
          %v2541 = vrcp.pop %v2509
          %v2542 = vrcp.pop %v2510
          %v2543 = vrcp.pop %v2511
          %v2544 = vrcp.pop %v2512
          %v2545 = vrcp.pop %v2513
          %v2546 = vrcp.pop %v2514
          %v2547 = vrcp.pop %v2515
          %v2548 = vrcp.pop %v2516
          %v2549 = vrcp.pop %v2517
          %v2550 = vrcp.pop %v2518
          %v2551 = vrcp.pop %v2519
          %v2552 = vrcp.pop %v2520
          %v2553 = vrcp.pop %v2521
          %v2554 = vld [vmem:[#allocation5] sm:$0xff]
          %v2555 = vld [vmem:[#allocation5 + $0x8] sm:$0xff]
          %v2556 = vld [vmem:[#allocation5 + $0x10] sm:$0xff]
          %v2557 = vld [vmem:[#allocation5 + $0x18] sm:$0xff]
          %v2558 = vld [vmem:[#allocation5 + $0x20] sm:$0xff]
          %v2559 = vld [vmem:[#allocation5 + $0x28] sm:$0xff]
          %v2560 = vld [vmem:[#allocation5 + $0x30] sm:$0xff]
          %v2561 = vld [vmem:[#allocation5 + $0x38] sm:$0xff]
          %v2562 = vld [vmem:[#allocation5 + $0x40] sm:$0xff]
          %v2563 = vld [vmem:[#allocation5 + $0x48] sm:$0xff]
          %v2564 = vld [vmem:[#allocation5 + $0x50] sm:$0xff]
          %v2565 = vld [vmem:[#allocation5 + $0x58] sm:$0xff]
          %v2566 = vld [vmem:[#allocation5 + $0x60] sm:$0xff]
          %v2567 = vld [vmem:[#allocation5 + $0x68] sm:$0xff]
          %v2568 = vld [vmem:[#allocation5 + $0x70] sm:$0xff]
          %v2569 = vld [vmem:[#allocation5 + $0x78] sm:$0xff]
          %v2570 = vld [vmem:[#allocation5 + $0x80] sm:$0xff]
          %v2571 = vld [vmem:[#allocation5 + $0x88] sm:$0xff]
          %v2572 = vld [vmem:[#allocation5 + $0x90] sm:$0xff]
          %v2573 = vld [vmem:[#allocation5 + $0x98] sm:$0xff]
          %v2574 = vld [vmem:[#allocation5 + $0xa0] sm:$0xff]
          %v2575 = vld [vmem:[#allocation5 + $0xa8] sm:$0xff]
          %v2576 = vld [vmem:[#allocation5 + $0xb0] sm:$0xff]
          %v2577 = vld [vmem:[#allocation5 + $0xb8] sm:$0xff]
          %v2578 = vld [vmem:[#allocation5 + $0xc0] sm:$0xff]
          %v2579 = vld [vmem:[#allocation5 + $0xc8] sm:$0xff]
          %v2580 = vld [vmem:[#allocation5 + $0xd0] sm:$0xff]
          %v2581 = vld [vmem:[#allocation5 + $0xd8] sm:$0xff]
          %v2582 = vld [vmem:[#allocation5 + $0xe0] sm:$0xff]
          %v2583 = vld [vmem:[#allocation5 + $0xe8] sm:$0xff]
          %v2584 = vld [vmem:[#allocation5 + $0xf0] sm:$0xff]
          %v2585 = vld [vmem:[#allocation5 + $0xf8] sm:$0xff]
          %2587 = vset.pattern.permute.xlu0 0
          %2588 = vperm.xlu0 %2587, %v2522
          %v2589 = vpop.permute.xlu0 %2588
          %2592 = vset.pattern.permute.xlu0 0
          %2593 = vperm.xlu0 %2592, %v2523
          %v2594 = vpop.permute.xlu0 %2593
          %2597 = vset.pattern.permute.xlu0 0
          %2598 = vperm.xlu0 %2597, %v2524
          %v2599 = vpop.permute.xlu0 %2598
          %2602 = vset.pattern.permute.xlu0 0
          %2603 = vperm.xlu0 %2602, %v2525
          %v2604 = vpop.permute.xlu0 %2603
          %2607 = vset.pattern.permute.xlu0 0
          %2608 = vperm.xlu0 %2607, %v2526
          %v2609 = vpop.permute.xlu0 %2608
          %2612 = vset.pattern.permute.xlu0 0
          %2613 = vperm.xlu0 %2612, %v2527
          %v2614 = vpop.permute.xlu0 %2613
          %2617 = vset.pattern.permute.xlu0 0
          %2618 = vperm.xlu0 %2617, %v2528
          %v2619 = vpop.permute.xlu0 %2618
          %2622 = vset.pattern.permute.xlu0 0
          %2623 = vperm.xlu0 %2622, %v2529
          %v2624 = vpop.permute.xlu0 %2623
          %2627 = vset.pattern.permute.xlu0 0
          %2628 = vperm.xlu0 %2627, %v2530
          %v2629 = vpop.permute.xlu0 %2628
          %2632 = vset.pattern.permute.xlu0 0
          %2633 = vperm.xlu0 %2632, %v2531
          %v2634 = vpop.permute.xlu0 %2633
          %2637 = vset.pattern.permute.xlu0 0
          %2638 = vperm.xlu0 %2637, %v2532
          %v2639 = vpop.permute.xlu0 %2638
          %2642 = vset.pattern.permute.xlu0 0
          %2643 = vperm.xlu0 %2642, %v2533
          %v2644 = vpop.permute.xlu0 %2643
          %2647 = vset.pattern.permute.xlu0 0
          %2648 = vperm.xlu0 %2647, %v2534
          %v2649 = vpop.permute.xlu0 %2648
          %2652 = vset.pattern.permute.xlu0 0
          %2653 = vperm.xlu0 %2652, %v2535
          %v2654 = vpop.permute.xlu0 %2653
          %2657 = vset.pattern.permute.xlu0 0
          %2658 = vperm.xlu0 %2657, %v2536
          %v2659 = vpop.permute.xlu0 %2658
          %2662 = vset.pattern.permute.xlu0 0
          %2663 = vperm.xlu0 %2662, %v2537
          %v2664 = vpop.permute.xlu0 %2663
          %2667 = vset.pattern.permute.xlu0 0
          %2668 = vperm.xlu0 %2667, %v2538
          %v2669 = vpop.permute.xlu0 %2668
          %2672 = vset.pattern.permute.xlu0 0
          %2673 = vperm.xlu0 %2672, %v2539
          %v2674 = vpop.permute.xlu0 %2673
          %2677 = vset.pattern.permute.xlu0 0
          %2678 = vperm.xlu0 %2677, %v2540
          %v2679 = vpop.permute.xlu0 %2678
          %2682 = vset.pattern.permute.xlu0 0
          %2683 = vperm.xlu0 %2682, %v2541
          %v2684 = vpop.permute.xlu0 %2683
          %2687 = vset.pattern.permute.xlu0 0
          %2688 = vperm.xlu0 %2687, %v2542
          %v2689 = vpop.permute.xlu0 %2688
          %2692 = vset.pattern.permute.xlu0 0
          %2693 = vperm.xlu0 %2692, %v2543
          %v2694 = vpop.permute.xlu0 %2693
          %2697 = vset.pattern.permute.xlu0 0
          %2698 = vperm.xlu0 %2697, %v2544
          %v2699 = vpop.permute.xlu0 %2698
          %2702 = vset.pattern.permute.xlu0 0
          %2703 = vperm.xlu0 %2702, %v2545
          %v2704 = vpop.permute.xlu0 %2703
          %2707 = vset.pattern.permute.xlu0 0
          %2708 = vperm.xlu0 %2707, %v2546
          %v2709 = vpop.permute.xlu0 %2708
          %2712 = vset.pattern.permute.xlu0 0
          %2713 = vperm.xlu0 %2712, %v2547
          %v2714 = vpop.permute.xlu0 %2713
          %2717 = vset.pattern.permute.xlu0 0
          %2718 = vperm.xlu0 %2717, %v2548
          %v2719 = vpop.permute.xlu0 %2718
          %2722 = vset.pattern.permute.xlu0 0
          %2723 = vperm.xlu0 %2722, %v2549
          %v2724 = vpop.permute.xlu0 %2723
          %2727 = vset.pattern.permute.xlu0 0
          %2728 = vperm.xlu0 %2727, %v2550
          %v2729 = vpop.permute.xlu0 %2728
          %2732 = vset.pattern.permute.xlu0 0
          %2733 = vperm.xlu0 %2732, %v2551
          %v2734 = vpop.permute.xlu0 %2733
          %2737 = vset.pattern.permute.xlu0 0
          %2738 = vperm.xlu0 %2737, %v2552
          %v2739 = vpop.permute.xlu0 %2738
          %2742 = vset.pattern.permute.xlu0 0
          %2743 = vperm.xlu0 %2742, %v2553
          %v2744 = vpop.permute.xlu0 %2743
          %v2746 = vmul.f32 %v2554, %v2589
          %v2747 = vmul.f32 %v2555, %v2594
          %v2748 = vmul.f32 %v2556, %v2599
          %v2749 = vmul.f32 %v2557, %v2604
          %v2750 = vmul.f32 %v2558, %v2609
          %v2751 = vmul.f32 %v2559, %v2614
          %v2752 = vmul.f32 %v2560, %v2619
          %v2753 = vmul.f32 %v2561, %v2624
          %v2754 = vmul.f32 %v2562, %v2629
          %v2755 = vmul.f32 %v2563, %v2634
          %v2756 = vmul.f32 %v2564, %v2639
          %v2757 = vmul.f32 %v2565, %v2644
          %v2758 = vmul.f32 %v2566, %v2649
          %v2759 = vmul.f32 %v2567, %v2654
          %v2760 = vmul.f32 %v2568, %v2659
          %v2761 = vmul.f32 %v2569, %v2664
          %v2762 = vmul.f32 %v2570, %v2669
          %v2763 = vmul.f32 %v2571, %v2674
          %v2764 = vmul.f32 %v2572, %v2679
          %v2765 = vmul.f32 %v2573, %v2684
          %v2766 = vmul.f32 %v2574, %v2689
          %v2767 = vmul.f32 %v2575, %v2694
          %v2768 = vmul.f32 %v2576, %v2699
          %v2769 = vmul.f32 %v2577, %v2704
          %v2770 = vmul.f32 %v2578, %v2709
          %v2771 = vmul.f32 %v2579, %v2714
          %v2772 = vmul.f32 %v2580, %v2719
          %v2773 = vmul.f32 %v2581, %v2724
          %v2774 = vmul.f32 %v2582, %v2729
          %v2775 = vmul.f32 %v2583, %v2734
          %v2776 = vmul.f32 %v2584, %v2739
          %v2777 = vmul.f32 %v2585, %v2744
          %v2778 = vpack.c.bf16 %v2747, %v2746
          %v2779 = vpack.c.bf16 %v2749, %v2748
          %v2780 = vpack.c.bf16 %v2751, %v2750
          %v2781 = vpack.c.bf16 %v2753, %v2752
          %v2782 = vpack.c.bf16 %v2755, %v2754
          %v2783 = vpack.c.bf16 %v2757, %v2756
          %v2784 = vpack.c.bf16 %v2759, %v2758
          %v2785 = vpack.c.bf16 %v2761, %v2760
          %v2786 = vpack.c.bf16 %v2763, %v2762
          %v2787 = vpack.c.bf16 %v2765, %v2764
          %v2788 = vpack.c.bf16 %v2767, %v2766
          %v2789 = vpack.c.bf16 %v2769, %v2768
          %v2790 = vpack.c.bf16 %v2771, %v2770
          %v2791 = vpack.c.bf16 %v2773, %v2772
          %v2792 = vpack.c.bf16 %v2775, %v2774
          %v2793 = vpack.c.bf16 %v2777, %v2776
          %v2794 = vld [vmem:[#allocation12] sm:$0xf]
          %v2795 = vld [vmem:[#allocation12 + $0x4] sm:$0xf]
          %v2796 = vld [vmem:[#allocation12 + $0x8] sm:$0xf]
          %v2797 = vld [vmem:[#allocation12 + $0xc] sm:$0xf]
          %v2798 = vld [vmem:[#allocation12 + $0x10] sm:$0xf]
          %v2799 = vld [vmem:[#allocation12 + $0x14] sm:$0xf]
          %v2800 = vld [vmem:[#allocation12 + $0x18] sm:$0xf]
          %v2801 = vld [vmem:[#allocation12 + $0x1c] sm:$0xf]
          %v2802 = vld [vmem:[#allocation12 + $0x20] sm:$0xf]
          %v2803 = vld [vmem:[#allocation12 + $0x24] sm:$0xf]
          %v2804 = vld [vmem:[#allocation12 + $0x28] sm:$0xf]
          %v2805 = vld [vmem:[#allocation12 + $0x2c] sm:$0xf]
          %v2806 = vld [vmem:[#allocation12 + $0x30] sm:$0xf]
          %v2807 = vld [vmem:[#allocation12 + $0x34] sm:$0xf]
          %v2808 = vld [vmem:[#allocation12 + $0x38] sm:$0xf]
          %v2809 = vld [vmem:[#allocation12 + $0x3c] sm:$0xf]
          %v2826 = vunpack.c.l.b16 %v2794
          %v2827 = vunpack.c.l.b16 %v2795
          %v2828 = vunpack.c.l.b16 %v2796
          %v2829 = vunpack.c.l.b16 %v2797
          %v2830 = vunpack.c.l.b16 %v2798
          %v2831 = vunpack.c.l.b16 %v2799
          %v2832 = vunpack.c.l.b16 %v2800
          %v2833 = vunpack.c.l.b16 %v2801
          %v2834 = vunpack.c.l.b16 %v2802
          %v2835 = vunpack.c.l.b16 %v2803
          %v2836 = vunpack.c.l.b16 %v2804
          %v2837 = vunpack.c.l.b16 %v2805
          %v2838 = vunpack.c.l.b16 %v2806
          %v2839 = vunpack.c.l.b16 %v2807
          %v2840 = vunpack.c.l.b16 %v2808
          %v2841 = vunpack.c.l.b16 %v2809
          %v2842 = vpack.c.b16 %v2827, %v2826
          %v2843 = vpack.c.b16 %v2829, %v2828
          %v2844 = vpack.c.b16 %v2831, %v2830
          %v2845 = vpack.c.b16 %v2833, %v2832
          %v2846 = vpack.c.b16 %v2835, %v2834
          %v2847 = vpack.c.b16 %v2837, %v2836
          %v2848 = vpack.c.b16 %v2839, %v2838
          %v2849 = vpack.c.b16 %v2841, %v2840
          %2858 = vmatprep.subr.bf16.mxu0 0
          %2859 = vmatpush1.bf16.msra.mxu0 %v2842
          %2860 = vmatprep.subr.bf16.mxu0 0
          %2861 = vmatpush1.bf16.msra.mxu0 %v2843
          %2862 = vmatprep.subr.bf16.mxu0 0
          %2863 = vmatpush1.bf16.msra.mxu0 %v2844
          %2864 = vmatprep.subr.bf16.mxu0 0
          %2865 = vmatpush1.bf16.msra.mxu0 %v2845
          %2866 = vmatprep.subr.bf16.mxu0 0
          %2867 = vmatpush1.bf16.msra.mxu0 %v2846
          %2868 = vmatprep.subr.bf16.mxu0 0
          %2869 = vmatpush1.bf16.msra.mxu0 %v2847
          %2870 = vmatprep.subr.bf16.mxu0 0
          %2871 = vmatpush1.bf16.msra.mxu0 %v2848
          %2872 = vmatprep.subr.bf16.mxu0 0
          %2873 = vmatpush1.bf16.msra.mxu0 %v2849
          %2874 = vmatprep.subr.bf16.mxu0 0
          %2875 = vmatpush1.bf16.msra.mxu0 0
          %2876 = vmatprep.subr.bf16.mxu0 0
          %2877 = vmatpush1.bf16.msra.mxu0 0
          %2878 = vmatprep.subr.bf16.mxu0 0
          %2879 = vmatpush1.bf16.msra.mxu0 0
          %2880 = vmatprep.subr.bf16.mxu0 0
          %2881 = vmatpush1.bf16.msra.mxu0 0
          %2882 = vmatprep.subr.bf16.mxu0 0
          %2883 = vmatpush1.bf16.msra.mxu0 0
          %2884 = vmatprep.subr.bf16.mxu0 0
          %2885 = vmatpush1.bf16.msra.mxu0 0
          %2886 = vmatprep.subr.bf16.mxu0 0
          %2887 = vmatpush1.bf16.msra.mxu0 0
          %2888 = vmatprep.subr.bf16.mxu0 0
          %2889 = vmatpush1.bf16.msra.mxu0 0
          %2890 = vmatprep.mubr.bf16.mxu0 0
          %2891 = vmatmul.mubr.bf16.gmra.mrb[0].mxu0 %v2778
          %v2892 = vpop.f32.mrb[0].mxu0
          %v2893 = vadd.f32 0.0, %v2892
          %v2894 = vpop.f32.mrb[0].mxu0
          %v2895 = vpop.f32.mrb[0].mxu0
          %v2896 = vadd.f32 0.0, %v2895
          %v2897 = vpop.f32.mrb[0].mxu0
          %2898 = vmatprep.mubr.bf16.mxu0 0
          %2899 = vmatmul.mubr.bf16.gmra.mrb[0].mxu0 %v2779
          %v2900 = vpop.f32.mrb[0].mxu0
          %v2901 = vadd.f32 0.0, %v2900
          %v2902 = vpop.f32.mrb[0].mxu0
          %v2903 = vpop.f32.mrb[0].mxu0
          %v2904 = vadd.f32 0.0, %v2903
          %v2905 = vpop.f32.mrb[0].mxu0
          %2906 = vmatprep.mubr.bf16.mxu0 0
          %2907 = vmatmul.mubr.bf16.gmra.mrb[0].mxu0 %v2780
          %v2908 = vpop.f32.mrb[0].mxu0
          %v2909 = vadd.f32 0.0, %v2908
          %v2910 = vpop.f32.mrb[0].mxu0
          %v2911 = vpop.f32.mrb[0].mxu0
          %v2912 = vadd.f32 0.0, %v2911
          %v2913 = vpop.f32.mrb[0].mxu0
          %2914 = vmatprep.mubr.bf16.mxu0 0
          %2915 = vmatmul.mubr.bf16.gmra.mrb[0].mxu0 %v2781
          %v2916 = vpop.f32.mrb[0].mxu0
          %v2917 = vadd.f32 0.0, %v2916
          %v2918 = vpop.f32.mrb[0].mxu0
          %v2919 = vpop.f32.mrb[0].mxu0
          %v2920 = vadd.f32 0.0, %v2919
          %v2921 = vpop.f32.mrb[0].mxu0
          %2922 = vmatprep.mubr.bf16.mxu0 0
          %2923 = vmatmul.mubr.bf16.gmra.mrb[0].mxu0 %v2782
          %v2924 = vpop.f32.mrb[0].mxu0
          %v2925 = vadd.f32 0.0, %v2924
          %v2926 = vpop.f32.mrb[0].mxu0
          %v2927 = vpop.f32.mrb[0].mxu0
          %v2928 = vadd.f32 0.0, %v2927
          %v2929 = vpop.f32.mrb[0].mxu0
          %2930 = vmatprep.mubr.bf16.mxu0 0
          %2931 = vmatmul.mubr.bf16.gmra.mrb[0].mxu0 %v2783
          %v2932 = vpop.f32.mrb[0].mxu0
          %v2933 = vadd.f32 0.0, %v2932
          %v2934 = vpop.f32.mrb[0].mxu0
          %v2935 = vpop.f32.mrb[0].mxu0
          %v2936 = vadd.f32 0.0, %v2935
          %v2937 = vpop.f32.mrb[0].mxu0
          %2938 = vmatprep.mubr.bf16.mxu0 0
          %2939 = vmatmul.mubr.bf16.gmra.mrb[0].mxu0 %v2784
          %v2940 = vpop.f32.mrb[0].mxu0
          %v2941 = vadd.f32 0.0, %v2940
          %v2942 = vpop.f32.mrb[0].mxu0
          %v2943 = vpop.f32.mrb[0].mxu0
          %v2944 = vadd.f32 0.0, %v2943
          %v2945 = vpop.f32.mrb[0].mxu0
          %2946 = vmatprep.mubr.bf16.mxu0 0
          %2947 = vmatmul.mubr.bf16.gmra.mrb[0].mxu0 %v2785
          %v2948 = vpop.f32.mrb[0].mxu0
          %v2949 = vadd.f32 0.0, %v2948
          %v2950 = vpop.f32.mrb[0].mxu0
          %v2951 = vpop.f32.mrb[0].mxu0
          %v2952 = vadd.f32 0.0, %v2951
          %v2953 = vpop.f32.mrb[0].mxu0
          %2954 = vmatprep.mubr.bf16.mxu0 0
          %2955 = vmatmul.mubr.bf16.gmra.mrb[0].mxu0 %v2786
          %v2956 = vpop.f32.mrb[0].mxu0
          %v2957 = vadd.f32 0.0, %v2956
          %v2958 = vpop.f32.mrb[0].mxu0
          %v2959 = vpop.f32.mrb[0].mxu0
          %v2960 = vadd.f32 0.0, %v2959
          %v2961 = vpop.f32.mrb[0].mxu0
          %2962 = vmatprep.mubr.bf16.mxu0 0
          %2963 = vmatmul.mubr.bf16.gmra.mrb[0].mxu0 %v2787
          %v2964 = vpop.f32.mrb[0].mxu0
          %v2965 = vadd.f32 0.0, %v2964
          %v2966 = vpop.f32.mrb[0].mxu0
          %v2967 = vpop.f32.mrb[0].mxu0
          %v2968 = vadd.f32 0.0, %v2967
          %v2969 = vpop.f32.mrb[0].mxu0
          %2970 = vmatprep.mubr.bf16.mxu0 0
          %2971 = vmatmul.mubr.bf16.gmra.mrb[0].mxu0 %v2788
          %v2972 = vpop.f32.mrb[0].mxu0
          %v2973 = vadd.f32 0.0, %v2972
          %v2974 = vpop.f32.mrb[0].mxu0
          %v2975 = vpop.f32.mrb[0].mxu0
          %v2976 = vadd.f32 0.0, %v2975
          %v2977 = vpop.f32.mrb[0].mxu0
          %2978 = vmatprep.mubr.bf16.mxu0 0
          %2979 = vmatmul.mubr.bf16.gmra.mrb[0].mxu0 %v2789
          %v2980 = vpop.f32.mrb[0].mxu0
          %v2981 = vadd.f32 0.0, %v2980
          %v2982 = vpop.f32.mrb[0].mxu0
          %v2983 = vpop.f32.mrb[0].mxu0
          %v2984 = vadd.f32 0.0, %v2983
          %v2985 = vpop.f32.mrb[0].mxu0
          %2986 = vmatprep.mubr.bf16.mxu0 0
          %2987 = vmatmul.mubr.bf16.gmra.mrb[0].mxu0 %v2790
          %v2988 = vpop.f32.mrb[0].mxu0
          %v2989 = vadd.f32 0.0, %v2988
          %v2990 = vpop.f32.mrb[0].mxu0
          %v2991 = vpop.f32.mrb[0].mxu0
          %v2992 = vadd.f32 0.0, %v2991
          %v2993 = vpop.f32.mrb[0].mxu0
          %2994 = vmatprep.mubr.bf16.mxu0 0
          %2995 = vmatmul.mubr.bf16.gmra.mrb[0].mxu0 %v2791
          %v2996 = vpop.f32.mrb[0].mxu0
          %v2997 = vadd.f32 0.0, %v2996
          %v2998 = vpop.f32.mrb[0].mxu0
          %v2999 = vpop.f32.mrb[0].mxu0
          %v3000 = vadd.f32 0.0, %v2999
          %v3001 = vpop.f32.mrb[0].mxu0
          %3002 = vmatprep.mubr.bf16.mxu0 0
          %3003 = vmatmul.mubr.bf16.gmra.mrb[0].mxu0 %v2792
          %v3004 = vpop.f32.mrb[0].mxu0
          %v3005 = vadd.f32 0.0, %v3004
          %v3006 = vpop.f32.mrb[0].mxu0
          %v3007 = vpop.f32.mrb[0].mxu0
          %v3008 = vadd.f32 0.0, %v3007
          %v3009 = vpop.f32.mrb[0].mxu0
          %3010 = vmatprep.mubr.bf16.mxu0 0
          %3011 = vmatmul.mubr.bf16.gmra.mrb[0].mxu0 %v2793
          %v3012 = vpop.f32.mrb[0].mxu0
          %v3013 = vadd.f32 0.0, %v3012
          %v3014 = vpop.f32.mrb[0].mxu0
          %v3015 = vpop.f32.mrb[0].mxu0
          %v3016 = vadd.f32 0.0, %v3015
          %v3017 = vpop.f32.mrb[0].mxu0
          %3018 = vdwg.mxu0
          %3019 = vst [vmem:[%s313] sm:$0xff] %v2893
          %3020 = vst [vmem:[%s313 + $0x8] sm:$0xff] %v2896
          %3021 = vst [vmem:[%s313 + $0x10] sm:$0xff] %v2901
          %3022 = vst [vmem:[%s313 + $0x18] sm:$0xff] %v2904
          %3023 = vst [vmem:[%s313 + $0x20] sm:$0xff] %v2909
          %3024 = vst [vmem:[%s313 + $0x28] sm:$0xff] %v2912
          %3025 = vst [vmem:[%s313 + $0x30] sm:$0xff] %v2917
          %3026 = vst [vmem:[%s313 + $0x38] sm:$0xff] %v2920
          %3027 = vst [vmem:[%s313 + $0x40] sm:$0xff] %v2925
          %3028 = vst [vmem:[%s313 + $0x48] sm:$0xff] %v2928
          %3029 = vst [vmem:[%s313 + $0x50] sm:$0xff] %v2933
          %3030 = vst [vmem:[%s313 + $0x58] sm:$0xff] %v2936
          %3031 = vst [vmem:[%s313 + $0x60] sm:$0xff] %v2941
          %3032 = vst [vmem:[%s313 + $0x68] sm:$0xff] %v2944
          %3033 = vst [vmem:[%s313 + $0x70] sm:$0xff] %v2949
          %3034 = vst [vmem:[%s313 + $0x78] sm:$0xff] %v2952
          %3035 = vst [vmem:[%s313 + $0x80] sm:$0xff] %v2957
          %3036 = vst [vmem:[%s313 + $0x88] sm:$0xff] %v2960
          %3037 = vst [vmem:[%s313 + $0x90] sm:$0xff] %v2965
          %3038 = vst [vmem:[%s313 + $0x98] sm:$0xff] %v2968
          %3039 = vst [vmem:[%s313 + $0xa0] sm:$0xff] %v2973
          %3040 = vst [vmem:[%s313 + $0xa8] sm:$0xff] %v2976
          %3041 = vst [vmem:[%s313 + $0xb0] sm:$0xff] %v2981
          %3042 = vst [vmem:[%s313 + $0xb8] sm:$0xff] %v2984
          %3043 = vst [vmem:[%s313 + $0xc0] sm:$0xff] %v2989
          %3044 = vst [vmem:[%s313 + $0xc8] sm:$0xff] %v2992
          %3045 = vst [vmem:[%s313 + $0xd0] sm:$0xff] %v2997
          %3046 = vst [vmem:[%s313 + $0xd8] sm:$0xff] %v3000
          %3047 = vst [vmem:[%s313 + $0xe0] sm:$0xff] %v3005
          %3048 = vst [vmem:[%s313 + $0xe8] sm:$0xff] %v3008
          %3049 = vst [vmem:[%s313 + $0xf0] sm:$0xff] %v3013
          %3050 = vst [vmem:[%s313 + $0xf8] sm:$0xff] %v3016
        $region60: #{tpu_custom_call.1} parent=35 // pred_fallthru
          _
        %s3051 = sand.u32 %s152, 1
        %s3052 = scalar_lea.sflag [#allocation8], %s3051
        %s3053 = sand.u32 %s152, 1
        %s3054 = smul.addr %s3053, 256
        %s3055 = scalar_lea.vmem [#allocation14], %s3054
        // Predicated region
        $region61: #{tpu_custom_call.1} parent=35 // pred_check
          %p3056 = pneg %p162
        $region62: #{tpu_custom_call.1} parent=35 // pred_check_branch
          %3058 = sbr.rel (%p3056) target = $region64
        $region63: #{tpu_custom_call.1} parent=35 // pred_region
          %s3059 = smul.u32 32, %s31
          %s3061 = ssub.s32 4096, 4096
          %3062 = vsyncadd %s3052, %s3061
          %s3063 = smul.addr %s30, 32
          %s3064 = sadd.s32 %s3059, %s3063
          %s3065 = smul.addr %s3064, 128
          %s3066 = scalar_lea.hbm %s4, %s3065
          %s3067 = sshll.u32 %s3055, 4
          %s3068 = int_to_ptr.vmem [resolvable:$true] %s3067
          %3073 = dma.vmem_to_hbm [thread:$0]  %s3068, 4096, %s3066, %s3052, 128, 128, 8
        $region64: #{tpu_custom_call.1} parent=35 // pred_fallthru
          _
      $region36: #{tpu_custom_call.1} parent=5 // pred_fallthru
        _
      %p3074 = scmp.le.s32.totalorder 2, %s20
      // Predicated region
      $region65: #{tpu_custom_call.1} parent=5 // pred_check
        %p3075 = pneg %p3074
      $region66: #{tpu_custom_call.1} parent=5 // pred_check_branch
        %3077 = sbr.rel (%p3075) target = $region68
      $region67: #{tpu_custom_call.1} parent=5 // pred_region
        %s3078 = ssub.s32 %s20, 2
        // Predicated region
        $region69: #{tpu_custom_call.1} parent=67 // pred_check
          %p3079 = pneg %p168
        $region70: #{tpu_custom_call.1} parent=67 // pred_check_branch
          %3081 = sbr.rel (%p3079) target = $region72
        $region71: #{tpu_custom_call.1} parent=67 // pred_region
          %s3082 = sand.u32 %s153, 1
          %s3083 = scalar_lea.sflag [#allocation8], %s3082
          %s3084 = sand.u32 %s153, 1
          %s3085 = smul.addr %s3084, 256
          %s3086 = scalar_lea.vmem [#allocation14], %s3085
          %3087 = dma.done %s3083, 4096
        $region72: #{tpu_custom_call.1} parent=67 // pred_fallthru
          _
      $region68: #{tpu_custom_call.1} parent=5 // pred_fallthru
        _
    $region6: #{tpu_custom_call.1} parent=1 // loop_footer
      %s24 = sadd.s32 1, %s20
    $region7: #{tpu_custom_call.1} parent=1 // loop_footer_branch
      %19 = sbr.rel target = $region3
    $region8: #{tpu_custom_call.1} parent=1 // loop_exit
      _
    %3088 = vsyncpa [#allocation7], 1
    %s3089 = scalar_lea.sflag [#allocation7], 1
    %3090 = vsyncpa %s3089, 1
    %3091 = vsyncpa [#allocation10], 1
    %s3092 = scalar_lea.sflag [#allocation10], 1
    %3093 = vsyncpa %s3092, 1
    %3094 = vsyncpa [#allocation13], 1
    %3095 = vsyncpa [#allocation8], 1
    %s3096 = scalar_lea.sflag [#allocation8], 1
    %3097 = vsyncpa %s3096, 1

</llo_original>
